<compile_context>
chip_gen: v6e
topology: v6e:2x2x1
jax: 0.10.0
libtpu: 0.0.40
codegen_flags: <defaults>
</compile_context>

<pallas_src>
import functools

import jax
import jax.numpy as jnp
from jax.experimental import pallas as pl
from jax.experimental.pallas import tpu as pltpu


LANE = 128  # per-gate padded width -> every gate slice is vreg-lane aligned


def _round_up(n, m):
    return ((n + m - 1) // m) * m


# -----------------------------------------------------------------------------
# Fused kernel: all LSTM layers + output Linear, single invocation (no grid).
# Inputs/outputs are whole arrays resident in VMEM (default BlockSpecs).
# -----------------------------------------------------------------------------
def _lstmnet_kernel(x_ref, *refs, T, B, Hp, num_layers):
    f32 = jnp.float32
    layer_refs = refs[:3 * num_layers]              # (wx, wh, b) per layer
    wout_ref, bout_ref, out_ref = refs[3 * num_layers:]

    def cell(gates, c_prev):
        # Each gate block is 128-lane aligned -> free vreg-tile slices,
        # gate math stays at full-vreg width.
        i_g = jax.nn.sigmoid(gates[:, 0 * Hp:1 * Hp])
        f_g = jax.nn.sigmoid(gates[:, 1 * Hp:2 * Hp])
        g_g = jnp.tanh(gates[:, 2 * Hp:3 * Hp])
        o_g = jax.nn.sigmoid(gates[:, 3 * Hp:4 * Hp])
        c_new = f_g * c_prev + i_g * g_g
        h_new = o_g * jnp.tanh(c_new)
        return h_new, c_new

    wx0 = layer_refs[0][...]                        # (D,  4*Hp)
    wh0 = layer_refs[1][...]                        # (Hp, 4*Hp)
    b0 = layer_refs[2][...]                         # (1,  4*Hp)
    deep_w = [(layer_refs[3 * l][...], layer_refs[3 * l + 1][...],
               layer_refs[3 * l + 2][...]) for l in range(1, num_layers)]

    # Hoisted layer-0 input projection: one matmul for all T steps (bias folded).
    x = x_ref[...].astype(f32)                      # (B, T, D) batch-first
    D = x.shape[-1]
    gx0 = jnp.dot(x.reshape(B * T, D), wx0,
                  preferred_element_type=f32) + b0  # (B*T, 4*Hp)
    gx0 = gx0.reshape(B, T, 4 * Hp)

    h = [jnp.zeros((B, Hp), f32) for _ in range(num_layers)]
    c = [jnp.zeros((B, Hp), f32) for _ in range(num_layers)]

    for t in range(T):                              # fully unrolled, T static
        # ---- layer 0: only the recurrent matmul is on the serial path ----
        g0 = gx0[:, t] + jnp.dot(h[0], wh0, preferred_element_type=f32)
        h[0], c[0] = cell(g0, c[0])
        # ---- deeper layers consume this step's hidden state ----
        for l in range(1, num_layers):
            wx, wh, b = deep_w[l - 1]
            gl = (jnp.dot(h[l - 1], wx, preferred_element_type=f32)
                  + jnp.dot(h[l], wh, preferred_element_type=f32) + b)
            h[l], c[l] = cell(gl, c[l])

    # Output head on the last hidden state only; single small HBM write.
    out_ref[...] = (jnp.dot(h[-1], wout_ref[...], preferred_element_type=f32)
                    + bout_ref[...]).astype(out_ref.dtype)


@jax.jit
def lstmnet_forward(x_btd, kernel_args):
    """x_btd: (B, T, input_size), batch_first. Returns predictions[:, -1] -> (B, input_size)."""
    B, T, _ = x_btd.shape
    num_layers = (len(kernel_args) - 2) // 3
    Hp = kernel_args[1].shape[0]                    # wh0: (Hp, 4*Hp)
    O = kernel_args[-2].shape[1]                    # wout: (Hp, O)
    kernel = functools.partial(_lstmnet_kernel, T=T, B=B, Hp=Hp,
                               num_layers=num_layers)
    return pl.pallas_call(
        kernel,
        out_shape=jax.ShapeDtypeStruct((B, O), jnp.float32),
    )(x_btd.astype(jnp.float32), *kernel_args)


# -----------------------------------------------------------------------------
# Parameter construction (PyTorch-style uniform init) + gate-aligned padding.
# -----------------------------------------------------------------------------
def _pad_gate_cols(w_t, H, Hp):
    """(K, 4H) -> (K, 4Hp): each gate block moved to a 128-aligned column block."""
    K = w_t.shape[0]
    out = jnp.zeros((K, 4 * Hp), w_t.dtype)
    for g in range(4):
        out = out.at[:, g * Hp:g * Hp + H].set(w_t[:, g * H:(g + 1) * H])
    return out


def _pad_rows(w, Hp):
    """(H, N) -> (Hp, N) zero-padded rows (inputs coming from a padded hidden state)."""
    H, N = w.shape
    return jnp.zeros((Hp, N), w.dtype).at[:H, :].set(w)


def init_params(key, input_size, hidden_size, num_layers):
    H = hidden_size
    Hp = _round_up(H, LANE)
    bound = 1.0 / (H ** 0.5)

    ref = {"lstm": [], "out": None}
    kargs = []
    for layer in range(num_layers):
        d_in = input_size if layer == 0 else H
        key, k1, k2, k3, k4 = jax.random.split(key, 5)
        w_ih = jax.random.uniform(k1, (4 * H, d_in), jnp.float32, -bound, bound)
        w_hh = jax.random.uniform(k2, (4 * H, H), jnp.float32, -bound, bound)
        b_ih = jax.random.uniform(k3, (4 * H,), jnp.float32, -bound, bound)
        b_hh = jax.random.uniform(k4, (4 * H,), jnp.float32, -bound, bound)

        w_ih_t = w_ih.T                                   # (d_in, 4H)
        w_hh_t = w_hh.T                                   # (H,    4H)
        b = (b_ih + b_hh).reshape(1, 4 * H)               # (1,    4H)
        ref["lstm"].append({"w_ih_t": w_ih_t, "w_hh_t": w_hh_t, "b": b})

        wx = _pad_gate_cols(w_ih_t, H, Hp)                # (d_in, 4Hp)
        if layer > 0:
            wx = _pad_rows(wx, Hp)                        # (Hp, 4Hp)
        wh = _pad_rows(_pad_gate_cols(w_hh_t, H, Hp), Hp)  # (Hp, 4Hp)
        bp = _pad_gate_cols(b, H, Hp)                     # (1,  4Hp)
        kargs += [wx, wh, bp]

    key, k1, k2 = jax.random.split(key, 3)
    w_out = jax.random.uniform(k1, (input_size, H), jnp.float32, -bound, bound)
    b_out = jax.random.uniform(k2, (input_size,), jnp.float32, -bound, bound)
    ref["out"] = {"w_t": w_out.T, "b": b_out.reshape(1, input_size)}
    kargs += [_pad_rows(w_out.T, Hp), b_out.reshape(1, input_size)]
    return tuple(kargs), ref


# -----------------------------------------------------------------------------
# Pure-JAX reference (unpadded, scan-based) for a correctness check
# -----------------------------------------------------------------------------
def lstmnet_reference(x_btd, ref_params, hidden_size):
    x = jnp.transpose(x_btd, (1, 0, 2)).astype(jnp.float32)  # (T, B, D)
    B = x.shape[1]
    H = hidden_size
    for lp in ref_params["lstm"]:
        def step(carry, x_t, lp=lp):
            h, c = carry
            gates = x_t @ lp["w_ih_t"] + h @ lp["w_hh_t"] + lp["b"]
            i = jax.nn.sigmoid(gates[:, :H])
            f = jax.nn.sigmoid(gates[:, H:2 * H])
            g = jnp.tanh(gates[:, 2 * H:3 * H])
            o = jax.nn.sigmoid(gates[:, 3 * H:])
            c = f * c + i * g
            h = o * jnp.tanh(c)
            return (h, c), h
        init = (jnp.zeros((B, H), jnp.float32), jnp.zeros((B, H), jnp.float32))
        _, x = jax.lax.scan(step, init, x)
    return x[-1] @ ref_params["out"]["w_t"] + ref_params["out"]["b"]


if __name__ == "__main__":
    input_size = 8
    hidden_size = 32
    num_layers = 2
    batch = 2
    seq = 8

    key = jax.random.PRNGKey(0)
    k_param, k_x = jax.random.split(key)
    kernel_args, ref_params = init_params(k_param, input_size, hidden_size,
                                          num_layers)
    x = jax.random.normal(k_x, (batch, seq, input_size), jnp.float32)

    out = lstmnet_forward(x, kernel_args)
    out = jax.block_until_ready(out)

    ref = lstmnet_reference(x, ref_params, hidden_size)
    assert out.shape == (batch, input_size)
    assert jnp.allclose(out, ref, atol=1e-4, rtol=1e-4), "mismatch vs reference"

    print("KERNEL_OK")
</pallas_src>

<mosaic_0001>
module attributes {stable_mosaic.version = 11 : i64} {
  func.func @_lstmnet_kernel(%arg0: memref<2x8x8xf32, #tpu.memory_space<vmem>>, %arg1: memref<8x512xf32, #tpu.memory_space<vmem>>, %arg2: memref<128x512xf32, #tpu.memory_space<vmem>>, %arg3: memref<1x512xf32, #tpu.memory_space<vmem>>, %arg4: memref<128x512xf32, #tpu.memory_space<vmem>>, %arg5: memref<128x512xf32, #tpu.memory_space<vmem>>, %arg6: memref<1x512xf32, #tpu.memory_space<vmem>>, %arg7: memref<128x8xf32, #tpu.memory_space<vmem>>, %arg8: memref<1x8xf32, #tpu.memory_space<vmem>>, %arg9: memref<2x8xf32, #tpu.memory_space<vmem>>) attributes {dimension_semantics = [], scalar_prefetch = 0 : i64, scratch_operands = 0 : i64, tpu.core_type = #tpu.core_type<tc>} {
    %c0 = arith.constant 0 : index
    %c0_0 = arith.constant 0 : index
    %0 = vector.load %arg1[%c0, %c0_0] : memref<8x512xf32, #tpu.memory_space<vmem>>, vector<8x512xf32>
    %c0_1 = arith.constant 0 : index
    %c0_2 = arith.constant 0 : index
    %1 = vector.load %arg2[%c0_1, %c0_2] : memref<128x512xf32, #tpu.memory_space<vmem>>, vector<128x512xf32>
    %c0_3 = arith.constant 0 : index
    %c0_4 = arith.constant 0 : index
    %2 = vector.load %arg3[%c0_3, %c0_4] : memref<1x512xf32, #tpu.memory_space<vmem>>, vector<1x512xf32>
    %c0_5 = arith.constant 0 : index
    %c0_6 = arith.constant 0 : index
    %3 = vector.load %arg4[%c0_5, %c0_6] : memref<128x512xf32, #tpu.memory_space<vmem>>, vector<128x512xf32>
    %c0_7 = arith.constant 0 : index
    %c0_8 = arith.constant 0 : index
    %4 = vector.load %arg5[%c0_7, %c0_8] : memref<128x512xf32, #tpu.memory_space<vmem>>, vector<128x512xf32>
    %c0_9 = arith.constant 0 : index
    %c0_10 = arith.constant 0 : index
    %5 = vector.load %arg6[%c0_9, %c0_10] : memref<1x512xf32, #tpu.memory_space<vmem>>, vector<1x512xf32>
    %c0_11 = arith.constant 0 : index
    %c0_12 = arith.constant 0 : index
    %c0_13 = arith.constant 0 : index
    %6 = vector.load %arg0[%c0_11, %c0_12, %c0_13] : memref<2x8x8xf32, #tpu.memory_space<vmem>>, vector<2x8x8xf32>
    %7 = vector.shape_cast %6 : vector<2x8x8xf32> to vector<16x8xf32>
    %cst = arith.constant dense<0.000000e+00> : vector<16x512xf32>
    %8 = tpu.matmul %7, %0, %cst {dimension_numbers = #tpu.dot_dimension_numbers<[1], [0], [0], [1], [0, 0, 1, 1], [], []>} : vector<16x8xf32>, vector<8x512xf32>, vector<16x512xf32> -> vector<16x512xf32>
    %9 = vector.broadcast %2 : vector<1x512xf32> to vector<16x512xf32>
    %10 = arith.addf %8, %9 : vector<16x512xf32>
    %11 = vector.shape_cast %10 : vector<16x512xf32> to vector<2x8x512xf32>
    %cst_14 = arith.constant 0.000000e+00 : f32
    %12 = vector.broadcast %cst_14 : f32 to vector<2x128xf32>
    %cst_15 = arith.constant 0.000000e+00 : f32
    %13 = vector.broadcast %cst_15 : f32 to vector<2x128xf32>
    %cst_16 = arith.constant 0.000000e+00 : f32
    %14 = vector.broadcast %cst_16 : f32 to vector<2x128xf32>
    %cst_17 = arith.constant 0.000000e+00 : f32
    %15 = vector.broadcast %cst_17 : f32 to vector<2x128xf32>
    %16 = vector.extract_strided_slice %11 {offsets = [0, 0, 0], sizes = [2, 1, 512], strides = [1, 1, 1]} : vector<2x8x512xf32> to vector<2x1x512xf32>
    %17 = vector.shape_cast %16 : vector<2x1x512xf32> to vector<2x512xf32>
    %cst_18 = arith.constant dense<0.000000e+00> : vector<2x512xf32>
    %18 = tpu.matmul %12, %1, %cst_18 {dimension_numbers = #tpu.dot_dimension_numbers<[1], [0], [0], [1], [0, 0, 1, 1], [], []>} : vector<2x128xf32>, vector<128x512xf32>, vector<2x512xf32> -> vector<2x512xf32>
    %19 = arith.addf %17, %18 : vector<2x512xf32>
    %20 = vector.extract_strided_slice %19 {offsets = [0, 0], sizes = [2, 128], strides = [1, 1]} : vector<2x512xf32> to vector<2x128xf32>
    %21 = arith.negf %20 : vector<2x128xf32>
    %22 = math.exp %21 : vector<2x128xf32>
    %cst_19 = arith.constant 1.000000e+00 : f32
    %23 = vector.broadcast %cst_19 : f32 to vector<2x128xf32>
    %24 = arith.addf %23, %22 : vector<2x128xf32>
    %25 = arith.divf %23, %24 : vector<2x128xf32>
    %26 = vector.extract_strided_slice %19 {offsets = [0, 128], sizes = [2, 128], strides = [1, 1]} : vector<2x512xf32> to vector<2x128xf32>
    %27 = arith.negf %26 : vector<2x128xf32>
    %28 = math.exp %27 : vector<2x128xf32>
    %cst_20 = arith.constant 1.000000e+00 : f32
    %29 = vector.broadcast %cst_20 : f32 to vector<2x128xf32>
    %30 = arith.addf %29, %28 : vector<2x128xf32>
    %31 = arith.divf %29, %30 : vector<2x128xf32>
    %32 = vector.extract_strided_slice %19 {offsets = [0, 256], sizes = [2, 128], strides = [1, 1]} : vector<2x512xf32> to vector<2x128xf32>
    %33 = math.tanh %32 : vector<2x128xf32>
    %34 = vector.extract_strided_slice %19 {offsets = [0, 384], sizes = [2, 128], strides = [1, 1]} : vector<2x512xf32> to vector<2x128xf32>
    %35 = arith.negf %34 : vector<2x128xf32>
    %36 = math.exp %35 : vector<2x128xf32>
    %cst_21 = arith.constant 1.000000e+00 : f32
    %37 = vector.broadcast %cst_21 : f32 to vector<2x128xf32>
    %38 = arith.addf %37, %36 : vector<2x128xf32>
    %39 = arith.divf %37, %38 : vector<2x128xf32>
    %40 = arith.mulf %31, %14 : vector<2x128xf32>
    %41 = arith.mulf %25, %33 : vector<2x128xf32>
    %42 = arith.addf %40, %41 : vector<2x128xf32>
    %43 = math.tanh %42 : vector<2x128xf32>
    %44 = arith.mulf %39, %43 : vector<2x128xf32>
    %cst_22 = arith.constant dense<0.000000e+00> : vector<2x512xf32>
    %45 = tpu.matmul %44, %3, %cst_22 {dimension_numbers = #tpu.dot_dimension_numbers<[1], [0], [0], [1], [0, 0, 1, 1], [], []>} : vector<2x128xf32>, vector<128x512xf32>, vector<2x512xf32> -> vector<2x512xf32>
    %cst_23 = arith.constant dense<0.000000e+00> : vector<2x512xf32>
    %46 = tpu.matmul %13, %4, %cst_23 {dimension_numbers = #tpu.dot_dimension_numbers<[1], [0], [0], [1], [0, 0, 1, 1], [], []>} : vector<2x128xf32>, vector<128x512xf32>, vector<2x512xf32> -> vector<2x512xf32>
    %47 = arith.addf %45, %46 : vector<2x512xf32>
    %48 = vector.broadcast %5 : vector<1x512xf32> to vector<2x512xf32>
    %49 = arith.addf %47, %48 : vector<2x512xf32>
    %50 = vector.extract_strided_slice %49 {offsets = [0, 0], sizes = [2, 128], strides = [1, 1]} : vector<2x512xf32> to vector<2x128xf32>
    %51 = arith.negf %50 : vector<2x128xf32>
    %52 = math.exp %51 : vector<2x128xf32>
    %cst_24 = arith.constant 1.000000e+00 : f32
    %53 = vector.broadcast %cst_24 : f32 to vector<2x128xf32>
    %54 = arith.addf %53, %52 : vector<2x128xf32>
    %55 = arith.divf %53, %54 : vector<2x128xf32>
    %56 = vector.extract_strided_slice %49 {offsets = [0, 128], sizes = [2, 128], strides = [1, 1]} : vector<2x512xf32> to vector<2x128xf32>
    %57 = arith.negf %56 : vector<2x128xf32>
    %58 = math.exp %57 : vector<2x128xf32>
    %cst_25 = arith.constant 1.000000e+00 : f32
    %59 = vector.broadcast %cst_25 : f32 to vector<2x128xf32>
    %60 = arith.addf %59, %58 : vector<2x128xf32>
    %61 = arith.divf %59, %60 : vector<2x128xf32>
    %62 = vector.extract_strided_slice %49 {offsets = [0, 256], sizes = [2, 128], strides = [1, 1]} : vector<2x512xf32> to vector<2x128xf32>
    %63 = math.tanh %62 : vector<2x128xf32>
    %64 = vector.extract_strided_slice %49 {offsets = [0, 384], sizes = [2, 128], strides = [1, 1]} : vector<2x512xf32> to vector<2x128xf32>
    %65 = arith.negf %64 : vector<2x128xf32>
    %66 = math.exp %65 : vector<2x128xf32>
    %cst_26 = arith.constant 1.000000e+00 : f32
    %67 = vector.broadcast %cst_26 : f32 to vector<2x128xf32>
    %68 = arith.addf %67, %66 : vector<2x128xf32>
    %69 = arith.divf %67, %68 : vector<2x128xf32>
    %70 = arith.mulf %61, %15 : vector<2x128xf32>
    %71 = arith.mulf %55, %63 : vector<2x128xf32>
    %72 = arith.addf %70, %71 : vector<2x128xf32>
    %73 = math.tanh %72 : vector<2x128xf32>
    %74 = arith.mulf %69, %73 : vector<2x128xf32>
    %75 = vector.extract_strided_slice %11 {offsets = [0, 1, 0], sizes = [2, 1, 512], strides = [1, 1, 1]} : vector<2x8x512xf32> to vector<2x1x512xf32>
    %76 = vector.shape_cast %75 : vector<2x1x512xf32> to vector<2x512xf32>
    %cst_27 = arith.constant dense<0.000000e+00> : vector<2x512xf32>
    %77 = tpu.matmul %44, %1, %cst_27 {dimension_numbers = #tpu.dot_dimension_numbers<[1], [0], [0], [1], [0, 0, 1, 1], [], []>} : vector<2x128xf32>, vector<128x512xf32>, vector<2x512xf32> -> vector<2x512xf32>
    %78 = arith.addf %76, %77 : vector<2x512xf32>
    %79 = vector.extract_strided_slice %78 {offsets = [0, 0], sizes = [2, 128], strides = [1, 1]} : vector<2x512xf32> to vector<2x128xf32>
    %80 = arith.negf %79 : vector<2x128xf32>
    %81 = math.exp %80 : vector<2x128xf32>
    %cst_28 = arith.constant 1.000000e+00 : f32
    %82 = vector.broadcast %cst_28 : f32 to vector<2x128xf32>
    %83 = arith.addf %82, %81 : vector<2x128xf32>
    %84 = arith.divf %82, %83 : vector<2x128xf32>
    %85 = vector.extract_strided_slice %78 {offsets = [0, 128], sizes = [2, 128], strides = [1, 1]} : vector<2x512xf32> to vector<2x128xf32>
    %86 = arith.negf %85 : vector<2x128xf32>
    %87 = math.exp %86 : vector<2x128xf32>
    %cst_29 = arith.constant 1.000000e+00 : f32
    %88 = vector.broadcast %cst_29 : f32 to vector<2x128xf32>
    %89 = arith.addf %88, %87 : vector<2x128xf32>
    %90 = arith.divf %88, %89 : vector<2x128xf32>
    %91 = vector.extract_strided_slice %78 {offsets = [0, 256], sizes = [2, 128], strides = [1, 1]} : vector<2x512xf32> to vector<2x128xf32>
    %92 = math.tanh %91 : vector<2x128xf32>
    %93 = vector.extract_strided_slice %78 {offsets = [0, 384], sizes = [2, 128], strides = [1, 1]} : vector<2x512xf32> to vector<2x128xf32>
    %94 = arith.negf %93 : vector<2x128xf32>
    %95 = math.exp %94 : vector<2x128xf32>
    %cst_30 = arith.constant 1.000000e+00 : f32
    %96 = vector.broadcast %cst_30 : f32 to vector<2x128xf32>
    %97 = arith.addf %96, %95 : vector<2x128xf32>
    %98 = arith.divf %96, %97 : vector<2x128xf32>
    %99 = arith.mulf %90, %42 : vector<2x128xf32>
    %100 = arith.mulf %84, %92 : vector<2x128xf32>
    %101 = arith.addf %99, %100 : vector<2x128xf32>
    %102 = math.tanh %101 : vector<2x128xf32>
    %103 = arith.mulf %98, %102 : vector<2x128xf32>
    %cst_31 = arith.constant dense<0.000000e+00> : vector<2x512xf32>
    %104 = tpu.matmul %103, %3, %cst_31 {dimension_numbers = #tpu.dot_dimension_numbers<[1], [0], [0], [1], [0, 0, 1, 1], [], []>} : vector<2x128xf32>, vector<128x512xf32>, vector<2x512xf32> -> vector<2x512xf32>
    %cst_32 = arith.constant dense<0.000000e+00> : vector<2x512xf32>
    %105 = tpu.matmul %74, %4, %cst_32 {dimension_numbers = #tpu.dot_dimension_numbers<[1], [0], [0], [1], [0, 0, 1, 1], [], []>} : vector<2x128xf32>, vector<128x512xf32>, vector<2x512xf32> -> vector<2x512xf32>
    %106 = arith.addf %104, %105 : vector<2x512xf32>
    %107 = vector.broadcast %5 : vector<1x512xf32> to vector<2x512xf32>
    %108 = arith.addf %106, %107 : vector<2x512xf32>
    %109 = vector.extract_strided_slice %108 {offsets = [0, 0], sizes = [2, 128], strides = [1, 1]} : vector<2x512xf32> to vector<2x128xf32>
    %110 = arith.negf %109 : vector<2x128xf32>
    %111 = math.exp %110 : vector<2x128xf32>
    %cst_33 = arith.constant 1.000000e+00 : f32
    %112 = vector.broadcast %cst_33 : f32 to vector<2x128xf32>
    %113 = arith.addf %112, %111 : vector<2x128xf32>
    %114 = arith.divf %112, %113 : vector<2x128xf32>
    %115 = vector.extract_strided_slice %108 {offsets = [0, 128], sizes = [2, 128], strides = [1, 1]} : vector<2x512xf32> to vector<2x128xf32>
    %116 = arith.negf %115 : vector<2x128xf32>
    %117 = math.exp %116 : vector<2x128xf32>
    %cst_34 = arith.constant 1.000000e+00 : f32
    %118 = vector.broadcast %cst_34 : f32 to vector<2x128xf32>
    %119 = arith.addf %118, %117 : vector<2x128xf32>
    %120 = arith.divf %118, %119 : vector<2x128xf32>
    %121 = vector.extract_strided_slice %108 {offsets = [0, 256], sizes = [2, 128], strides = [1, 1]} : vector<2x512xf32> to vector<2x128xf32>
    %122 = math.tanh %121 : vector<2x128xf32>
    %123 = vector.extract_strided_slice %108 {offsets = [0, 384], sizes = [2, 128], strides = [1, 1]} : vector<2x512xf32> to vector<2x128xf32>
    %124 = arith.negf %123 : vector<2x128xf32>
    %125 = math.exp %124 : vector<2x128xf32>
    %cst_35 = arith.constant 1.000000e+00 : f32
    %126 = vector.broadcast %cst_35 : f32 to vector<2x128xf32>
    %127 = arith.addf %126, %125 : vector<2x128xf32>
    %128 = arith.divf %126, %127 : vector<2x128xf32>
    %129 = arith.mulf %120, %72 : vector<2x128xf32>
    %130 = arith.mulf %114, %122 : vector<2x128xf32>
    %131 = arith.addf %129, %130 : vector<2x128xf32>
    %132 = math.tanh %131 : vector<2x128xf32>
    %133 = arith.mulf %128, %132 : vector<2x128xf32>
    %134 = vector.extract_strided_slice %11 {offsets = [0, 2, 0], sizes = [2, 1, 512], strides = [1, 1, 1]} : vector<2x8x512xf32> to vector<2x1x512xf32>
    %135 = vector.shape_cast %134 : vector<2x1x512xf32> to vector<2x512xf32>
    %cst_36 = arith.constant dense<0.000000e+00> : vector<2x512xf32>
    %136 = tpu.matmul %103, %1, %cst_36 {dimension_numbers = #tpu.dot_dimension_numbers<[1], [0], [0], [1], [0, 0, 1, 1], [], []>} : vector<2x128xf32>, vector<128x512xf32>, vector<2x512xf32> -> vector<2x512xf32>
    %137 = arith.addf %135, %136 : vector<2x512xf32>
    %138 = vector.extract_strided_slice %137 {offsets = [0, 0], sizes = [2, 128], strides = [1, 1]} : vector<2x512xf32> to vector<2x128xf32>
    %139 = arith.negf %138 : vector<2x128xf32>
    %140 = math.exp %139 : vector<2x128xf32>
    %cst_37 = arith.constant 1.000000e+00 : f32
    %141 = vector.broadcast %cst_37 : f32 to vector<2x128xf32>
    %142 = arith.addf %141, %140 : vector<2x128xf32>
    %143 = arith.divf %141, %142 : vector<2x128xf32>
    %144 = vector.extract_strided_slice %137 {offsets = [0, 128], sizes = [2, 128], strides = [1, 1]} : vector<2x512xf32> to vector<2x128xf32>
    %145 = arith.negf %144 : vector<2x128xf32>
    %146 = math.exp %145 : vector<2x128xf32>
    %cst_38 = arith.constant 1.000000e+00 : f32
    %147 = vector.broadcast %cst_38 : f32 to vector<2x128xf32>
    %148 = arith.addf %147, %146 : vector<2x128xf32>
    %149 = arith.divf %147, %148 : vector<2x128xf32>
    %150 = vector.extract_strided_slice %137 {offsets = [0, 256], sizes = [2, 128], strides = [1, 1]} : vector<2x512xf32> to vector<2x128xf32>
    %151 = math.tanh %150 : vector<2x128xf32>
    %152 = vector.extract_strided_slice %137 {offsets = [0, 384], sizes = [2, 128], strides = [1, 1]} : vector<2x512xf32> to vector<2x128xf32>
    %153 = arith.negf %152 : vector<2x128xf32>
    %154 = math.exp %153 : vector<2x128xf32>
    %cst_39 = arith.constant 1.000000e+00 : f32
    %155 = vector.broadcast %cst_39 : f32 to vector<2x128xf32>
    %156 = arith.addf %155, %154 : vector<2x128xf32>
    %157 = arith.divf %155, %156 : vector<2x128xf32>
    %158 = arith.mulf %149, %101 : vector<2x128xf32>
    %159 = arith.mulf %143, %151 : vector<2x128xf32>
    %160 = arith.addf %158, %159 : vector<2x128xf32>
    %161 = math.tanh %160 : vector<2x128xf32>
    %162 = arith.mulf %157, %161 : vector<2x128xf32>
    %cst_40 = arith.constant dense<0.000000e+00> : vector<2x512xf32>
    %163 = tpu.matmul %162, %3, %cst_40 {dimension_numbers = #tpu.dot_dimension_numbers<[1], [0], [0], [1], [0, 0, 1, 1], [], []>} : vector<2x128xf32>, vector<128x512xf32>, vector<2x512xf32> -> vector<2x512xf32>
    %cst_41 = arith.constant dense<0.000000e+00> : vector<2x512xf32>
    %164 = tpu.matmul %133, %4, %cst_41 {dimension_numbers = #tpu.dot_dimension_numbers<[1], [0], [0], [1], [0, 0, 1, 1], [], []>} : vector<2x128xf32>, vector<128x512xf32>, vector<2x512xf32> -> vector<2x512xf32>
    %165 = arith.addf %163, %164 : vector<2x512xf32>
    %166 = vector.broadcast %5 : vector<1x512xf32> to vector<2x512xf32>
    %167 = arith.addf %165, %166 : vector<2x512xf32>
    %168 = vector.extract_strided_slice %167 {offsets = [0, 0], sizes = [2, 128], strides = [1, 1]} : vector<2x512xf32> to vector<2x128xf32>
    %169 = arith.negf %168 : vector<2x128xf32>
    %170 = math.exp %169 : vector<2x128xf32>
    %cst_42 = arith.constant 1.000000e+00 : f32
    %171 = vector.broadcast %cst_42 : f32 to vector<2x128xf32>
    %172 = arith.addf %171, %170 : vector<2x128xf32>
    %173 = arith.divf %171, %172 : vector<2x128xf32>
    %174 = vector.extract_strided_slice %167 {offsets = [0, 128], sizes = [2, 128], strides = [1, 1]} : vector<2x512xf32> to vector<2x128xf32>
    %175 = arith.negf %174 : vector<2x128xf32>
    %176 = math.exp %175 : vector<2x128xf32>
    %cst_43 = arith.constant 1.000000e+00 : f32
    %177 = vector.broadcast %cst_43 : f32 to vector<2x128xf32>
    %178 = arith.addf %177, %176 : vector<2x128xf32>
    %179 = arith.divf %177, %178 : vector<2x128xf32>
    %180 = vector.extract_strided_slice %167 {offsets = [0, 256], sizes = [2, 128], strides = [1, 1]} : vector<2x512xf32> to vector<2x128xf32>
    %181 = math.tanh %180 : vector<2x128xf32>
    %182 = vector.extract_strided_slice %167 {offsets = [0, 384], sizes = [2, 128], strides = [1, 1]} : vector<2x512xf32> to vector<2x128xf32>
    %183 = arith.negf %182 : vector<2x128xf32>
    %184 = math.exp %183 : vector<2x128xf32>
    %cst_44 = arith.constant 1.000000e+00 : f32
    %185 = vector.broadcast %cst_44 : f32 to vector<2x128xf32>
    %186 = arith.addf %185, %184 : vector<2x128xf32>
    %187 = arith.divf %185, %186 : vector<2x128xf32>
    %188 = arith.mulf %179, %131 : vector<2x128xf32>
    %189 = arith.mulf %173, %181 : vector<2x128xf32>
    %190 = arith.addf %188, %189 : vector<2x128xf32>
    %191 = math.tanh %190 : vector<2x128xf32>
    %192 = arith.mulf %187, %191 : vector<2x128xf32>
    %193 = vector.extract_strided_slice %11 {offsets = [0, 3, 0], sizes = [2, 1, 512], strides = [1, 1, 1]} : vector<2x8x512xf32> to vector<2x1x512xf32>
    %194 = vector.shape_cast %193 : vector<2x1x512xf32> to vector<2x512xf32>
    %cst_45 = arith.constant dense<0.000000e+00> : vector<2x512xf32>
    %195 = tpu.matmul %162, %1, %cst_45 {dimension_numbers = #tpu.dot_dimension_numbers<[1], [0], [0], [1], [0, 0, 1, 1], [], []>} : vector<2x128xf32>, vector<128x512xf32>, vector<2x512xf32> -> vector<2x512xf32>
    %196 = arith.addf %194, %195 : vector<2x512xf32>
    %197 = vector.extract_strided_slice %196 {offsets = [0, 0], sizes = [2, 128], strides = [1, 1]} : vector<2x512xf32> to vector<2x128xf32>
    %198 = arith.negf %197 : vector<2x128xf32>
    %199 = math.exp %198 : vector<2x128xf32>
    %cst_46 = arith.constant 1.000000e+00 : f32
    %200 = vector.broadcast %cst_46 : f32 to vector<2x128xf32>
    %201 = arith.addf %200, %199 : vector<2x128xf32>
    %202 = arith.divf %200, %201 : vector<2x128xf32>
    %203 = vector.extract_strided_slice %196 {offsets = [0, 128], sizes = [2, 128], strides = [1, 1]} : vector<2x512xf32> to vector<2x128xf32>
    %204 = arith.negf %203 : vector<2x128xf32>
    %205 = math.exp %204 : vector<2x128xf32>
    %cst_47 = arith.constant 1.000000e+00 : f32
    %206 = vector.broadcast %cst_47 : f32 to vector<2x128xf32>
    %207 = arith.addf %206, %205 : vector<2x128xf32>
    %208 = arith.divf %206, %207 : vector<2x128xf32>
    %209 = vector.extract_strided_slice %196 {offsets = [0, 256], sizes = [2, 128], strides = [1, 1]} : vector<2x512xf32> to vector<2x128xf32>
    %210 = math.tanh %209 : vector<2x128xf32>
    %211 = vector.extract_strided_slice %196 {offsets = [0, 384], sizes = [2, 128], strides = [1, 1]} : vector<2x512xf32> to vector<2x128xf32>
    %212 = arith.negf %211 : vector<2x128xf32>
    %213 = math.exp %212 : vector<2x128xf32>
    %cst_48 = arith.constant 1.000000e+00 : f32
    %214 = vector.broadcast %cst_48 : f32 to vector<2x128xf32>
    %215 = arith.addf %214, %213 : vector<2x128xf32>
    %216 = arith.divf %214, %215 : vector<2x128xf32>
    %217 = arith.mulf %208, %160 : vector<2x128xf32>
    %218 = arith.mulf %202, %210 : vector<2x128xf32>
    %219 = arith.addf %217, %218 : vector<2x128xf32>
    %220 = math.tanh %219 : vector<2x128xf32>
    %221 = arith.mulf %216, %220 : vector<2x128xf32>
    %cst_49 = arith.constant dense<0.000000e+00> : vector<2x512xf32>
    %222 = tpu.matmul %221, %3, %cst_49 {dimension_numbers = #tpu.dot_dimension_numbers<[1], [0], [0], [1], [0, 0, 1, 1], [], []>} : vector<2x128xf32>, vector<128x512xf32>, vector<2x512xf32> -> vector<2x512xf32>
    %cst_50 = arith.constant dense<0.000000e+00> : vector<2x512xf32>
    %223 = tpu.matmul %192, %4, %cst_50 {dimension_numbers = #tpu.dot_dimension_numbers<[1], [0], [0], [1], [0, 0, 1, 1], [], []>} : vector<2x128xf32>, vector<128x512xf32>, vector<2x512xf32> -> vector<2x512xf32>
    %224 = arith.addf %222, %223 : vector<2x512xf32>
    %225 = vector.broadcast %5 : vector<1x512xf32> to vector<2x512xf32>
    %226 = arith.addf %224, %225 : vector<2x512xf32>
    %227 = vector.extract_strided_slice %226 {offsets = [0, 0], sizes = [2, 128], strides = [1, 1]} : vector<2x512xf32> to vector<2x128xf32>
    %228 = arith.negf %227 : vector<2x128xf32>
    %229 = math.exp %228 : vector<2x128xf32>
    %cst_51 = arith.constant 1.000000e+00 : f32
    %230 = vector.broadcast %cst_51 : f32 to vector<2x128xf32>
    %231 = arith.addf %230, %229 : vector<2x128xf32>
    %232 = arith.divf %230, %231 : vector<2x128xf32>
    %233 = vector.extract_strided_slice %226 {offsets = [0, 128], sizes = [2, 128], strides = [1, 1]} : vector<2x512xf32> to vector<2x128xf32>
    %234 = arith.negf %233 : vector<2x128xf32>
    %235 = math.exp %234 : vector<2x128xf32>
    %cst_52 = arith.constant 1.000000e+00 : f32
    %236 = vector.broadcast %cst_52 : f32 to vector<2x128xf32>
    %237 = arith.addf %236, %235 : vector<2x128xf32>
    %238 = arith.divf %236, %237 : vector<2x128xf32>
    %239 = vector.extract_strided_slice %226 {offsets = [0, 256], sizes = [2, 128], strides = [1, 1]} : vector<2x512xf32> to vector<2x128xf32>
    %240 = math.tanh %239 : vector<2x128xf32>
    %241 = vector.extract_strided_slice %226 {offsets = [0, 384], sizes = [2, 128], strides = [1, 1]} : vector<2x512xf32> to vector<2x128xf32>
    %242 = arith.negf %241 : vector<2x128xf32>
    %243 = math.exp %242 : vector<2x128xf32>
    %cst_53 = arith.constant 1.000000e+00 : f32
    %244 = vector.broadcast %cst_53 : f32 to vector<2x128xf32>
    %245 = arith.addf %244, %243 : vector<2x128xf32>
    %246 = arith.divf %244, %245 : vector<2x128xf32>
    %247 = arith.mulf %238, %190 : vector<2x128xf32>
    %248 = arith.mulf %232, %240 : vector<2x128xf32>
    %249 = arith.addf %247, %248 : vector<2x128xf32>
    %250 = math.tanh %249 : vector<2x128xf32>
    %251 = arith.mulf %246, %250 : vector<2x128xf32>
    %252 = vector.extract_strided_slice %11 {offsets = [0, 4, 0], sizes = [2, 1, 512], strides = [1, 1, 1]} : vector<2x8x512xf32> to vector<2x1x512xf32>
    %253 = vector.shape_cast %252 : vector<2x1x512xf32> to vector<2x512xf32>
    %cst_54 = arith.constant dense<0.000000e+00> : vector<2x512xf32>
    %254 = tpu.matmul %221, %1, %cst_54 {dimension_numbers = #tpu.dot_dimension_numbers<[1], [0], [0], [1], [0, 0, 1, 1], [], []>} : vector<2x128xf32>, vector<128x512xf32>, vector<2x512xf32> -> vector<2x512xf32>
    %255 = arith.addf %253, %254 : vector<2x512xf32>
    %256 = vector.extract_strided_slice %255 {offsets = [0, 0], sizes = [2, 128], strides = [1, 1]} : vector<2x512xf32> to vector<2x128xf32>
    %257 = arith.negf %256 : vector<2x128xf32>
    %258 = math.exp %257 : vector<2x128xf32>
    %cst_55 = arith.constant 1.000000e+00 : f32
    %259 = vector.broadcast %cst_55 : f32 to vector<2x128xf32>
    %260 = arith.addf %259, %258 : vector<2x128xf32>
    %261 = arith.divf %259, %260 : vector<2x128xf32>
    %262 = vector.extract_strided_slice %255 {offsets = [0, 128], sizes = [2, 128], strides = [1, 1]} : vector<2x512xf32> to vector<2x128xf32>
    %263 = arith.negf %262 : vector<2x128xf32>
    %264 = math.exp %263 : vector<2x128xf32>
    %cst_56 = arith.constant 1.000000e+00 : f32
    %265 = vector.broadcast %cst_56 : f32 to vector<2x128xf32>
    %266 = arith.addf %265, %264 : vector<2x128xf32>
    %267 = arith.divf %265, %266 : vector<2x128xf32>
    %268 = vector.extract_strided_slice %255 {offsets = [0, 256], sizes = [2, 128], strides = [1, 1]} : vector<2x512xf32> to vector<2x128xf32>
    %269 = math.tanh %268 : vector<2x128xf32>
    %270 = vector.extract_strided_slice %255 {offsets = [0, 384], sizes = [2, 128], strides = [1, 1]} : vector<2x512xf32> to vector<2x128xf32>
    %271 = arith.negf %270 : vector<2x128xf32>
    %272 = math.exp %271 : vector<2x128xf32>
    %cst_57 = arith.constant 1.000000e+00 : f32
    %273 = vector.broadcast %cst_57 : f32 to vector<2x128xf32>
    %274 = arith.addf %273, %272 : vector<2x128xf32>
    %275 = arith.divf %273, %274 : vector<2x128xf32>
    %276 = arith.mulf %267, %219 : vector<2x128xf32>
    %277 = arith.mulf %261, %269 : vector<2x128xf32>
    %278 = arith.addf %276, %277 : vector<2x128xf32>
    %279 = math.tanh %278 : vector<2x128xf32>
    %280 = arith.mulf %275, %279 : vector<2x128xf32>
    %cst_58 = arith.constant dense<0.000000e+00> : vector<2x512xf32>
    %281 = tpu.matmul %280, %3, %cst_58 {dimension_numbers = #tpu.dot_dimension_numbers<[1], [0], [0], [1], [0, 0, 1, 1], [], []>} : vector<2x128xf32>, vector<128x512xf32>, vector<2x512xf32> -> vector<2x512xf32>
    %cst_59 = arith.constant dense<0.000000e+00> : vector<2x512xf32>
    %282 = tpu.matmul %251, %4, %cst_59 {dimension_numbers = #tpu.dot_dimension_numbers<[1], [0], [0], [1], [0, 0, 1, 1], [], []>} : vector<2x128xf32>, vector<128x512xf32>, vector<2x512xf32> -> vector<2x512xf32>
    %283 = arith.addf %281, %282 : vector<2x512xf32>
    %284 = vector.broadcast %5 : vector<1x512xf32> to vector<2x512xf32>
    %285 = arith.addf %283, %284 : vector<2x512xf32>
    %286 = vector.extract_strided_slice %285 {offsets = [0, 0], sizes = [2, 128], strides = [1, 1]} : vector<2x512xf32> to vector<2x128xf32>
    %287 = arith.negf %286 : vector<2x128xf32>
    %288 = math.exp %287 : vector<2x128xf32>
    %cst_60 = arith.constant 1.000000e+00 : f32
    %289 = vector.broadcast %cst_60 : f32 to vector<2x128xf32>
    %290 = arith.addf %289, %288 : vector<2x128xf32>
    %291 = arith.divf %289, %290 : vector<2x128xf32>
    %292 = vector.extract_strided_slice %285 {offsets = [0, 128], sizes = [2, 128], strides = [1, 1]} : vector<2x512xf32> to vector<2x128xf32>
    %293 = arith.negf %292 : vector<2x128xf32>
    %294 = math.exp %293 : vector<2x128xf32>
    %cst_61 = arith.constant 1.000000e+00 : f32
    %295 = vector.broadcast %cst_61 : f32 to vector<2x128xf32>
    %296 = arith.addf %295, %294 : vector<2x128xf32>
    %297 = arith.divf %295, %296 : vector<2x128xf32>
    %298 = vector.extract_strided_slice %285 {offsets = [0, 256], sizes = [2, 128], strides = [1, 1]} : vector<2x512xf32> to vector<2x128xf32>
    %299 = math.tanh %298 : vector<2x128xf32>
    %300 = vector.extract_strided_slice %285 {offsets = [0, 384], sizes = [2, 128], strides = [1, 1]} : vector<2x512xf32> to vector<2x128xf32>
    %301 = arith.negf %300 : vector<2x128xf32>
    %302 = math.exp %301 : vector<2x128xf32>
    %cst_62 = arith.constant 1.000000e+00 : f32
    %303 = vector.broadcast %cst_62 : f32 to vector<2x128xf32>
    %304 = arith.addf %303, %302 : vector<2x128xf32>
    %305 = arith.divf %303, %304 : vector<2x128xf32>
    %306 = arith.mulf %297, %249 : vector<2x128xf32>
    %307 = arith.mulf %291, %299 : vector<2x128xf32>
    %308 = arith.addf %306, %307 : vector<2x128xf32>
    %309 = math.tanh %308 : vector<2x128xf32>
    %310 = arith.mulf %305, %309 : vector<2x128xf32>
    %311 = vector.extract_strided_slice %11 {offsets = [0, 5, 0], sizes = [2, 1, 512], strides = [1, 1, 1]} : vector<2x8x512xf32> to vector<2x1x512xf32>
    %312 = vector.shape_cast %311 : vector<2x1x512xf32> to vector<2x512xf32>
    %cst_63 = arith.constant dense<0.000000e+00> : vector<2x512xf32>
    %313 = tpu.matmul %280, %1, %cst_63 {dimension_numbers = #tpu.dot_dimension_numbers<[1], [0], [0], [1], [0, 0, 1, 1], [], []>} : vector<2x128xf32>, vector<128x512xf32>, vector<2x512xf32> -> vector<2x512xf32>
    %314 = arith.addf %312, %313 : vector<2x512xf32>
    %315 = vector.extract_strided_slice %314 {offsets = [0, 0], sizes = [2, 128], strides = [1, 1]} : vector<2x512xf32> to vector<2x128xf32>
    %316 = arith.negf %315 : vector<2x128xf32>
    %317 = math.exp %316 : vector<2x128xf32>
    %cst_64 = arith.constant 1.000000e+00 : f32
    %318 = vector.broadcast %cst_64 : f32 to vector<2x128xf32>
    %319 = arith.addf %318, %317 : vector<2x128xf32>
    %320 = arith.divf %318, %319 : vector<2x128xf32>
    %321 = vector.extract_strided_slice %314 {offsets = [0, 128], sizes = [2, 128], strides = [1, 1]} : vector<2x512xf32> to vector<2x128xf32>
    %322 = arith.negf %321 : vector<2x128xf32>
    %323 = math.exp %322 : vector<2x128xf32>
    %cst_65 = arith.constant 1.000000e+00 : f32
    %324 = vector.broadcast %cst_65 : f32 to vector<2x128xf32>
    %325 = arith.addf %324, %323 : vector<2x128xf32>
    %326 = arith.divf %324, %325 : vector<2x128xf32>
    %327 = vector.extract_strided_slice %314 {offsets = [0, 256], sizes = [2, 128], strides = [1, 1]} : vector<2x512xf32> to vector<2x128xf32>
    %328 = math.tanh %327 : vector<2x128xf32>
    %329 = vector.extract_strided_slice %314 {offsets = [0, 384], sizes = [2, 128], strides = [1, 1]} : vector<2x512xf32> to vector<2x128xf32>
    %330 = arith.negf %329 : vector<2x128xf32>
    %331 = math.exp %330 : vector<2x128xf32>
    %cst_66 = arith.constant 1.000000e+00 : f32
    %332 = vector.broadcast %cst_66 : f32 to vector<2x128xf32>
    %333 = arith.addf %332, %331 : vector<2x128xf32>
    %334 = arith.divf %332, %333 : vector<2x128xf32>
    %335 = arith.mulf %326, %278 : vector<2x128xf32>
    %336 = arith.mulf %320, %328 : vector<2x128xf32>
    %337 = arith.addf %335, %336 : vector<2x128xf32>
    %338 = math.tanh %337 : vector<2x128xf32>
    %339 = arith.mulf %334, %338 : vector<2x128xf32>
    %cst_67 = arith.constant dense<0.000000e+00> : vector<2x512xf32>
    %340 = tpu.matmul %339, %3, %cst_67 {dimension_numbers = #tpu.dot_dimension_numbers<[1], [0], [0], [1], [0, 0, 1, 1], [], []>} : vector<2x128xf32>, vector<128x512xf32>, vector<2x512xf32> -> vector<2x512xf32>
    %cst_68 = arith.constant dense<0.000000e+00> : vector<2x512xf32>
    %341 = tpu.matmul %310, %4, %cst_68 {dimension_numbers = #tpu.dot_dimension_numbers<[1], [0], [0], [1], [0, 0, 1, 1], [], []>} : vector<2x128xf32>, vector<128x512xf32>, vector<2x512xf32> -> vector<2x512xf32>
    %342 = arith.addf %340, %341 : vector<2x512xf32>
    %343 = vector.broadcast %5 : vector<1x512xf32> to vector<2x512xf32>
    %344 = arith.addf %342, %343 : vector<2x512xf32>
    %345 = vector.extract_strided_slice %344 {offsets = [0, 0], sizes = [2, 128], strides = [1, 1]} : vector<2x512xf32> to vector<2x128xf32>
    %346 = arith.negf %345 : vector<2x128xf32>
    %347 = math.exp %346 : vector<2x128xf32>
    %cst_69 = arith.constant 1.000000e+00 : f32
    %348 = vector.broadcast %cst_69 : f32 to vector<2x128xf32>
    %349 = arith.addf %348, %347 : vector<2x128xf32>
    %350 = arith.divf %348, %349 : vector<2x128xf32>
    %351 = vector.extract_strided_slice %344 {offsets = [0, 128], sizes = [2, 128], strides = [1, 1]} : vector<2x512xf32> to vector<2x128xf32>
    %352 = arith.negf %351 : vector<2x128xf32>
    %353 = math.exp %352 : vector<2x128xf32>
    %cst_70 = arith.constant 1.000000e+00 : f32
    %354 = vector.broadcast %cst_70 : f32 to vector<2x128xf32>
    %355 = arith.addf %354, %353 : vector<2x128xf32>
    %356 = arith.divf %354, %355 : vector<2x128xf32>
    %357 = vector.extract_strided_slice %344 {offsets = [0, 256], sizes = [2, 128], strides = [1, 1]} : vector<2x512xf32> to vector<2x128xf32>
    %358 = math.tanh %357 : vector<2x128xf32>
    %359 = vector.extract_strided_slice %344 {offsets = [0, 384], sizes = [2, 128], strides = [1, 1]} : vector<2x512xf32> to vector<2x128xf32>
    %360 = arith.negf %359 : vector<2x128xf32>
    %361 = math.exp %360 : vector<2x128xf32>
    %cst_71 = arith.constant 1.000000e+00 : f32
    %362 = vector.broadcast %cst_71 : f32 to vector<2x128xf32>
    %363 = arith.addf %362, %361 : vector<2x128xf32>
    %364 = arith.divf %362, %363 : vector<2x128xf32>
    %365 = arith.mulf %356, %308 : vector<2x128xf32>
    %366 = arith.mulf %350, %358 : vector<2x128xf32>
    %367 = arith.addf %365, %366 : vector<2x128xf32>
    %368 = math.tanh %367 : vector<2x128xf32>
    %369 = arith.mulf %364, %368 : vector<2x128xf32>
    %370 = vector.extract_strided_slice %11 {offsets = [0, 6, 0], sizes = [2, 1, 512], strides = [1, 1, 1]} : vector<2x8x512xf32> to vector<2x1x512xf32>
    %371 = vector.shape_cast %370 : vector<2x1x512xf32> to vector<2x512xf32>
    %cst_72 = arith.constant dense<0.000000e+00> : vector<2x512xf32>
    %372 = tpu.matmul %339, %1, %cst_72 {dimension_numbers = #tpu.dot_dimension_numbers<[1], [0], [0], [1], [0, 0, 1, 1], [], []>} : vector<2x128xf32>, vector<128x512xf32>, vector<2x512xf32> -> vector<2x512xf32>
    %373 = arith.addf %371, %372 : vector<2x512xf32>
    %374 = vector.extract_strided_slice %373 {offsets = [0, 0], sizes = [2, 128], strides = [1, 1]} : vector<2x512xf32> to vector<2x128xf32>
    %375 = arith.negf %374 : vector<2x128xf32>
    %376 = math.exp %375 : vector<2x128xf32>
    %cst_73 = arith.constant 1.000000e+00 : f32
    %377 = vector.broadcast %cst_73 : f32 to vector<2x128xf32>
    %378 = arith.addf %377, %376 : vector<2x128xf32>
    %379 = arith.divf %377, %378 : vector<2x128xf32>
    %380 = vector.extract_strided_slice %373 {offsets = [0, 128], sizes = [2, 128], strides = [1, 1]} : vector<2x512xf32> to vector<2x128xf32>
    %381 = arith.negf %380 : vector<2x128xf32>
    %382 = math.exp %381 : vector<2x128xf32>
    %cst_74 = arith.constant 1.000000e+00 : f32
    %383 = vector.broadcast %cst_74 : f32 to vector<2x128xf32>
    %384 = arith.addf %383, %382 : vector<2x128xf32>
    %385 = arith.divf %383, %384 : vector<2x128xf32>
    %386 = vector.extract_strided_slice %373 {offsets = [0, 256], sizes = [2, 128], strides = [1, 1]} : vector<2x512xf32> to vector<2x128xf32>
    %387 = math.tanh %386 : vector<2x128xf32>
    %388 = vector.extract_strided_slice %373 {offsets = [0, 384], sizes = [2, 128], strides = [1, 1]} : vector<2x512xf32> to vector<2x128xf32>
    %389 = arith.negf %388 : vector<2x128xf32>
    %390 = math.exp %389 : vector<2x128xf32>
    %cst_75 = arith.constant 1.000000e+00 : f32
    %391 = vector.broadcast %cst_75 : f32 to vector<2x128xf32>
    %392 = arith.addf %391, %390 : vector<2x128xf32>
    %393 = arith.divf %391, %392 : vector<2x128xf32>
    %394 = arith.mulf %385, %337 : vector<2x128xf32>
    %395 = arith.mulf %379, %387 : vector<2x128xf32>
    %396 = arith.addf %394, %395 : vector<2x128xf32>
    %397 = math.tanh %396 : vector<2x128xf32>
    %398 = arith.mulf %393, %397 : vector<2x128xf32>
    %cst_76 = arith.constant dense<0.000000e+00> : vector<2x512xf32>
    %399 = tpu.matmul %398, %3, %cst_76 {dimension_numbers = #tpu.dot_dimension_numbers<[1], [0], [0], [1], [0, 0, 1, 1], [], []>} : vector<2x128xf32>, vector<128x512xf32>, vector<2x512xf32> -> vector<2x512xf32>
    %cst_77 = arith.constant dense<0.000000e+00> : vector<2x512xf32>
    %400 = tpu.matmul %369, %4, %cst_77 {dimension_numbers = #tpu.dot_dimension_numbers<[1], [0], [0], [1], [0, 0, 1, 1], [], []>} : vector<2x128xf32>, vector<128x512xf32>, vector<2x512xf32> -> vector<2x512xf32>
    %401 = arith.addf %399, %400 : vector<2x512xf32>
    %402 = vector.broadcast %5 : vector<1x512xf32> to vector<2x512xf32>
    %403 = arith.addf %401, %402 : vector<2x512xf32>
    %404 = vector.extract_strided_slice %403 {offsets = [0, 0], sizes = [2, 128], strides = [1, 1]} : vector<2x512xf32> to vector<2x128xf32>
    %405 = arith.negf %404 : vector<2x128xf32>
    %406 = math.exp %405 : vector<2x128xf32>
    %cst_78 = arith.constant 1.000000e+00 : f32
    %407 = vector.broadcast %cst_78 : f32 to vector<2x128xf32>
    %408 = arith.addf %407, %406 : vector<2x128xf32>
    %409 = arith.divf %407, %408 : vector<2x128xf32>
    %410 = vector.extract_strided_slice %403 {offsets = [0, 128], sizes = [2, 128], strides = [1, 1]} : vector<2x512xf32> to vector<2x128xf32>
    %411 = arith.negf %410 : vector<2x128xf32>
    %412 = math.exp %411 : vector<2x128xf32>
    %cst_79 = arith.constant 1.000000e+00 : f32
    %413 = vector.broadcast %cst_79 : f32 to vector<2x128xf32>
    %414 = arith.addf %413, %412 : vector<2x128xf32>
    %415 = arith.divf %413, %414 : vector<2x128xf32>
    %416 = vector.extract_strided_slice %403 {offsets = [0, 256], sizes = [2, 128], strides = [1, 1]} : vector<2x512xf32> to vector<2x128xf32>
    %417 = math.tanh %416 : vector<2x128xf32>
    %418 = vector.extract_strided_slice %403 {offsets = [0, 384], sizes = [2, 128], strides = [1, 1]} : vector<2x512xf32> to vector<2x128xf32>
    %419 = arith.negf %418 : vector<2x128xf32>
    %420 = math.exp %419 : vector<2x128xf32>
    %cst_80 = arith.constant 1.000000e+00 : f32
    %421 = vector.broadcast %cst_80 : f32 to vector<2x128xf32>
    %422 = arith.addf %421, %420 : vector<2x128xf32>
    %423 = arith.divf %421, %422 : vector<2x128xf32>
    %424 = arith.mulf %415, %367 : vector<2x128xf32>
    %425 = arith.mulf %409, %417 : vector<2x128xf32>
    %426 = arith.addf %424, %425 : vector<2x128xf32>
    %427 = math.tanh %426 : vector<2x128xf32>
    %428 = arith.mulf %423, %427 : vector<2x128xf32>
    %429 = vector.extract_strided_slice %11 {offsets = [0, 7, 0], sizes = [2, 1, 512], strides = [1, 1, 1]} : vector<2x8x512xf32> to vector<2x1x512xf32>
    %430 = vector.shape_cast %429 : vector<2x1x512xf32> to vector<2x512xf32>
    %cst_81 = arith.constant dense<0.000000e+00> : vector<2x512xf32>
    %431 = tpu.matmul %398, %1, %cst_81 {dimension_numbers = #tpu.dot_dimension_numbers<[1], [0], [0], [1], [0, 0, 1, 1], [], []>} : vector<2x128xf32>, vector<128x512xf32>, vector<2x512xf32> -> vector<2x512xf32>
    %432 = arith.addf %430, %431 : vector<2x512xf32>
    %433 = vector.extract_strided_slice %432 {offsets = [0, 0], sizes = [2, 128], strides = [1, 1]} : vector<2x512xf32> to vector<2x128xf32>
    %434 = arith.negf %433 : vector<2x128xf32>
    %435 = math.exp %434 : vector<2x128xf32>
    %cst_82 = arith.constant 1.000000e+00 : f32
    %436 = vector.broadcast %cst_82 : f32 to vector<2x128xf32>
    %437 = arith.addf %436, %435 : vector<2x128xf32>
    %438 = arith.divf %436, %437 : vector<2x128xf32>
    %439 = vector.extract_strided_slice %432 {offsets = [0, 128], sizes = [2, 128], strides = [1, 1]} : vector<2x512xf32> to vector<2x128xf32>
    %440 = arith.negf %439 : vector<2x128xf32>
    %441 = math.exp %440 : vector<2x128xf32>
    %cst_83 = arith.constant 1.000000e+00 : f32
    %442 = vector.broadcast %cst_83 : f32 to vector<2x128xf32>
    %443 = arith.addf %442, %441 : vector<2x128xf32>
    %444 = arith.divf %442, %443 : vector<2x128xf32>
    %445 = vector.extract_strided_slice %432 {offsets = [0, 256], sizes = [2, 128], strides = [1, 1]} : vector<2x512xf32> to vector<2x128xf32>
    %446 = math.tanh %445 : vector<2x128xf32>
    %447 = vector.extract_strided_slice %432 {offsets = [0, 384], sizes = [2, 128], strides = [1, 1]} : vector<2x512xf32> to vector<2x128xf32>
    %448 = arith.negf %447 : vector<2x128xf32>
    %449 = math.exp %448 : vector<2x128xf32>
    %cst_84 = arith.constant 1.000000e+00 : f32
    %450 = vector.broadcast %cst_84 : f32 to vector<2x128xf32>
    %451 = arith.addf %450, %449 : vector<2x128xf32>
    %452 = arith.divf %450, %451 : vector<2x128xf32>
    %453 = arith.mulf %444, %396 : vector<2x128xf32>
    %454 = arith.mulf %438, %446 : vector<2x128xf32>
    %455 = arith.addf %453, %454 : vector<2x128xf32>
    %456 = math.tanh %455 : vector<2x128xf32>
    %457 = arith.mulf %452, %456 : vector<2x128xf32>
    %cst_85 = arith.constant dense<0.000000e+00> : vector<2x512xf32>
    %458 = tpu.matmul %457, %3, %cst_85 {dimension_numbers = #tpu.dot_dimension_numbers<[1], [0], [0], [1], [0, 0, 1, 1], [], []>} : vector<2x128xf32>, vector<128x512xf32>, vector<2x512xf32> -> vector<2x512xf32>
    %cst_86 = arith.constant dense<0.000000e+00> : vector<2x512xf32>
    %459 = tpu.matmul %428, %4, %cst_86 {dimension_numbers = #tpu.dot_dimension_numbers<[1], [0], [0], [1], [0, 0, 1, 1], [], []>} : vector<2x128xf32>, vector<128x512xf32>, vector<2x512xf32> -> vector<2x512xf32>
    %460 = arith.addf %458, %459 : vector<2x512xf32>
    %461 = vector.broadcast %5 : vector<1x512xf32> to vector<2x512xf32>
    %462 = arith.addf %460, %461 : vector<2x512xf32>
    %463 = vector.extract_strided_slice %462 {offsets = [0, 0], sizes = [2, 128], strides = [1, 1]} : vector<2x512xf32> to vector<2x128xf32>
    %464 = arith.negf %463 : vector<2x128xf32>
    %465 = math.exp %464 : vector<2x128xf32>
    %cst_87 = arith.constant 1.000000e+00 : f32
    %466 = vector.broadcast %cst_87 : f32 to vector<2x128xf32>
    %467 = arith.addf %466, %465 : vector<2x128xf32>
    %468 = arith.divf %466, %467 : vector<2x128xf32>
    %469 = vector.extract_strided_slice %462 {offsets = [0, 128], sizes = [2, 128], strides = [1, 1]} : vector<2x512xf32> to vector<2x128xf32>
    %470 = arith.negf %469 : vector<2x128xf32>
    %471 = math.exp %470 : vector<2x128xf32>
    %cst_88 = arith.constant 1.000000e+00 : f32
    %472 = vector.broadcast %cst_88 : f32 to vector<2x128xf32>
    %473 = arith.addf %472, %471 : vector<2x128xf32>
    %474 = arith.divf %472, %473 : vector<2x128xf32>
    %475 = vector.extract_strided_slice %462 {offsets = [0, 256], sizes = [2, 128], strides = [1, 1]} : vector<2x512xf32> to vector<2x128xf32>
    %476 = math.tanh %475 : vector<2x128xf32>
    %477 = vector.extract_strided_slice %462 {offsets = [0, 384], sizes = [2, 128], strides = [1, 1]} : vector<2x512xf32> to vector<2x128xf32>
    %478 = arith.negf %477 : vector<2x128xf32>
    %479 = math.exp %478 : vector<2x128xf32>
    %cst_89 = arith.constant 1.000000e+00 : f32
    %480 = vector.broadcast %cst_89 : f32 to vector<2x128xf32>
    %481 = arith.addf %480, %479 : vector<2x128xf32>
    %482 = arith.divf %480, %481 : vector<2x128xf32>
    %483 = arith.mulf %474, %426 : vector<2x128xf32>
    %484 = arith.mulf %468, %476 : vector<2x128xf32>
    %485 = arith.addf %483, %484 : vector<2x128xf32>
    %486 = math.tanh %485 : vector<2x128xf32>
    %487 = arith.mulf %482, %486 : vector<2x128xf32>
    %c0_90 = arith.constant 0 : index
    %c0_91 = arith.constant 0 : index
    %488 = vector.load %arg7[%c0_90, %c0_91] : memref<128x8xf32, #tpu.memory_space<vmem>>, vector<128x8xf32>
    %cst_92 = arith.constant dense<0.000000e+00> : vector<2x8xf32>
    %489 = tpu.matmul %487, %488, %cst_92 {dimension_numbers = #tpu.dot_dimension_numbers<[1], [0], [0], [1], [0, 0, 1, 1], [], []>} : vector<2x128xf32>, vector<128x8xf32>, vector<2x8xf32> -> vector<2x8xf32>
    %c0_93 = arith.constant 0 : index
    %c0_94 = arith.constant 0 : index
    %490 = vector.load %arg8[%c0_93, %c0_94] : memref<1x8xf32, #tpu.memory_space<vmem>>, vector<1x8xf32>
    %491 = vector.broadcast %490 : vector<1x8xf32> to vector<2x8xf32>
    %492 = arith.addf %489, %491 : vector<2x8xf32>
    %c0_95 = arith.constant 0 : index
    %c0_96 = arith.constant 0 : index
    %493 = vector.load %arg9[%c0_95, %c0_96] : memref<2x8xf32, #tpu.memory_space<vmem>>, vector<2x8xf32>
    tpu.vector_store %arg9[%c0_95, %c0_96], %492 {strides = array<i32>} : memref<2x8xf32, #tpu.memory_space<vmem>>, vector<2x8xf32>,
    return
  }
}

</mosaic_0001>

<llo_original>
// kernel: lstmnet_forward.1
$region0: #{lstmnet_forward.1}
  #allocation0 [shape = 'u32[]', space=smem, size = 0x4, offset = 0x4, fixed_abs, tag = 'smem constant byte address 0x4 - core index']
  #allocation1 [shape = 'u32[144,128]{1,0:T(1,128)}', space=vmem, size = 0x12000, scoped, tag = 'internal scratch']
  %s0 = inlined_call_operand.vmem [shape: f32[2,8,8], index: 0, kind: input, shape index: {}]
  %s1 = inlined_call_operand.vmem [shape: f32[8,512], index: 1, kind: input, shape index: {}]
  %s2 = inlined_call_operand.hbm [shape: f32[128,512], index: 2, kind: input, shape index: {}]
  %s3 = inlined_call_operand.vmem [shape: f32[1,512], index: 3, kind: input, shape index: {}]
  %s4 = inlined_call_operand.hbm [shape: f32[128,512], index: 4, kind: input, shape index: {}]
  %s5 = inlined_call_operand.hbm [shape: f32[128,512], index: 5, kind: input, shape index: {}]
  %s6 = inlined_call_operand.vmem [shape: f32[1,512], index: 6, kind: input, shape index: {}]
  %s7 = inlined_call_operand.vmem [shape: f32[128,8], index: 7, kind: input, shape index: {}]
  %s8 = inlined_call_operand.vmem [shape: f32[1,8], index: 8, kind: input, shape index: {}]
  %s9 = inlined_call_operand.hbm [shape: f32[2,8], index: 9, kind: output, shape index: {}]
  %s10 = sld [smem:[#allocation0]]
  $region58: #{lstmnet_forward.1} parent=0
    _
  %s12 = ssub.s32 1, %s10
  %s13 = scalar_select 0, %s12, %s10
  $region1: #{lstmnet_forward.1} parent=0
    #allocation2 [shape = 'u8[262144]{0}', space=vmem, size = 0x40000, scoped, tag = 'input window, operand 2, single buffered']
    #allocation3 [shape = 's32[1]{0}', space=sflag, size = 0x4, scoped, tag = 'scoped memory for lstmnet_forward.1']
    #allocation4 [shape = 's32[1]{0}', space=sflag, size = 0x4, scoped, tag = 'scoped memory for lstmnet_forward.1']
    #allocation5 [shape = 'u8[262144]{0}', space=vmem, size = 0x40000, scoped, tag = 'input window, operand 4, single buffered']
    #allocation6 [shape = 's32[1]{0}', space=sflag, size = 0x4, scoped, tag = 'scoped memory for lstmnet_forward.1']
    #allocation7 [shape = 'u8[262144]{0}', space=vmem, size = 0x40000, scoped, tag = 'input window, operand 5, single buffered']
    #allocation8 [shape = 'u8[1024]{0}', space=vmem, size = 0x400, scoped, tag = 'output window, operand 0, single buffered']
    %14 = vsyncpa [#allocation3], 0
    %15 = vsyncpa [#allocation6], 0
    %16 = vsyncpa [#allocation4], 0
    // Predicated region
    $region2: #{lstmnet_forward.1} parent=1 // pred_check
      _
    $region3: #{lstmnet_forward.1} parent=1 // pred_check_branch
      %18 = sbr.rel (0) target = $region5
    $region4: #{lstmnet_forward.1} parent=1 // pred_region
      _
    $region5: #{lstmnet_forward.1} parent=1 // pred_fallthru
      _
    // Predicated region
    $region6: #{lstmnet_forward.1} parent=1 // pred_check
      _
    $region7: #{lstmnet_forward.1} parent=1 // pred_check_branch
      %20 = sbr.rel (0) target = $region9
    $region8: #{lstmnet_forward.1} parent=1 // pred_region
      _
    $region9: #{lstmnet_forward.1} parent=1 // pred_fallthru
      _
    // Predicated region
    $region10: #{lstmnet_forward.1} parent=1 // pred_check
      _
    $region11: #{lstmnet_forward.1} parent=1 // pred_check_branch
      %22 = sbr.rel (0) target = $region13
    $region12: #{lstmnet_forward.1} parent=1 // pred_region
      %s24 = ssub.s32 8192, 8192
      %25 = vsyncadd [#allocation3], %s24
      %s26 = sshll.u32 [#allocation2], 4
      %s27 = int_to_ptr.vmem [resolvable:$true] %s26
      %32 = dma.hbm_to_vmem [thread:$0]  %s2, 8192, %s27, [#allocation3], 512, 512, 32
    $region13: #{lstmnet_forward.1} parent=1 // pred_fallthru
      _
    // Predicated region
    $region14: #{lstmnet_forward.1} parent=1 // pred_check
      _
    $region15: #{lstmnet_forward.1} parent=1 // pred_check_branch
      %34 = sbr.rel (0) target = $region17
    $region16: #{lstmnet_forward.1} parent=1 // pred_region
      _
    $region17: #{lstmnet_forward.1} parent=1 // pred_fallthru
      _
    // Predicated region
    $region18: #{lstmnet_forward.1} parent=1 // pred_check
      _
    $region19: #{lstmnet_forward.1} parent=1 // pred_check_branch
      %36 = sbr.rel (0) target = $region21
    $region20: #{lstmnet_forward.1} parent=1 // pred_region
      %s38 = ssub.s32 8192, 8192
      %39 = vsyncadd [#allocation6], %s38
      %s40 = sshll.u32 [#allocation5], 4
      %s41 = int_to_ptr.vmem [resolvable:$true] %s40
      %46 = dma.hbm_to_vmem [thread:$0]  %s4, 8192, %s41, [#allocation6], 512, 512, 32
    $region21: #{lstmnet_forward.1} parent=1 // pred_fallthru
      _
    // Predicated region
    $region22: #{lstmnet_forward.1} parent=1 // pred_check
      _
    $region23: #{lstmnet_forward.1} parent=1 // pred_check_branch
      %48 = sbr.rel (0) target = $region25
    $region24: #{lstmnet_forward.1} parent=1 // pred_region
      %s50 = ssub.s32 8192, 8192
      %51 = vsyncadd [#allocation6], %s50
      %s52 = sshll.u32 [#allocation7], 4
      %s53 = int_to_ptr.vmem [resolvable:$true] %s52
      %58 = dma.hbm_to_vmem [thread:$0]  %s5, 8192, %s53, [#allocation6], 512, 512, 32
    $region25: #{lstmnet_forward.1} parent=1 // pred_fallthru
      _
    // Predicated region
    $region26: #{lstmnet_forward.1} parent=1 // pred_check
      _
    $region27: #{lstmnet_forward.1} parent=1 // pred_check_branch
      %60 = sbr.rel (0) target = $region29
    $region28: #{lstmnet_forward.1} parent=1 // pred_region
      _
    $region29: #{lstmnet_forward.1} parent=1 // pred_fallthru
      _
    // Predicated region
    $region30: #{lstmnet_forward.1} parent=1 // pred_check
      _
    $region31: #{lstmnet_forward.1} parent=1 // pred_check_branch
      %62 = sbr.rel (0) target = $region33
    $region32: #{lstmnet_forward.1} parent=1 // pred_region
      _
    $region33: #{lstmnet_forward.1} parent=1 // pred_fallthru
      _
    // Predicated region
    $region34: #{lstmnet_forward.1} parent=1 // pred_check
      _
    $region35: #{lstmnet_forward.1} parent=1 // pred_check_branch
      %64 = sbr.rel (0) target = $region37
    $region36: #{lstmnet_forward.1} parent=1 // pred_region
      _
    $region37: #{lstmnet_forward.1} parent=1 // pred_fallthru
      _
    // Predicated region
    $region38: #{lstmnet_forward.1} parent=1 // pred_check
      _
    $region39: #{lstmnet_forward.1} parent=1 // pred_check_branch
      %66 = sbr.rel (0) target = $region41
    $region40: #{lstmnet_forward.1} parent=1 // pred_region
      %67 = dma.done [#allocation3], 8192
    $region41: #{lstmnet_forward.1} parent=1 // pred_fallthru
      _
    // Predicated region
    $region42: #{lstmnet_forward.1} parent=1 // pred_check
      _
    $region43: #{lstmnet_forward.1} parent=1 // pred_check_branch
      %69 = sbr.rel (0) target = $region45
    $region44: #{lstmnet_forward.1} parent=1 // pred_region
      %70 = dma.done [#allocation6], 8192
    $region45: #{lstmnet_forward.1} parent=1 // pred_fallthru
      _
    // Predicated region
    $region46: #{lstmnet_forward.1} parent=1 // pred_check
      _
    $region47: #{lstmnet_forward.1} parent=1 // pred_check_branch
      %72 = sbr.rel (0) target = $region49
    $region48: #{lstmnet_forward.1} parent=1 // pred_region
      %73 = dma.done [#allocation6], 8192
    $region49: #{lstmnet_forward.1} parent=1 // pred_fallthru
      _
    %v74 = vld [vmem:[%s1] sm:$0xff]
    %v75 = vld [vmem:[%s1 + $0x8] sm:$0xff]
    %v76 = vld [vmem:[%s1 + $0x10] sm:$0xff]
    %v77 = vld [vmem:[%s1 + $0x18] sm:$0xff]
    %v78 = vld [vmem:[#allocation2] sm:$0xff]
    %v79 = vld [vmem:[#allocation2 + $0x8] sm:$0xff]
    %v80 = vld [vmem:[#allocation2 + $0x10] sm:$0xff]
    %v81 = vld [vmem:[#allocation2 + $0x18] sm:$0xff]
    %v82 = vld [vmem:[#allocation2 + $0x20] sm:$0xff]
    %v83 = vld [vmem:[#allocation2 + $0x28] sm:$0xff]
    %v84 = vld [vmem:[#allocation2 + $0x30] sm:$0xff]
    %v85 = vld [vmem:[#allocation2 + $0x38] sm:$0xff]
    %v86 = vld [vmem:[#allocation2 + $0x40] sm:$0xff]
    %v87 = vld [vmem:[#allocation2 + $0x48] sm:$0xff]
    %v88 = vld [vmem:[#allocation2 + $0x50] sm:$0xff]
    %v89 = vld [vmem:[#allocation2 + $0x58] sm:$0xff]
    %v90 = vld [vmem:[#allocation2 + $0x60] sm:$0xff]
    %v91 = vld [vmem:[#allocation2 + $0x68] sm:$0xff]
    %v92 = vld [vmem:[#allocation2 + $0x70] sm:$0xff]
    %v93 = vld [vmem:[#allocation2 + $0x78] sm:$0xff]
    %v94 = vld [vmem:[#allocation2 + $0x80] sm:$0xff]
    %v95 = vld [vmem:[#allocation2 + $0x88] sm:$0xff]
    %v96 = vld [vmem:[#allocation2 + $0x90] sm:$0xff]
    %v97 = vld [vmem:[#allocation2 + $0x98] sm:$0xff]
    %v98 = vld [vmem:[#allocation2 + $0xa0] sm:$0xff]
    %v99 = vld [vmem:[#allocation2 + $0xa8] sm:$0xff]
    %v100 = vld [vmem:[#allocation2 + $0xb0] sm:$0xff]
    %v101 = vld [vmem:[#allocation2 + $0xb8] sm:$0xff]
    %v102 = vld [vmem:[#allocation2 + $0xc0] sm:$0xff]
    %v103 = vld [vmem:[#allocation2 + $0xc8] sm:$0xff]
    %v104 = vld [vmem:[#allocation2 + $0xd0] sm:$0xff]
    %v105 = vld [vmem:[#allocation2 + $0xd8] sm:$0xff]
    %v106 = vld [vmem:[#allocation2 + $0xe0] sm:$0xff]
    %v107 = vld [vmem:[#allocation2 + $0xe8] sm:$0xff]
    %v108 = vld [vmem:[#allocation2 + $0xf0] sm:$0xff]
    %v109 = vld [vmem:[#allocation2 + $0xf8] sm:$0xff]
    %v110 = vld [vmem:[#allocation2 + $0x100] sm:$0xff]
    %v111 = vld [vmem:[#allocation2 + $0x108] sm:$0xff]
    %v112 = vld [vmem:[#allocation2 + $0x110] sm:$0xff]
    %v113 = vld [vmem:[#allocation2 + $0x118] sm:$0xff]
    %v114 = vld [vmem:[#allocation2 + $0x120] sm:$0xff]
    %v115 = vld [vmem:[#allocation2 + $0x128] sm:$0xff]
    %v116 = vld [vmem:[#allocation2 + $0x130] sm:$0xff]
    %v117 = vld [vmem:[#allocation2 + $0x138] sm:$0xff]
    %v118 = vld [vmem:[#allocation2 + $0x140] sm:$0xff]
    %v119 = vld [vmem:[#allocation2 + $0x148] sm:$0xff]
    %v120 = vld [vmem:[#allocation2 + $0x150] sm:$0xff]
    %v121 = vld [vmem:[#allocation2 + $0x158] sm:$0xff]
    %v122 = vld [vmem:[#allocation2 + $0x160] sm:$0xff]
    %v123 = vld [vmem:[#allocation2 + $0x168] sm:$0xff]
    %v124 = vld [vmem:[#allocation2 + $0x170] sm:$0xff]
    %v125 = vld [vmem:[#allocation2 + $0x178] sm:$0xff]
    %v126 = vld [vmem:[#allocation2 + $0x180] sm:$0xff]
    %v127 = vld [vmem:[#allocation2 + $0x188] sm:$0xff]
    %v128 = vld [vmem:[#allocation2 + $0x190] sm:$0xff]
    %v129 = vld [vmem:[#allocation2 + $0x198] sm:$0xff]
    %v130 = vld [vmem:[#allocation2 + $0x1a0] sm:$0xff]
    %v131 = vld [vmem:[#allocation2 + $0x1a8] sm:$0xff]
    %v132 = vld [vmem:[#allocation2 + $0x1b0] sm:$0xff]
    %v133 = vld [vmem:[#allocation2 + $0x1b8] sm:$0xff]
    %v134 = vld [vmem:[#allocation2 + $0x1c0] sm:$0xff]
    %v135 = vld [vmem:[#allocation2 + $0x1c8] sm:$0xff]
    %v136 = vld [vmem:[#allocation2 + $0x1d0] sm:$0xff]
    %v137 = vld [vmem:[#allocation2 + $0x1d8] sm:$0xff]
    %v138 = vld [vmem:[#allocation2 + $0x1e0] sm:$0xff]
    %v139 = vld [vmem:[#allocation2 + $0x1e8] sm:$0xff]
    %v140 = vld [vmem:[#allocation2 + $0x1f0] sm:$0xff]
    %v141 = vld [vmem:[#allocation2 + $0x1f8] sm:$0xff]
    %v142 = vld [vmem:[%s3] sm:$0xf]
    %v143 = vld [vmem:[#allocation5] sm:$0xff]
    %v144 = vld [vmem:[#allocation5 + $0x8] sm:$0xff]
    %v145 = vld [vmem:[#allocation5 + $0x10] sm:$0xff]
    %v146 = vld [vmem:[#allocation5 + $0x18] sm:$0xff]
    %v147 = vld [vmem:[#allocation5 + $0x20] sm:$0xff]
    %v148 = vld [vmem:[#allocation5 + $0x28] sm:$0xff]
    %v149 = vld [vmem:[#allocation5 + $0x30] sm:$0xff]
    %v150 = vld [vmem:[#allocation5 + $0x38] sm:$0xff]
    %v151 = vld [vmem:[#allocation5 + $0x40] sm:$0xff]
    %v152 = vld [vmem:[#allocation5 + $0x48] sm:$0xff]
    %v153 = vld [vmem:[#allocation5 + $0x50] sm:$0xff]
    %v154 = vld [vmem:[#allocation5 + $0x58] sm:$0xff]
    %v155 = vld [vmem:[#allocation5 + $0x60] sm:$0xff]
    %v156 = vld [vmem:[#allocation5 + $0x68] sm:$0xff]
    %v157 = vld [vmem:[#allocation5 + $0x70] sm:$0xff]
    %v158 = vld [vmem:[#allocation5 + $0x78] sm:$0xff]
    %v159 = vld [vmem:[#allocation5 + $0x80] sm:$0xff]
    %v160 = vld [vmem:[#allocation5 + $0x88] sm:$0xff]
    %v161 = vld [vmem:[#allocation5 + $0x90] sm:$0xff]
    %v162 = vld [vmem:[#allocation5 + $0x98] sm:$0xff]
    %v163 = vld [vmem:[#allocation5 + $0xa0] sm:$0xff]
    %v164 = vld [vmem:[#allocation5 + $0xa8] sm:$0xff]
    %v165 = vld [vmem:[#allocation5 + $0xb0] sm:$0xff]
    %v166 = vld [vmem:[#allocation5 + $0xb8] sm:$0xff]
    %v167 = vld [vmem:[#allocation5 + $0xc0] sm:$0xff]
    %v168 = vld [vmem:[#allocation5 + $0xc8] sm:$0xff]
    %v169 = vld [vmem:[#allocation5 + $0xd0] sm:$0xff]
    %v170 = vld [vmem:[#allocation5 + $0xd8] sm:$0xff]
    %v171 = vld [vmem:[#allocation5 + $0xe0] sm:$0xff]
    %v172 = vld [vmem:[#allocation5 + $0xe8] sm:$0xff]
    %v173 = vld [vmem:[#allocation5 + $0xf0] sm:$0xff]
    %v174 = vld [vmem:[#allocation5 + $0xf8] sm:$0xff]
    %v175 = vld [vmem:[#allocation5 + $0x100] sm:$0xff]
    %v176 = vld [vmem:[#allocation5 + $0x108] sm:$0xff]
    %v177 = vld [vmem:[#allocation5 + $0x110] sm:$0xff]
    %v178 = vld [vmem:[#allocation5 + $0x118] sm:$0xff]
    %v179 = vld [vmem:[#allocation5 + $0x120] sm:$0xff]
    %v180 = vld [vmem:[#allocation5 + $0x128] sm:$0xff]
    %v181 = vld [vmem:[#allocation5 + $0x130] sm:$0xff]
    %v182 = vld [vmem:[#allocation5 + $0x138] sm:$0xff]
    %v183 = vld [vmem:[#allocation5 + $0x140] sm:$0xff]
    %v184 = vld [vmem:[#allocation5 + $0x148] sm:$0xff]
    %v185 = vld [vmem:[#allocation5 + $0x150] sm:$0xff]
    %v186 = vld [vmem:[#allocation5 + $0x158] sm:$0xff]
    %v187 = vld [vmem:[#allocation5 + $0x160] sm:$0xff]
    %v188 = vld [vmem:[#allocation5 + $0x168] sm:$0xff]
    %v189 = vld [vmem:[#allocation5 + $0x170] sm:$0xff]
    %v190 = vld [vmem:[#allocation5 + $0x178] sm:$0xff]
    %v191 = vld [vmem:[#allocation5 + $0x180] sm:$0xff]
    %v192 = vld [vmem:[#allocation5 + $0x188] sm:$0xff]
    %v193 = vld [vmem:[#allocation5 + $0x190] sm:$0xff]
    %v194 = vld [vmem:[#allocation5 + $0x198] sm:$0xff]
    %v195 = vld [vmem:[#allocation5 + $0x1a0] sm:$0xff]
    %v196 = vld [vmem:[#allocation5 + $0x1a8] sm:$0xff]
    %v197 = vld [vmem:[#allocation5 + $0x1b0] sm:$0xff]
    %v198 = vld [vmem:[#allocation5 + $0x1b8] sm:$0xff]
    %v199 = vld [vmem:[#allocation5 + $0x1c0] sm:$0xff]
    %v200 = vld [vmem:[#allocation5 + $0x1c8] sm:$0xff]
    %v201 = vld [vmem:[#allocation5 + $0x1d0] sm:$0xff]
    %v202 = vld [vmem:[#allocation5 + $0x1d8] sm:$0xff]
    %v203 = vld [vmem:[#allocation5 + $0x1e0] sm:$0xff]
    %v204 = vld [vmem:[#allocation5 + $0x1e8] sm:$0xff]
    %v205 = vld [vmem:[#allocation5 + $0x1f0] sm:$0xff]
    %v206 = vld [vmem:[#allocation5 + $0x1f8] sm:$0xff]
    %v207 = vld [vmem:[#allocation7] sm:$0xff]
    %v208 = vld [vmem:[#allocation7 + $0x8] sm:$0xff]
    %v209 = vld [vmem:[#allocation7 + $0x10] sm:$0xff]
    %v210 = vld [vmem:[#allocation7 + $0x18] sm:$0xff]
    %v211 = vld [vmem:[#allocation7 + $0x20] sm:$0xff]
    %v212 = vld [vmem:[#allocation7 + $0x28] sm:$0xff]
    %v213 = vld [vmem:[#allocation7 + $0x30] sm:$0xff]
    %v214 = vld [vmem:[#allocation7 + $0x38] sm:$0xff]
    %v215 = vld [vmem:[#allocation7 + $0x40] sm:$0xff]
    %v216 = vld [vmem:[#allocation7 + $0x48] sm:$0xff]
    %v217 = vld [vmem:[#allocation7 + $0x50] sm:$0xff]
    %v218 = vld [vmem:[#allocation7 + $0x58] sm:$0xff]
    %v219 = vld [vmem:[#allocation7 + $0x60] sm:$0xff]
    %v220 = vld [vmem:[#allocation7 + $0x68] sm:$0xff]
    %v221 = vld [vmem:[#allocation7 + $0x70] sm:$0xff]
    %v222 = vld [vmem:[#allocation7 + $0x78] sm:$0xff]
    %v223 = vld [vmem:[#allocation7 + $0x80] sm:$0xff]
    %v224 = vld [vmem:[#allocation7 + $0x88] sm:$0xff]
    %v225 = vld [vmem:[#allocation7 + $0x90] sm:$0xff]
    %v226 = vld [vmem:[#allocation7 + $0x98] sm:$0xff]
    %v227 = vld [vmem:[#allocation7 + $0xa0] sm:$0xff]
    %v228 = vld [vmem:[#allocation7 + $0xa8] sm:$0xff]
    %v229 = vld [vmem:[#allocation7 + $0xb0] sm:$0xff]
    %v230 = vld [vmem:[#allocation7 + $0xb8] sm:$0xff]
    %v231 = vld [vmem:[#allocation7 + $0xc0] sm:$0xff]
    %v232 = vld [vmem:[#allocation7 + $0xc8] sm:$0xff]
    %v233 = vld [vmem:[#allocation7 + $0xd0] sm:$0xff]
    %v234 = vld [vmem:[#allocation7 + $0xd8] sm:$0xff]
    %v235 = vld [vmem:[#allocation7 + $0xe0] sm:$0xff]
    %v236 = vld [vmem:[#allocation7 + $0xe8] sm:$0xff]
    %v237 = vld [vmem:[#allocation7 + $0xf0] sm:$0xff]
    %v238 = vld [vmem:[#allocation7 + $0xf8] sm:$0xff]
    %v239 = vld [vmem:[#allocation7 + $0x100] sm:$0xff]
    %v240 = vld [vmem:[#allocation7 + $0x108] sm:$0xff]
    %v241 = vld [vmem:[#allocation7 + $0x110] sm:$0xff]
    %v242 = vld [vmem:[#allocation7 + $0x118] sm:$0xff]
    %v243 = vld [vmem:[#allocation7 + $0x120] sm:$0xff]
    %v244 = vld [vmem:[#allocation7 + $0x128] sm:$0xff]
    %v245 = vld [vmem:[#allocation7 + $0x130] sm:$0xff]
    %v246 = vld [vmem:[#allocation7 + $0x138] sm:$0xff]
    %v247 = vld [vmem:[#allocation7 + $0x140] sm:$0xff]
    %v248 = vld [vmem:[#allocation7 + $0x148] sm:$0xff]
    %v249 = vld [vmem:[#allocation7 + $0x150] sm:$0xff]
    %v250 = vld [vmem:[#allocation7 + $0x158] sm:$0xff]
    %v251 = vld [vmem:[#allocation7 + $0x160] sm:$0xff]
    %v252 = vld [vmem:[#allocation7 + $0x168] sm:$0xff]
    %v253 = vld [vmem:[#allocation7 + $0x170] sm:$0xff]
    %v254 = vld [vmem:[#allocation7 + $0x178] sm:$0xff]
    %v255 = vld [vmem:[#allocation7 + $0x180] sm:$0xff]
    %v256 = vld [vmem:[#allocation7 + $0x188] sm:$0xff]
    %v257 = vld [vmem:[#allocation7 + $0x190] sm:$0xff]
    %v258 = vld [vmem:[#allocation7 + $0x198] sm:$0xff]
    %v259 = vld [vmem:[#allocation7 + $0x1a0] sm:$0xff]
    %v260 = vld [vmem:[#allocation7 + $0x1a8] sm:$0xff]
    %v261 = vld [vmem:[#allocation7 + $0x1b0] sm:$0xff]
    %v262 = vld [vmem:[#allocation7 + $0x1b8] sm:$0xff]
    %v263 = vld [vmem:[#allocation7 + $0x1c0] sm:$0xff]
    %v264 = vld [vmem:[#allocation7 + $0x1c8] sm:$0xff]
    %v265 = vld [vmem:[#allocation7 + $0x1d0] sm:$0xff]
    %v266 = vld [vmem:[#allocation7 + $0x1d8] sm:$0xff]
    %v267 = vld [vmem:[#allocation7 + $0x1e0] sm:$0xff]
    %v268 = vld [vmem:[#allocation7 + $0x1e8] sm:$0xff]
    %v269 = vld [vmem:[#allocation7 + $0x1f0] sm:$0xff]
    %v270 = vld [vmem:[#allocation7 + $0x1f8] sm:$0xff]
    %v271 = vld [vmem:[%s6] sm:$0xf]
    %v272 = vld [vmem:[%s0] sm:$0xff]
    %v273 = vld [vmem:[%s0 + $0x8] sm:$0xff]
    %v275 = vlaneseq
    %v276 = vshrl.u32 %v275, 7
    %v277 = vsub.s32 0, %v276
    %v278 = vrot.slane %v142, %v277
    %v279 = vlaneseq
    %v280 = vshrl.u32 %v279, 7
    %v281 = vsub.s32 1, %v280
    %v282 = vrot.slane %v142, %v281
    %v283 = vlaneseq
    %v284 = vshrl.u32 %v283, 7
    %v285 = vsub.s32 2, %v284
    %v286 = vrot.slane %v142, %v285
    %v287 = vlaneseq
    %v288 = vshrl.u32 %v287, 7
    %v289 = vsub.s32 3, %v288
    %v290 = vrot.slane %v142, %v289
    %vm295 = vcmask 64512
    %v297 = vsel %vm295, %v272, 0
    %v300 = vsel %vm295, %v273, 0
    %302 = vmatprep.subr.mxu0 0.0
    %303 = vmatpush1.msra.mxu0 0.0
    %304 = vmatprep.subr.mxu0 0.0
    %305 = vmatpush1.msra.mxu0 0.0
    %306 = vmatprep.subr.mxu0 0.0
    %307 = vmatpush1.msra.mxu0 0.0
    %308 = vmatprep.subr.mxu0 0.0
    %309 = vmatpush1.msra.mxu0 0.0
    %310 = vmatprep.subr.mxu0 0.0
    %311 = vmatpush1.msra.mxu0 0.0
    %312 = vmatprep.subr.mxu0 0.0
    %313 = vmatpush1.msra.mxu0 0.0
    %314 = vmatprep.subr.mxu0 0.0
    %315 = vmatpush1.msra.mxu0 0.0
    %316 = vmatprep.subr.mxu0 0.0
    %317 = vmatpush1.msra.mxu0 0.0
    %318 = vmatprep.subr.mxu0 0.0
    %319 = vmatpush1.msra.mxu0 0.0
    %320 = vmatprep.subr.mxu0 0.0
    %321 = vmatpush1.msra.mxu0 0.0
    %322 = vmatprep.subr.mxu0 0.0
    %323 = vmatpush1.msra.mxu0 0.0
    %324 = vmatprep.subr.mxu0 0.0
    %325 = vmatpush1.msra.mxu0 0.0
    %326 = vmatprep.subr.mxu0 0.0
    %327 = vmatpush1.msra.mxu0 0.0
    %328 = vmatprep.subr.mxu0 0.0
    %329 = vmatpush1.msra.mxu0 0.0
    %330 = vmatprep.subr.mxu0 0.0
    %331 = vmatpush1.msra.mxu0 0.0
    %332 = vmatprep.subr.mxu0 %v75
    %333 = vmatpush1.msra.mxu0 %v74
    %334 = vmatprep.subr.mxu0 0.0
    %335 = vmatpush2.msra.mxu0 0.0
    %336 = vmatprep.subr.mxu0 0.0
    %337 = vmatpush2.msra.mxu0 0.0
    %338 = vmatprep.subr.mxu0 0.0
    %339 = vmatpush2.msra.mxu0 0.0
    %340 = vmatprep.subr.mxu0 0.0
    %341 = vmatpush2.msra.mxu0 0.0
    %342 = vmatprep.subr.mxu0 0.0
    %343 = vmatpush2.msra.mxu0 0.0
    %344 = vmatprep.subr.mxu0 0.0
    %345 = vmatpush2.msra.mxu0 0.0
    %346 = vmatprep.subr.mxu0 0.0
    %347 = vmatpush2.msra.mxu0 0.0
    %348 = vmatprep.subr.mxu0 0.0
    %349 = vmatpush2.msra.mxu0 0.0
    %350 = vmatprep.subr.mxu0 0.0
    %351 = vmatpush2.msra.mxu0 0.0
    %352 = vmatprep.subr.mxu0 0.0
    %353 = vmatpush2.msra.mxu0 0.0
    %354 = vmatprep.subr.mxu0 0.0
    %355 = vmatpush2.msra.mxu0 0.0
    %356 = vmatprep.subr.mxu0 0.0
    %357 = vmatpush2.msra.mxu0 0.0
    %358 = vmatprep.subr.mxu0 0.0
    %359 = vmatpush2.msra.mxu0 0.0
    %360 = vmatprep.subr.mxu0 0.0
    %361 = vmatpush2.msra.mxu0 0.0
    %362 = vmatprep.subr.mxu0 0.0
    %363 = vmatpush2.msra.mxu0 0.0
    %364 = vmatprep.subr.mxu0 0.0
    %365 = vmatpush2.msra.mxu0 0.0
    %366 = vmatprep.mubr.f32.mxu0 0.0
    %367 = vmatmul.mubr.f32.gmra.mxu0 %v297
    %v368 = vpop.f32.mrf.mxu0
    %v369 = vadd.f32 %v278, %v368
    %v370 = vpop.f32.mrf.mxu0
    %v371 = vadd.f32 %v282, %v370
    %372 = vmatprep.mubr.f32.mxu0 0.0
    %373 = vmatmul.mubr.f32.gmra.mxu0 %v300
    %v374 = vpop.f32.mrf.mxu0
    %v375 = vadd.f32 %v278, %v374
    %v376 = vpop.f32.mrf.mxu0
    %v377 = vadd.f32 %v282, %v376
    %378 = vdwg.mxu0
    %379 = vmatprep.subr.mxu0 0.0
    %380 = vmatpush1.msra.mxu0 0.0
    %381 = vmatprep.subr.mxu0 0.0
    %382 = vmatpush1.msra.mxu0 0.0
    %383 = vmatprep.subr.mxu0 0.0
    %384 = vmatpush1.msra.mxu0 0.0
    %385 = vmatprep.subr.mxu0 0.0
    %386 = vmatpush1.msra.mxu0 0.0
    %387 = vmatprep.subr.mxu0 0.0
    %388 = vmatpush1.msra.mxu0 0.0
    %389 = vmatprep.subr.mxu0 0.0
    %390 = vmatpush1.msra.mxu0 0.0
    %391 = vmatprep.subr.mxu0 0.0
    %392 = vmatpush1.msra.mxu0 0.0
    %393 = vmatprep.subr.mxu0 0.0
    %394 = vmatpush1.msra.mxu0 0.0
    %395 = vmatprep.subr.mxu0 0.0
    %396 = vmatpush1.msra.mxu0 0.0
    %397 = vmatprep.subr.mxu0 0.0
    %398 = vmatpush1.msra.mxu0 0.0
    %399 = vmatprep.subr.mxu0 0.0
    %400 = vmatpush1.msra.mxu0 0.0
    %401 = vmatprep.subr.mxu0 0.0
    %402 = vmatpush1.msra.mxu0 0.0
    %403 = vmatprep.subr.mxu0 0.0
    %404 = vmatpush1.msra.mxu0 0.0
    %405 = vmatprep.subr.mxu0 0.0
    %406 = vmatpush1.msra.mxu0 0.0
    %407 = vmatprep.subr.mxu0 0.0
    %408 = vmatpush1.msra.mxu0 0.0
    %409 = vmatprep.subr.mxu0 %v77
    %410 = vmatpush1.msra.mxu0 %v76
    %411 = vmatprep.subr.mxu0 0.0
    %412 = vmatpush2.msra.mxu0 0.0
    %413 = vmatprep.subr.mxu0 0.0
    %414 = vmatpush2.msra.mxu0 0.0
    %415 = vmatprep.subr.mxu0 0.0
    %416 = vmatpush2.msra.mxu0 0.0
    %417 = vmatprep.subr.mxu0 0.0
    %418 = vmatpush2.msra.mxu0 0.0
    %419 = vmatprep.subr.mxu0 0.0
    %420 = vmatpush2.msra.mxu0 0.0
    %421 = vmatprep.subr.mxu0 0.0
    %422 = vmatpush2.msra.mxu0 0.0
    %423 = vmatprep.subr.mxu0 0.0
    %424 = vmatpush2.msra.mxu0 0.0
    %425 = vmatprep.subr.mxu0 0.0
    %426 = vmatpush2.msra.mxu0 0.0
    %427 = vmatprep.subr.mxu0 0.0
    %428 = vmatpush2.msra.mxu0 0.0
    %429 = vmatprep.subr.mxu0 0.0
    %430 = vmatpush2.msra.mxu0 0.0
    %431 = vmatprep.subr.mxu0 0.0
    %432 = vmatpush2.msra.mxu0 0.0
    %433 = vmatprep.subr.mxu0 0.0
    %434 = vmatpush2.msra.mxu0 0.0
    %435 = vmatprep.subr.mxu0 0.0
    %436 = vmatpush2.msra.mxu0 0.0
    %437 = vmatprep.subr.mxu0 0.0
    %438 = vmatpush2.msra.mxu0 0.0
    %439 = vmatprep.subr.mxu0 0.0
    %440 = vmatpush2.msra.mxu0 0.0
    %441 = vmatprep.subr.mxu0 0.0
    %442 = vmatpush2.msra.mxu0 0.0
    %443 = vmatprep.mubr.f32.mxu0 0.0
    %444 = vmatmul.mubr.f32.gmra.mxu0 %v297
    %v445 = vpop.f32.mrf.mxu0
    %v446 = vadd.f32 %v286, %v445
    %v447 = vpop.f32.mrf.mxu0
    %v448 = vadd.f32 %v290, %v447
    %449 = vmatprep.mubr.f32.mxu0 0.0
    %450 = vmatmul.mubr.f32.gmra.mxu0 %v300
    %v451 = vpop.f32.mrf.mxu0
    %v452 = vadd.f32 %v286, %v451
    %v453 = vpop.f32.mrf.mxu0
    %v454 = vadd.f32 %v290, %v453
    %455 = vdwg.mxu0
    %456 = vmatprep.subr.mxu0 %v139
    %457 = vmatpush1.msra.mxu0 %v138
    %458 = vmatprep.subr.mxu0 %v135
    %459 = vmatpush1.msra.mxu0 %v134
    %460 = vmatprep.subr.mxu0 %v131
    %461 = vmatpush1.msra.mxu0 %v130
    %462 = vmatprep.subr.mxu0 %v127
    %463 = vmatpush1.msra.mxu0 %v126
    %464 = vmatprep.subr.mxu0 %v123
    %465 = vmatpush1.msra.mxu0 %v122
    %466 = vmatprep.subr.mxu0 %v119
    %467 = vmatpush1.msra.mxu0 %v118
    %468 = vmatprep.subr.mxu0 %v115
    %469 = vmatpush1.msra.mxu0 %v114
    %470 = vmatprep.subr.mxu0 %v111
    %471 = vmatpush1.msra.mxu0 %v110
    %472 = vmatprep.subr.mxu0 %v107
    %473 = vmatpush1.msra.mxu0 %v106
    %474 = vmatprep.subr.mxu0 %v103
    %475 = vmatpush1.msra.mxu0 %v102
    %476 = vmatprep.subr.mxu0 %v99
    %477 = vmatpush1.msra.mxu0 %v98
    %478 = vmatprep.subr.mxu0 %v95
    %479 = vmatpush1.msra.mxu0 %v94
    %480 = vmatprep.subr.mxu0 %v91
    %481 = vmatpush1.msra.mxu0 %v90
    %482 = vmatprep.subr.mxu0 %v87
    %483 = vmatpush1.msra.mxu0 %v86
    %484 = vmatprep.subr.mxu0 %v83
    %485 = vmatpush1.msra.mxu0 %v82
    %486 = vmatprep.subr.mxu0 %v79
    %487 = vmatpush1.msra.mxu0 %v78
    %488 = vmatprep.subr.mxu0 0.0
    %489 = vmatpush2.msra.mxu0 0.0
    %490 = vmatprep.subr.mxu0 0.0
    %491 = vmatpush2.msra.mxu0 0.0
    %492 = vmatprep.subr.mxu0 0.0
    %493 = vmatpush2.msra.mxu0 0.0
    %494 = vmatprep.subr.mxu0 0.0
    %495 = vmatpush2.msra.mxu0 0.0
    %496 = vmatprep.subr.mxu0 0.0
    %497 = vmatpush2.msra.mxu0 0.0
    %498 = vmatprep.subr.mxu0 0.0
    %499 = vmatpush2.msra.mxu0 0.0
    %500 = vmatprep.subr.mxu0 0.0
    %501 = vmatpush2.msra.mxu0 0.0
    %502 = vmatprep.subr.mxu0 0.0
    %503 = vmatpush2.msra.mxu0 0.0
    %504 = vmatprep.subr.mxu0 0.0
    %505 = vmatpush2.msra.mxu0 0.0
    %506 = vmatprep.subr.mxu0 0.0
    %507 = vmatpush2.msra.mxu0 0.0
    %508 = vmatprep.subr.mxu0 0.0
    %509 = vmatpush2.msra.mxu0 0.0
    %510 = vmatprep.subr.mxu0 0.0
    %511 = vmatpush2.msra.mxu0 0.0
    %512 = vmatprep.subr.mxu0 0.0
    %513 = vmatpush2.msra.mxu0 0.0
    %514 = vmatprep.subr.mxu0 0.0
    %515 = vmatpush2.msra.mxu0 0.0
    %516 = vmatprep.subr.mxu0 0.0
    %517 = vmatpush2.msra.mxu0 0.0
    %518 = vmatprep.subr.mxu0 0.0
    %519 = vmatpush2.msra.mxu0 0.0
    %520 = vmatprep.mubr.f32.mxu0 0.0
    %521 = vmatmul.mubr.f32.gmra.mxu0 0.0
    %v522 = vpop.f32.mrf.mxu0
    %v523 = vadd.f32 0.0, %v522
    %v524 = vpop.f32.mrf.mxu0
    %v525 = vadd.f32 0.0, %v524
    %526 = vdwg.mxu0
    %527 = vmatprep.subr.mxu0 %v141
    %528 = vmatpush1.msra.mxu0 %v140
    %529 = vmatprep.subr.mxu0 %v137
    %530 = vmatpush1.msra.mxu0 %v136
    %531 = vmatprep.subr.mxu0 %v133
    %532 = vmatpush1.msra.mxu0 %v132
    %533 = vmatprep.subr.mxu0 %v129
    %534 = vmatpush1.msra.mxu0 %v128
    %535 = vmatprep.subr.mxu0 %v125
    %536 = vmatpush1.msra.mxu0 %v124
    %537 = vmatprep.subr.mxu0 %v121
    %538 = vmatpush1.msra.mxu0 %v120
    %539 = vmatprep.subr.mxu0 %v117
    %540 = vmatpush1.msra.mxu0 %v116
    %541 = vmatprep.subr.mxu0 %v113
    %542 = vmatpush1.msra.mxu0 %v112
    %543 = vmatprep.subr.mxu0 %v109
    %544 = vmatpush1.msra.mxu0 %v108
    %545 = vmatprep.subr.mxu0 %v105
    %546 = vmatpush1.msra.mxu0 %v104
    %547 = vmatprep.subr.mxu0 %v101
    %548 = vmatpush1.msra.mxu0 %v100
    %549 = vmatprep.subr.mxu0 %v97
    %550 = vmatpush1.msra.mxu0 %v96
    %551 = vmatprep.subr.mxu0 %v93
    %552 = vmatpush1.msra.mxu0 %v92
    %553 = vmatprep.subr.mxu0 %v89
    %554 = vmatpush1.msra.mxu0 %v88
    %555 = vmatprep.subr.mxu0 %v85
    %556 = vmatpush1.msra.mxu0 %v84
    %557 = vmatprep.subr.mxu0 %v81
    %558 = vmatpush1.msra.mxu0 %v80
    %559 = vmatprep.subr.mxu0 0.0
    %560 = vmatpush2.msra.mxu0 0.0
    %561 = vmatprep.subr.mxu0 0.0
    %562 = vmatpush2.msra.mxu0 0.0
    %563 = vmatprep.subr.mxu0 0.0
    %564 = vmatpush2.msra.mxu0 0.0
    %565 = vmatprep.subr.mxu0 0.0
    %566 = vmatpush2.msra.mxu0 0.0
    %567 = vmatprep.subr.mxu0 0.0
    %568 = vmatpush2.msra.mxu0 0.0
    %569 = vmatprep.subr.mxu0 0.0
    %570 = vmatpush2.msra.mxu0 0.0
    %571 = vmatprep.subr.mxu0 0.0
    %572 = vmatpush2.msra.mxu0 0.0
    %573 = vmatprep.subr.mxu0 0.0
    %574 = vmatpush2.msra.mxu0 0.0
    %575 = vmatprep.subr.mxu0 0.0
    %576 = vmatpush2.msra.mxu0 0.0
    %577 = vmatprep.subr.mxu0 0.0
    %578 = vmatpush2.msra.mxu0 0.0
    %579 = vmatprep.subr.mxu0 0.0
    %580 = vmatpush2.msra.mxu0 0.0
    %581 = vmatprep.subr.mxu0 0.0
    %582 = vmatpush2.msra.mxu0 0.0
    %583 = vmatprep.subr.mxu0 0.0
    %584 = vmatpush2.msra.mxu0 0.0
    %585 = vmatprep.subr.mxu0 0.0
    %586 = vmatpush2.msra.mxu0 0.0
    %587 = vmatprep.subr.mxu0 0.0
    %588 = vmatpush2.msra.mxu0 0.0
    %589 = vmatprep.subr.mxu0 0.0
    %590 = vmatpush2.msra.mxu0 0.0
    %591 = vmatprep.mubr.f32.mxu0 0.0
    %592 = vmatmul.mubr.f32.gmra.mxu0 0.0
    %v593 = vpop.f32.mrf.mxu0
    %v594 = vadd.f32 0.0, %v593
    %v595 = vpop.f32.mrf.mxu0
    %v596 = vadd.f32 0.0, %v595
    %597 = vdwg.mxu0
    %v602 = vrot.slane %v523, 1
    %v603 = vrot.slane %v525, 1
    %v604 = vrot.slane %v594, 1
    %v605 = vrot.slane %v596, 1
    %v614 = vadd.f32 %v369, %v523
    %v615 = vadd.f32 %v371, %v525
    %v616 = vadd.f32 %v446, %v594
    %v617 = vadd.f32 %v448, %v596
    %v618 = vadd.f32 %v375, %v602
    %v619 = vadd.f32 %v377, %v603
    %v620 = vadd.f32 %v452, %v604
    %v621 = vadd.f32 %v454, %v605
    %v622 = vxor.u32 %v614, 2147483648
    %v623 = vxor.u32 %v618, 2147483648
    %v624 = vmul.f32 %v622, 1.442695
    %v625 = vpow.pop %v624
    %v626 = vmul.f32 %v623, 1.442695
    %v627 = vpow.pop %v626
    %v628 = vadd.f32 %v625, 1.0
    %v629 = vadd.f32 %v627, 1.0
    %v630 = vrcp.pop %v628
    %v631 = vmul.f32 1.0, %v630
    %v632 = vrcp.pop %v629
    %v633 = vmul.f32 1.0, %v632
    %v634 = vxor.u32 %v615, 2147483648
    %v635 = vxor.u32 %v619, 2147483648
    %v636 = vmul.f32 %v634, 1.442695
    %v637 = vpow.pop %v636
    %v638 = vmul.f32 %v635, 1.442695
    %v639 = vpow.pop %v638
    %v640 = vadd.f32 %v637, 1.0
    %v641 = vadd.f32 %v639, 1.0
    %v642 = vrcp.pop %v640
    %v643 = vmul.f32 1.0, %v642
    %v644 = vrcp.pop %v641
    %v645 = vmul.f32 1.0, %v644
    %v646 = vtanh.pop %v616
    %v647 = vtanh.pop %v620
    %v648 = vxor.u32 %v617, 2147483648
    %v649 = vxor.u32 %v621, 2147483648
    %v650 = vmul.f32 %v648, 1.442695
    %v651 = vpow.pop %v650
    %v652 = vmul.f32 %v649, 1.442695
    %v653 = vpow.pop %v652
    %v654 = vadd.f32 %v651, 1.0
    %v655 = vadd.f32 %v653, 1.0
    %v656 = vrcp.pop %v654
    %v657 = vmul.f32 1.0, %v656
    %v658 = vrcp.pop %v655
    %v659 = vmul.f32 1.0, %v658
    %v660 = vmul.f32 %v643, 0.0
    %v661 = vmul.f32 %v645, 0.0
    %v662 = vmul.f32 %v631, %v646
    %v663 = vmul.f32 %v633, %v647
    %v664 = vadd.f32 %v660, %v662
    %v665 = vadd.f32 %v661, %v663
    %v666 = vtanh.pop %v664
    %v667 = vtanh.pop %v665
    %v668 = vmul.f32 %v657, %v666
    %v669 = vmul.f32 %v659, %v667
    %670 = vmatprep.subr.mxu0 %v268
    %671 = vmatpush1.msra.mxu0 %v267
    %672 = vmatprep.subr.mxu0 %v264
    %673 = vmatpush1.msra.mxu0 %v263
    %674 = vmatprep.subr.mxu0 %v260
    %675 = vmatpush1.msra.mxu0 %v259
    %676 = vmatprep.subr.mxu0 %v256
    %677 = vmatpush1.msra.mxu0 %v255
    %678 = vmatprep.subr.mxu0 %v252
    %679 = vmatpush1.msra.mxu0 %v251
    %680 = vmatprep.subr.mxu0 %v248
    %681 = vmatpush1.msra.mxu0 %v247
    %682 = vmatprep.subr.mxu0 %v244
    %683 = vmatpush1.msra.mxu0 %v243
    %684 = vmatprep.subr.mxu0 %v240
    %685 = vmatpush1.msra.mxu0 %v239
    %686 = vmatprep.subr.mxu0 %v236
    %687 = vmatpush1.msra.mxu0 %v235
    %688 = vmatprep.subr.mxu0 %v232
    %689 = vmatpush1.msra.mxu0 %v231
    %690 = vmatprep.subr.mxu0 %v228
    %691 = vmatpush1.msra.mxu0 %v227
    %692 = vmatprep.subr.mxu0 %v224
    %693 = vmatpush1.msra.mxu0 %v223
    %694 = vmatprep.subr.mxu0 %v220
    %695 = vmatpush1.msra.mxu0 %v219
    %696 = vmatprep.subr.mxu0 %v216
    %697 = vmatpush1.msra.mxu0 %v215
    %698 = vmatprep.subr.mxu0 %v212
    %699 = vmatpush1.msra.mxu0 %v211
    %700 = vmatprep.subr.mxu0 %v208
    %701 = vmatpush1.msra.mxu0 %v207
    %702 = vmatprep.subr.mxu0 0.0
    %703 = vmatpush2.msra.mxu0 0.0
    %704 = vmatprep.subr.mxu0 0.0
    %705 = vmatpush2.msra.mxu0 0.0
    %706 = vmatprep.subr.mxu0 0.0
    %707 = vmatpush2.msra.mxu0 0.0
    %708 = vmatprep.subr.mxu0 0.0
    %709 = vmatpush2.msra.mxu0 0.0
    %710 = vmatprep.subr.mxu0 0.0
    %711 = vmatpush2.msra.mxu0 0.0
    %712 = vmatprep.subr.mxu0 0.0
    %713 = vmatpush2.msra.mxu0 0.0
    %714 = vmatprep.subr.mxu0 0.0
    %715 = vmatpush2.msra.mxu0 0.0
    %716 = vmatprep.subr.mxu0 0.0
    %717 = vmatpush2.msra.mxu0 0.0
    %718 = vmatprep.subr.mxu0 0.0
    %719 = vmatpush2.msra.mxu0 0.0
    %720 = vmatprep.subr.mxu0 0.0
    %721 = vmatpush2.msra.mxu0 0.0
    %722 = vmatprep.subr.mxu0 0.0
    %723 = vmatpush2.msra.mxu0 0.0
    %724 = vmatprep.subr.mxu0 0.0
    %725 = vmatpush2.msra.mxu0 0.0
    %726 = vmatprep.subr.mxu0 0.0
    %727 = vmatpush2.msra.mxu0 0.0
    %728 = vmatprep.subr.mxu0 0.0
    %729 = vmatpush2.msra.mxu0 0.0
    %730 = vmatprep.subr.mxu0 0.0
    %731 = vmatpush2.msra.mxu0 0.0
    %732 = vmatprep.subr.mxu0 0.0
    %733 = vmatpush2.msra.mxu0 0.0
    %734 = vmatprep.mubr.f32.mxu0 0.0
    %735 = vmatmul.mubr.f32.gmra.mxu0 0.0
    %v736 = vpop.f32.mrf.mxu0
    %v737 = vadd.f32 0.0, %v736
    %v738 = vpop.f32.mrf.mxu0
    %v739 = vadd.f32 0.0, %v738
    %740 = vdwg.mxu0
    %741 = vmatprep.subr.mxu0 %v270
    %742 = vmatpush1.msra.mxu0 %v269
    %743 = vmatprep.subr.mxu0 %v266
    %744 = vmatpush1.msra.mxu0 %v265
    %745 = vmatprep.subr.mxu0 %v262
    %746 = vmatpush1.msra.mxu0 %v261
    %747 = vmatprep.subr.mxu0 %v258
    %748 = vmatpush1.msra.mxu0 %v257
    %749 = vmatprep.subr.mxu0 %v254
    %750 = vmatpush1.msra.mxu0 %v253
    %751 = vmatprep.subr.mxu0 %v250
    %752 = vmatpush1.msra.mxu0 %v249
    %753 = vmatprep.subr.mxu0 %v246
    %754 = vmatpush1.msra.mxu0 %v245
    %755 = vmatprep.subr.mxu0 %v242
    %756 = vmatpush1.msra.mxu0 %v241
    %757 = vmatprep.subr.mxu0 %v238
    %758 = vmatpush1.msra.mxu0 %v237
    %759 = vmatprep.subr.mxu0 %v234
    %760 = vmatpush1.msra.mxu0 %v233
    %761 = vmatprep.subr.mxu0 %v230
    %762 = vmatpush1.msra.mxu0 %v229
    %763 = vmatprep.subr.mxu0 %v226
    %764 = vmatpush1.msra.mxu0 %v225
    %765 = vmatprep.subr.mxu0 %v222
    %766 = vmatpush1.msra.mxu0 %v221
    %767 = vmatprep.subr.mxu0 %v218
    %768 = vmatpush1.msra.mxu0 %v217
    %769 = vmatprep.subr.mxu0 %v214
    %770 = vmatpush1.msra.mxu0 %v213
    %771 = vmatprep.subr.mxu0 %v210
    %772 = vmatpush1.msra.mxu0 %v209
    %773 = vmatprep.subr.mxu0 0.0
    %774 = vmatpush2.msra.mxu0 0.0
    %775 = vmatprep.subr.mxu0 0.0
    %776 = vmatpush2.msra.mxu0 0.0
    %777 = vmatprep.subr.mxu0 0.0
    %778 = vmatpush2.msra.mxu0 0.0
    %779 = vmatprep.subr.mxu0 0.0
    %780 = vmatpush2.msra.mxu0 0.0
    %781 = vmatprep.subr.mxu0 0.0
    %782 = vmatpush2.msra.mxu0 0.0
    %783 = vmatprep.subr.mxu0 0.0
    %784 = vmatpush2.msra.mxu0 0.0
    %785 = vmatprep.subr.mxu0 0.0
    %786 = vmatpush2.msra.mxu0 0.0
    %787 = vmatprep.subr.mxu0 0.0
    %788 = vmatpush2.msra.mxu0 0.0
    %789 = vmatprep.subr.mxu0 0.0
    %790 = vmatpush2.msra.mxu0 0.0
    %791 = vmatprep.subr.mxu0 0.0
    %792 = vmatpush2.msra.mxu0 0.0
    %793 = vmatprep.subr.mxu0 0.0
    %794 = vmatpush2.msra.mxu0 0.0
    %795 = vmatprep.subr.mxu0 0.0
    %796 = vmatpush2.msra.mxu0 0.0
    %797 = vmatprep.subr.mxu0 0.0
    %798 = vmatpush2.msra.mxu0 0.0
    %799 = vmatprep.subr.mxu0 0.0
    %800 = vmatpush2.msra.mxu0 0.0
    %801 = vmatprep.subr.mxu0 0.0
    %802 = vmatpush2.msra.mxu0 0.0
    %803 = vmatprep.subr.mxu0 0.0
    %804 = vmatpush2.msra.mxu0 0.0
    %805 = vmatprep.mubr.f32.mxu0 0.0
    %806 = vmatmul.mubr.f32.gmra.mxu0 0.0
    %v807 = vpop.f32.mrf.mxu0
    %v808 = vadd.f32 0.0, %v807
    %v809 = vpop.f32.mrf.mxu0
    %v810 = vadd.f32 0.0, %v809
    %811 = vdwg.mxu0
    %v814 = vrot.slane %v669, 7
    %vm815 = vcmask 1041409
    %v816 = vsel %vm815, %v814, %v668
    %818 = vmatprep.subr.mxu0 %v204
    %819 = vmatpush1.msra.mxu0 %v203
    %820 = vmatprep.subr.mxu0 %v200
    %821 = vmatpush1.msra.mxu0 %v199
    %822 = vmatprep.subr.mxu0 %v196
    %823 = vmatpush1.msra.mxu0 %v195
    %824 = vmatprep.subr.mxu0 %v192
    %825 = vmatpush1.msra.mxu0 %v191
    %826 = vmatprep.subr.mxu0 %v188
    %827 = vmatpush1.msra.mxu0 %v187
    %828 = vmatprep.subr.mxu0 %v184
    %829 = vmatpush1.msra.mxu0 %v183
    %830 = vmatprep.subr.mxu0 %v180
    %831 = vmatpush1.msra.mxu0 %v179
    %832 = vmatprep.subr.mxu0 %v176
    %833 = vmatpush1.msra.mxu0 %v175
    %834 = vmatprep.subr.mxu0 %v172
    %835 = vmatpush1.msra.mxu0 %v171
    %836 = vmatprep.subr.mxu0 %v168
    %837 = vmatpush1.msra.mxu0 %v167
    %838 = vmatprep.subr.mxu0 %v164
    %839 = vmatpush1.msra.mxu0 %v163
    %840 = vmatprep.subr.mxu0 %v160
    %841 = vmatpush1.msra.mxu0 %v159
    %842 = vmatprep.subr.mxu0 %v156
    %843 = vmatpush1.msra.mxu0 %v155
    %844 = vmatprep.subr.mxu0 %v152
    %845 = vmatpush1.msra.mxu0 %v151
    %846 = vmatprep.subr.mxu0 %v148
    %847 = vmatpush1.msra.mxu0 %v147
    %848 = vmatprep.subr.mxu0 %v144
    %849 = vmatpush1.msra.mxu0 %v143
    %850 = vmatprep.subr.mxu0 0.0
    %851 = vmatpush2.msra.mxu0 0.0
    %852 = vmatprep.subr.mxu0 0.0
    %853 = vmatpush2.msra.mxu0 0.0
    %854 = vmatprep.subr.mxu0 0.0
    %855 = vmatpush2.msra.mxu0 0.0
    %856 = vmatprep.subr.mxu0 0.0
    %857 = vmatpush2.msra.mxu0 0.0
    %858 = vmatprep.subr.mxu0 0.0
    %859 = vmatpush2.msra.mxu0 0.0
    %860 = vmatprep.subr.mxu0 0.0
    %861 = vmatpush2.msra.mxu0 0.0
    %862 = vmatprep.subr.mxu0 0.0
    %863 = vmatpush2.msra.mxu0 0.0
    %864 = vmatprep.subr.mxu0 0.0
    %865 = vmatpush2.msra.mxu0 0.0
    %866 = vmatprep.subr.mxu0 0.0
    %867 = vmatpush2.msra.mxu0 0.0
    %868 = vmatprep.subr.mxu0 0.0
    %869 = vmatpush2.msra.mxu0 0.0
    %870 = vmatprep.subr.mxu0 0.0
    %871 = vmatpush2.msra.mxu0 0.0
    %872 = vmatprep.subr.mxu0 0.0
    %873 = vmatpush2.msra.mxu0 0.0
    %874 = vmatprep.subr.mxu0 0.0
    %875 = vmatpush2.msra.mxu0 0.0
    %876 = vmatprep.subr.mxu0 0.0
    %877 = vmatpush2.msra.mxu0 0.0
    %878 = vmatprep.subr.mxu0 0.0
    %879 = vmatpush2.msra.mxu0 0.0
    %880 = vmatprep.subr.mxu0 0.0
    %881 = vmatpush2.msra.mxu0 0.0
    %882 = vmatprep.mubr.f32.mxu0 0.0
    %883 = vmatmul.mubr.f32.gmra.mxu0 %v816
    %v884 = vpop.f32.mrf.mxu0
    %v885 = vadd.f32 %v737, %v884
    %v886 = vpop.f32.mrf.mxu0
    %v887 = vadd.f32 %v739, %v886
    %888 = vdwg.mxu0
    %889 = vmatprep.subr.mxu0 %v206
    %890 = vmatpush1.msra.mxu0 %v205
    %891 = vmatprep.subr.mxu0 %v202
    %892 = vmatpush1.msra.mxu0 %v201
    %893 = vmatprep.subr.mxu0 %v198
    %894 = vmatpush1.msra.mxu0 %v197
    %895 = vmatprep.subr.mxu0 %v194
    %896 = vmatpush1.msra.mxu0 %v193
    %897 = vmatprep.subr.mxu0 %v190
    %898 = vmatpush1.msra.mxu0 %v189
    %899 = vmatprep.subr.mxu0 %v186
    %900 = vmatpush1.msra.mxu0 %v185
    %901 = vmatprep.subr.mxu0 %v182
    %902 = vmatpush1.msra.mxu0 %v181
    %903 = vmatprep.subr.mxu0 %v178
    %904 = vmatpush1.msra.mxu0 %v177
    %905 = vmatprep.subr.mxu0 %v174
    %906 = vmatpush1.msra.mxu0 %v173
    %907 = vmatprep.subr.mxu0 %v170
    %908 = vmatpush1.msra.mxu0 %v169
    %909 = vmatprep.subr.mxu0 %v166
    %910 = vmatpush1.msra.mxu0 %v165
    %911 = vmatprep.subr.mxu0 %v162
    %912 = vmatpush1.msra.mxu0 %v161
    %913 = vmatprep.subr.mxu0 %v158
    %914 = vmatpush1.msra.mxu0 %v157
    %915 = vmatprep.subr.mxu0 %v154
    %916 = vmatpush1.msra.mxu0 %v153
    %917 = vmatprep.subr.mxu0 %v150
    %918 = vmatpush1.msra.mxu0 %v149
    %919 = vmatprep.subr.mxu0 %v146
    %920 = vmatpush1.msra.mxu0 %v145
    %921 = vmatprep.subr.mxu0 0.0
    %922 = vmatpush2.msra.mxu0 0.0
    %923 = vmatprep.subr.mxu0 0.0
    %924 = vmatpush2.msra.mxu0 0.0
    %925 = vmatprep.subr.mxu0 0.0
    %926 = vmatpush2.msra.mxu0 0.0
    %927 = vmatprep.subr.mxu0 0.0
    %928 = vmatpush2.msra.mxu0 0.0
    %929 = vmatprep.subr.mxu0 0.0
    %930 = vmatpush2.msra.mxu0 0.0
    %931 = vmatprep.subr.mxu0 0.0
    %932 = vmatpush2.msra.mxu0 0.0
    %933 = vmatprep.subr.mxu0 0.0
    %934 = vmatpush2.msra.mxu0 0.0
    %935 = vmatprep.subr.mxu0 0.0
    %936 = vmatpush2.msra.mxu0 0.0
    %937 = vmatprep.subr.mxu0 0.0
    %938 = vmatpush2.msra.mxu0 0.0
    %939 = vmatprep.subr.mxu0 0.0
    %940 = vmatpush2.msra.mxu0 0.0
    %941 = vmatprep.subr.mxu0 0.0
    %942 = vmatpush2.msra.mxu0 0.0
    %943 = vmatprep.subr.mxu0 0.0
    %944 = vmatpush2.msra.mxu0 0.0
    %945 = vmatprep.subr.mxu0 0.0
    %946 = vmatpush2.msra.mxu0 0.0
    %947 = vmatprep.subr.mxu0 0.0
    %948 = vmatpush2.msra.mxu0 0.0
    %949 = vmatprep.subr.mxu0 0.0
    %950 = vmatpush2.msra.mxu0 0.0
    %951 = vmatprep.subr.mxu0 0.0
    %952 = vmatpush2.msra.mxu0 0.0
    %953 = vmatprep.mubr.f32.mxu0 0.0
    %954 = vmatmul.mubr.f32.gmra.mxu0 %v816
    %v955 = vpop.f32.mrf.mxu0
    %v956 = vadd.f32 %v808, %v955
    %v957 = vpop.f32.mrf.mxu0
    %v958 = vadd.f32 %v810, %v957
    %959 = vdwg.mxu0
    %v961 = vlaneseq
    %v962 = vshrl.u32 %v961, 7
    %v963 = vsub.s32 0, %v962
    %v964 = vrot.slane %v271, %v963
    %v965 = vlaneseq
    %v966 = vshrl.u32 %v965, 7
    %v967 = vsub.s32 1, %v966
    %v968 = vrot.slane %v271, %v967
    %v969 = vlaneseq
    %v970 = vshrl.u32 %v969, 7
    %v971 = vsub.s32 2, %v970
    %v972 = vrot.slane %v271, %v971
    %v973 = vlaneseq
    %v974 = vshrl.u32 %v973, 7
    %v975 = vsub.s32 3, %v974
    %v976 = vrot.slane %v271, %v975
    %v981 = vadd.f32 %v885, %v964
    %v982 = vadd.f32 %v887, %v968
    %v983 = vadd.f32 %v956, %v972
    %v984 = vadd.f32 %v958, %v976
    %v985 = vxor.u32 %v981, 2147483648
    %v986 = vmul.f32 %v985, 1.442695
    %v987 = vpow.pop %v986
    %v988 = vadd.f32 %v987, 1.0
    %v989 = vrcp.pop %v988
    %v990 = vmul.f32 1.0, %v989
    %v991 = vxor.u32 %v982, 2147483648
    %v992 = vmul.f32 %v991, 1.442695
    %v993 = vpow.pop %v992
    %v994 = vadd.f32 %v993, 1.0
    %v995 = vrcp.pop %v994
    %v996 = vmul.f32 1.0, %v995
    %v997 = vtanh.pop %v983
    %v998 = vxor.u32 %v984, 2147483648
    %v999 = vmul.f32 %v998, 1.442695
    %v1000 = vpow.pop %v999
    %v1001 = vadd.f32 %v1000, 1.0
    %v1002 = vrcp.pop %v1001
    %v1003 = vmul.f32 1.0, %v1002
    %v1004 = vmul.f32 %v996, 0.0
    %v1005 = vmul.f32 %v990, %v997
    %v1006 = vadd.f32 %v1004, %v1005
    %v1007 = vtanh.pop %v1006
    %v1008 = vmul.f32 %v1003, %v1007
    %1009 = vmatprep.subr.mxu0 %v139
    %1010 = vmatpush1.msra.mxu0 %v138
    %1011 = vmatprep.subr.mxu0 %v135
    %1012 = vmatpush1.msra.mxu0 %v134
    %1013 = vmatprep.subr.mxu0 %v131
    %1014 = vmatpush1.msra.mxu0 %v130
    %1015 = vmatprep.subr.mxu0 %v127
    %1016 = vmatpush1.msra.mxu0 %v126
    %1017 = vmatprep.subr.mxu0 %v123
    %1018 = vmatpush1.msra.mxu0 %v122
    %1019 = vmatprep.subr.mxu0 %v119
    %1020 = vmatpush1.msra.mxu0 %v118
    %1021 = vmatprep.subr.mxu0 %v115
    %1022 = vmatpush1.msra.mxu0 %v114
    %1023 = vmatprep.subr.mxu0 %v111
    %1024 = vmatpush1.msra.mxu0 %v110
    %1025 = vmatprep.subr.mxu0 %v107
    %1026 = vmatpush1.msra.mxu0 %v106
    %1027 = vmatprep.subr.mxu0 %v103
    %1028 = vmatpush1.msra.mxu0 %v102
    %1029 = vmatprep.subr.mxu0 %v99
    %1030 = vmatpush1.msra.mxu0 %v98
    %1031 = vmatprep.subr.mxu0 %v95
    %1032 = vmatpush1.msra.mxu0 %v94
    %1033 = vmatprep.subr.mxu0 %v91
    %1034 = vmatpush1.msra.mxu0 %v90
    %1035 = vmatprep.subr.mxu0 %v87
    %1036 = vmatpush1.msra.mxu0 %v86
    %1037 = vmatprep.subr.mxu0 %v83
    %1038 = vmatpush1.msra.mxu0 %v82
    %1039 = vmatprep.subr.mxu0 %v79
    %1040 = vmatpush1.msra.mxu0 %v78
    %1041 = vmatprep.subr.mxu0 0.0
    %1042 = vmatpush2.msra.mxu0 0.0
    %1043 = vmatprep.subr.mxu0 0.0
    %1044 = vmatpush2.msra.mxu0 0.0
    %1045 = vmatprep.subr.mxu0 0.0
    %1046 = vmatpush2.msra.mxu0 0.0
    %1047 = vmatprep.subr.mxu0 0.0
    %1048 = vmatpush2.msra.mxu0 0.0
    %1049 = vmatprep.subr.mxu0 0.0
    %1050 = vmatpush2.msra.mxu0 0.0
    %1051 = vmatprep.subr.mxu0 0.0
    %1052 = vmatpush2.msra.mxu0 0.0
    %1053 = vmatprep.subr.mxu0 0.0
    %1054 = vmatpush2.msra.mxu0 0.0
    %1055 = vmatprep.subr.mxu0 0.0
    %1056 = vmatpush2.msra.mxu0 0.0
    %1057 = vmatprep.subr.mxu0 0.0
    %1058 = vmatpush2.msra.mxu0 0.0
    %1059 = vmatprep.subr.mxu0 0.0
    %1060 = vmatpush2.msra.mxu0 0.0
    %1061 = vmatprep.subr.mxu0 0.0
    %1062 = vmatpush2.msra.mxu0 0.0
    %1063 = vmatprep.subr.mxu0 0.0
    %1064 = vmatpush2.msra.mxu0 0.0
    %1065 = vmatprep.subr.mxu0 0.0
    %1066 = vmatpush2.msra.mxu0 0.0
    %1067 = vmatprep.subr.mxu0 0.0
    %1068 = vmatpush2.msra.mxu0 0.0
    %1069 = vmatprep.subr.mxu0 0.0
    %1070 = vmatpush2.msra.mxu0 0.0
    %1071 = vmatprep.subr.mxu0 0.0
    %1072 = vmatpush2.msra.mxu0 0.0
    %1073 = vmatprep.mubr.f32.mxu0 0.0
    %1074 = vmatmul.mubr.f32.gmra.mxu0 %v816
    %v1075 = vpop.f32.mrf.mxu0
    %v1076 = vadd.f32 0.0, %v1075
    %v1077 = vpop.f32.mrf.mxu0
    %v1078 = vadd.f32 0.0, %v1077
    %1079 = vdwg.mxu0
    %1080 = vmatprep.subr.mxu0 %v141
    %1081 = vmatpush1.msra.mxu0 %v140
    %1082 = vmatprep.subr.mxu0 %v137
    %1083 = vmatpush1.msra.mxu0 %v136
    %1084 = vmatprep.subr.mxu0 %v133
    %1085 = vmatpush1.msra.mxu0 %v132
    %1086 = vmatprep.subr.mxu0 %v129
    %1087 = vmatpush1.msra.mxu0 %v128
    %1088 = vmatprep.subr.mxu0 %v125
    %1089 = vmatpush1.msra.mxu0 %v124
    %1090 = vmatprep.subr.mxu0 %v121
    %1091 = vmatpush1.msra.mxu0 %v120
    %1092 = vmatprep.subr.mxu0 %v117
    %1093 = vmatpush1.msra.mxu0 %v116
    %1094 = vmatprep.subr.mxu0 %v113
    %1095 = vmatpush1.msra.mxu0 %v112
    %1096 = vmatprep.subr.mxu0 %v109
    %1097 = vmatpush1.msra.mxu0 %v108
    %1098 = vmatprep.subr.mxu0 %v105
    %1099 = vmatpush1.msra.mxu0 %v104
    %1100 = vmatprep.subr.mxu0 %v101
    %1101 = vmatpush1.msra.mxu0 %v100
    %1102 = vmatprep.subr.mxu0 %v97
    %1103 = vmatpush1.msra.mxu0 %v96
    %1104 = vmatprep.subr.mxu0 %v93
    %1105 = vmatpush1.msra.mxu0 %v92
    %1106 = vmatprep.subr.mxu0 %v89
    %1107 = vmatpush1.msra.mxu0 %v88
    %1108 = vmatprep.subr.mxu0 %v85
    %1109 = vmatpush1.msra.mxu0 %v84
    %1110 = vmatprep.subr.mxu0 %v81
    %1111 = vmatpush1.msra.mxu0 %v80
    %1112 = vmatprep.subr.mxu0 0.0
    %1113 = vmatpush2.msra.mxu0 0.0
    %1114 = vmatprep.subr.mxu0 0.0
    %1115 = vmatpush2.msra.mxu0 0.0
    %1116 = vmatprep.subr.mxu0 0.0
    %1117 = vmatpush2.msra.mxu0 0.0
    %1118 = vmatprep.subr.mxu0 0.0
    %1119 = vmatpush2.msra.mxu0 0.0
    %1120 = vmatprep.subr.mxu0 0.0
    %1121 = vmatpush2.msra.mxu0 0.0
    %1122 = vmatprep.subr.mxu0 0.0
    %1123 = vmatpush2.msra.mxu0 0.0
    %1124 = vmatprep.subr.mxu0 0.0
    %1125 = vmatpush2.msra.mxu0 0.0
    %1126 = vmatprep.subr.mxu0 0.0
    %1127 = vmatpush2.msra.mxu0 0.0
    %1128 = vmatprep.subr.mxu0 0.0
    %1129 = vmatpush2.msra.mxu0 0.0
    %1130 = vmatprep.subr.mxu0 0.0
    %1131 = vmatpush2.msra.mxu0 0.0
    %1132 = vmatprep.subr.mxu0 0.0
    %1133 = vmatpush2.msra.mxu0 0.0
    %1134 = vmatprep.subr.mxu0 0.0
    %1135 = vmatpush2.msra.mxu0 0.0
    %1136 = vmatprep.subr.mxu0 0.0
    %1137 = vmatpush2.msra.mxu0 0.0
    %1138 = vmatprep.subr.mxu0 0.0
    %1139 = vmatpush2.msra.mxu0 0.0
    %1140 = vmatprep.subr.mxu0 0.0
    %1141 = vmatpush2.msra.mxu0 0.0
    %1142 = vmatprep.subr.mxu0 0.0
    %1143 = vmatpush2.msra.mxu0 0.0
    %1144 = vmatprep.mubr.f32.mxu0 0.0
    %1145 = vmatmul.mubr.f32.gmra.mxu0 %v816
    %v1146 = vpop.f32.mrf.mxu0
    %v1147 = vadd.f32 0.0, %v1146
    %v1148 = vpop.f32.mrf.mxu0
    %v1149 = vadd.f32 0.0, %v1148
    %1150 = vdwg.mxu0
    %v1155 = vrot.slane %v1076, 7
    %v1156 = vrot.slane %v1078, 7
    %v1157 = vrot.slane %v1147, 7
    %v1158 = vrot.slane %v1149, 7
    %v1167 = vadd.f32 %v369, %v1155
    %v1168 = vadd.f32 %v371, %v1156
    %v1169 = vadd.f32 %v446, %v1157
    %v1170 = vadd.f32 %v448, %v1158
    %v1171 = vadd.f32 %v375, %v1076
    %v1172 = vadd.f32 %v377, %v1078
    %v1173 = vadd.f32 %v452, %v1147
    %v1174 = vadd.f32 %v454, %v1149
    %v1175 = vxor.u32 %v1167, 2147483648
    %v1176 = vxor.u32 %v1171, 2147483648
    %v1177 = vmul.f32 %v1175, 1.442695
    %v1178 = vpow.pop %v1177
    %v1179 = vmul.f32 %v1176, 1.442695
    %v1180 = vpow.pop %v1179
    %v1181 = vadd.f32 %v1178, 1.0
    %v1182 = vadd.f32 %v1180, 1.0
    %v1183 = vrcp.pop %v1181
    %v1184 = vmul.f32 1.0, %v1183
    %v1185 = vrcp.pop %v1182
    %v1186 = vmul.f32 1.0, %v1185
    %v1187 = vxor.u32 %v1168, 2147483648
    %v1188 = vxor.u32 %v1172, 2147483648
    %v1189 = vmul.f32 %v1187, 1.442695
    %v1190 = vpow.pop %v1189
    %v1191 = vmul.f32 %v1188, 1.442695
    %v1192 = vpow.pop %v1191
    %v1193 = vadd.f32 %v1190, 1.0
    %v1194 = vadd.f32 %v1192, 1.0
    %v1195 = vrcp.pop %v1193
    %v1196 = vmul.f32 1.0, %v1195
    %v1197 = vrcp.pop %v1194
    %v1198 = vmul.f32 1.0, %v1197
    %v1199 = vtanh.pop %v1169
    %v1200 = vtanh.pop %v1173
    %v1201 = vxor.u32 %v1170, 2147483648
    %v1202 = vxor.u32 %v1174, 2147483648
    %v1203 = vmul.f32 %v1201, 1.442695
    %v1204 = vpow.pop %v1203
    %v1205 = vmul.f32 %v1202, 1.442695
    %v1206 = vpow.pop %v1205
    %v1207 = vadd.f32 %v1204, 1.0
    %v1208 = vadd.f32 %v1206, 1.0
    %v1209 = vrcp.pop %v1207
    %v1210 = vmul.f32 1.0, %v1209
    %v1211 = vrcp.pop %v1208
    %v1212 = vmul.f32 1.0, %v1211
    %v1215 = vrot.slane %v664, 7
    %v1216 = vrot.slane %v665, 7
    %v1219 = vmul.f32 %v1196, %v1215
    %v1220 = vmul.f32 %v1198, %v1216
    %v1221 = vmul.f32 %v1184, %v1199
    %v1222 = vmul.f32 %v1186, %v1200
    %v1223 = vadd.f32 %v1219, %v1221
    %v1224 = vadd.f32 %v1220, %v1222
    %v1225 = vtanh.pop %v1223
    %v1226 = vtanh.pop %v1224
    %v1227 = vmul.f32 %v1210, %v1225
    %v1228 = vmul.f32 %v1212, %v1226
    %1229 = vmatprep.subr.mxu0 %v268
    %1230 = vmatpush1.msra.mxu0 %v267
    %1231 = vmatprep.subr.mxu0 %v264
    %1232 = vmatpush1.msra.mxu0 %v263
    %1233 = vmatprep.subr.mxu0 %v260
    %1234 = vmatpush1.msra.mxu0 %v259
    %1235 = vmatprep.subr.mxu0 %v256
    %1236 = vmatpush1.msra.mxu0 %v255
    %1237 = vmatprep.subr.mxu0 %v252
    %1238 = vmatpush1.msra.mxu0 %v251
    %1239 = vmatprep.subr.mxu0 %v248
    %1240 = vmatpush1.msra.mxu0 %v247
    %1241 = vmatprep.subr.mxu0 %v244
    %1242 = vmatpush1.msra.mxu0 %v243
    %1243 = vmatprep.subr.mxu0 %v240
    %1244 = vmatpush1.msra.mxu0 %v239
    %1245 = vmatprep.subr.mxu0 %v236
    %1246 = vmatpush1.msra.mxu0 %v235
    %1247 = vmatprep.subr.mxu0 %v232
    %1248 = vmatpush1.msra.mxu0 %v231
    %1249 = vmatprep.subr.mxu0 %v228
    %1250 = vmatpush1.msra.mxu0 %v227
    %1251 = vmatprep.subr.mxu0 %v224
    %1252 = vmatpush1.msra.mxu0 %v223
    %1253 = vmatprep.subr.mxu0 %v220
    %1254 = vmatpush1.msra.mxu0 %v219
    %1255 = vmatprep.subr.mxu0 %v216
    %1256 = vmatpush1.msra.mxu0 %v215
    %1257 = vmatprep.subr.mxu0 %v212
    %1258 = vmatpush1.msra.mxu0 %v211
    %1259 = vmatprep.subr.mxu0 %v208
    %1260 = vmatpush1.msra.mxu0 %v207
    %1261 = vmatprep.subr.mxu0 0.0
    %1262 = vmatpush2.msra.mxu0 0.0
    %1263 = vmatprep.subr.mxu0 0.0
    %1264 = vmatpush2.msra.mxu0 0.0
    %1265 = vmatprep.subr.mxu0 0.0
    %1266 = vmatpush2.msra.mxu0 0.0
    %1267 = vmatprep.subr.mxu0 0.0
    %1268 = vmatpush2.msra.mxu0 0.0
    %1269 = vmatprep.subr.mxu0 0.0
    %1270 = vmatpush2.msra.mxu0 0.0
    %1271 = vmatprep.subr.mxu0 0.0
    %1272 = vmatpush2.msra.mxu0 0.0
    %1273 = vmatprep.subr.mxu0 0.0
    %1274 = vmatpush2.msra.mxu0 0.0
    %1275 = vmatprep.subr.mxu0 0.0
    %1276 = vmatpush2.msra.mxu0 0.0
    %1277 = vmatprep.subr.mxu0 0.0
    %1278 = vmatpush2.msra.mxu0 0.0
    %1279 = vmatprep.subr.mxu0 0.0
    %1280 = vmatpush2.msra.mxu0 0.0
    %1281 = vmatprep.subr.mxu0 0.0
    %1282 = vmatpush2.msra.mxu0 0.0
    %1283 = vmatprep.subr.mxu0 0.0
    %1284 = vmatpush2.msra.mxu0 0.0
    %1285 = vmatprep.subr.mxu0 0.0
    %1286 = vmatpush2.msra.mxu0 0.0
    %1287 = vmatprep.subr.mxu0 0.0
    %1288 = vmatpush2.msra.mxu0 0.0
    %1289 = vmatprep.subr.mxu0 0.0
    %1290 = vmatpush2.msra.mxu0 0.0
    %1291 = vmatprep.subr.mxu0 0.0
    %1292 = vmatpush2.msra.mxu0 0.0
    %1293 = vmatprep.mubr.f32.mxu0 0.0
    %1294 = vmatmul.mubr.f32.gmra.mxu0 %v1008
    %v1295 = vpop.f32.mrf.mxu0
    %v1296 = vadd.f32 0.0, %v1295
    %v1297 = vpop.f32.mrf.mxu0
    %v1298 = vadd.f32 0.0, %v1297
    %1299 = vdwg.mxu0
    %1300 = vmatprep.subr.mxu0 %v270
    %1301 = vmatpush1.msra.mxu0 %v269
    %1302 = vmatprep.subr.mxu0 %v266
    %1303 = vmatpush1.msra.mxu0 %v265
    %1304 = vmatprep.subr.mxu0 %v262
    %1305 = vmatpush1.msra.mxu0 %v261
    %1306 = vmatprep.subr.mxu0 %v258
    %1307 = vmatpush1.msra.mxu0 %v257
    %1308 = vmatprep.subr.mxu0 %v254
    %1309 = vmatpush1.msra.mxu0 %v253
    %1310 = vmatprep.subr.mxu0 %v250
    %1311 = vmatpush1.msra.mxu0 %v249
    %1312 = vmatprep.subr.mxu0 %v246
    %1313 = vmatpush1.msra.mxu0 %v245
    %1314 = vmatprep.subr.mxu0 %v242
    %1315 = vmatpush1.msra.mxu0 %v241
    %1316 = vmatprep.subr.mxu0 %v238
    %1317 = vmatpush1.msra.mxu0 %v237
    %1318 = vmatprep.subr.mxu0 %v234
    %1319 = vmatpush1.msra.mxu0 %v233
    %1320 = vmatprep.subr.mxu0 %v230
    %1321 = vmatpush1.msra.mxu0 %v229
    %1322 = vmatprep.subr.mxu0 %v226
    %1323 = vmatpush1.msra.mxu0 %v225
    %1324 = vmatprep.subr.mxu0 %v222
    %1325 = vmatpush1.msra.mxu0 %v221
    %1326 = vmatprep.subr.mxu0 %v218
    %1327 = vmatpush1.msra.mxu0 %v217
    %1328 = vmatprep.subr.mxu0 %v214
    %1329 = vmatpush1.msra.mxu0 %v213
    %1330 = vmatprep.subr.mxu0 %v210
    %1331 = vmatpush1.msra.mxu0 %v209
    %1332 = vmatprep.subr.mxu0 0.0
    %1333 = vmatpush2.msra.mxu0 0.0
    %1334 = vmatprep.subr.mxu0 0.0
    %1335 = vmatpush2.msra.mxu0 0.0
    %1336 = vmatprep.subr.mxu0 0.0
    %1337 = vmatpush2.msra.mxu0 0.0
    %1338 = vmatprep.subr.mxu0 0.0
    %1339 = vmatpush2.msra.mxu0 0.0
    %1340 = vmatprep.subr.mxu0 0.0
    %1341 = vmatpush2.msra.mxu0 0.0
    %1342 = vmatprep.subr.mxu0 0.0
    %1343 = vmatpush2.msra.mxu0 0.0
    %1344 = vmatprep.subr.mxu0 0.0
    %1345 = vmatpush2.msra.mxu0 0.0
    %1346 = vmatprep.subr.mxu0 0.0
    %1347 = vmatpush2.msra.mxu0 0.0
    %1348 = vmatprep.subr.mxu0 0.0
    %1349 = vmatpush2.msra.mxu0 0.0
    %1350 = vmatprep.subr.mxu0 0.0
    %1351 = vmatpush2.msra.mxu0 0.0
    %1352 = vmatprep.subr.mxu0 0.0
    %1353 = vmatpush2.msra.mxu0 0.0
    %1354 = vmatprep.subr.mxu0 0.0
    %1355 = vmatpush2.msra.mxu0 0.0
    %1356 = vmatprep.subr.mxu0 0.0
    %1357 = vmatpush2.msra.mxu0 0.0
    %1358 = vmatprep.subr.mxu0 0.0
    %1359 = vmatpush2.msra.mxu0 0.0
    %1360 = vmatprep.subr.mxu0 0.0
    %1361 = vmatpush2.msra.mxu0 0.0
    %1362 = vmatprep.subr.mxu0 0.0
    %1363 = vmatpush2.msra.mxu0 0.0
    %1364 = vmatprep.mubr.f32.mxu0 0.0
    %1365 = vmatmul.mubr.f32.gmra.mxu0 %v1008
    %v1366 = vpop.f32.mrf.mxu0
    %v1367 = vadd.f32 0.0, %v1366
    %v1368 = vpop.f32.mrf.mxu0
    %v1369 = vadd.f32 0.0, %v1368
    %1370 = vdwg.mxu0
    %v1373 = vrot.slane %v1227, 1
    %v1374 = vsel %vm815, %v1228, %v1373
    %1376 = vmatprep.subr.mxu0 %v204
    %1377 = vmatpush1.msra.mxu0 %v203
    %1378 = vmatprep.subr.mxu0 %v200
    %1379 = vmatpush1.msra.mxu0 %v199
    %1380 = vmatprep.subr.mxu0 %v196
    %1381 = vmatpush1.msra.mxu0 %v195
    %1382 = vmatprep.subr.mxu0 %v192
    %1383 = vmatpush1.msra.mxu0 %v191
    %1384 = vmatprep.subr.mxu0 %v188
    %1385 = vmatpush1.msra.mxu0 %v187
    %1386 = vmatprep.subr.mxu0 %v184
    %1387 = vmatpush1.msra.mxu0 %v183
    %1388 = vmatprep.subr.mxu0 %v180
    %1389 = vmatpush1.msra.mxu0 %v179
    %1390 = vmatprep.subr.mxu0 %v176
    %1391 = vmatpush1.msra.mxu0 %v175
    %1392 = vmatprep.subr.mxu0 %v172
    %1393 = vmatpush1.msra.mxu0 %v171
    %1394 = vmatprep.subr.mxu0 %v168
    %1395 = vmatpush1.msra.mxu0 %v167
    %1396 = vmatprep.subr.mxu0 %v164
    %1397 = vmatpush1.msra.mxu0 %v163
    %1398 = vmatprep.subr.mxu0 %v160
    %1399 = vmatpush1.msra.mxu0 %v159
    %1400 = vmatprep.subr.mxu0 %v156
    %1401 = vmatpush1.msra.mxu0 %v155
    %1402 = vmatprep.subr.mxu0 %v152
    %1403 = vmatpush1.msra.mxu0 %v151
    %1404 = vmatprep.subr.mxu0 %v148
    %1405 = vmatpush1.msra.mxu0 %v147
    %1406 = vmatprep.subr.mxu0 %v144
    %1407 = vmatpush1.msra.mxu0 %v143
    %1408 = vmatprep.subr.mxu0 0.0
    %1409 = vmatpush2.msra.mxu0 0.0
    %1410 = vmatprep.subr.mxu0 0.0
    %1411 = vmatpush2.msra.mxu0 0.0
    %1412 = vmatprep.subr.mxu0 0.0
    %1413 = vmatpush2.msra.mxu0 0.0
    %1414 = vmatprep.subr.mxu0 0.0
    %1415 = vmatpush2.msra.mxu0 0.0
    %1416 = vmatprep.subr.mxu0 0.0
    %1417 = vmatpush2.msra.mxu0 0.0
    %1418 = vmatprep.subr.mxu0 0.0
    %1419 = vmatpush2.msra.mxu0 0.0
    %1420 = vmatprep.subr.mxu0 0.0
    %1421 = vmatpush2.msra.mxu0 0.0
    %1422 = vmatprep.subr.mxu0 0.0
    %1423 = vmatpush2.msra.mxu0 0.0
    %1424 = vmatprep.subr.mxu0 0.0
    %1425 = vmatpush2.msra.mxu0 0.0
    %1426 = vmatprep.subr.mxu0 0.0
    %1427 = vmatpush2.msra.mxu0 0.0
    %1428 = vmatprep.subr.mxu0 0.0
    %1429 = vmatpush2.msra.mxu0 0.0
    %1430 = vmatprep.subr.mxu0 0.0
    %1431 = vmatpush2.msra.mxu0 0.0
    %1432 = vmatprep.subr.mxu0 0.0
    %1433 = vmatpush2.msra.mxu0 0.0
    %1434 = vmatprep.subr.mxu0 0.0
    %1435 = vmatpush2.msra.mxu0 0.0
    %1436 = vmatprep.subr.mxu0 0.0
    %1437 = vmatpush2.msra.mxu0 0.0
    %1438 = vmatprep.subr.mxu0 0.0
    %1439 = vmatpush2.msra.mxu0 0.0
    %1440 = vmatprep.mubr.f32.mxu0 0.0
    %1441 = vmatmul.mubr.f32.gmra.mxu0 %v1374
    %v1442 = vpop.f32.mrf.mxu0
    %v1443 = vadd.f32 %v1296, %v1442
    %v1444 = vpop.f32.mrf.mxu0
    %v1445 = vadd.f32 %v1298, %v1444
    %1446 = vdwg.mxu0
    %1447 = vmatprep.subr.mxu0 %v206
    %1448 = vmatpush1.msra.mxu0 %v205
    %1449 = vmatprep.subr.mxu0 %v202
    %1450 = vmatpush1.msra.mxu0 %v201
    %1451 = vmatprep.subr.mxu0 %v198
    %1452 = vmatpush1.msra.mxu0 %v197
    %1453 = vmatprep.subr.mxu0 %v194
    %1454 = vmatpush1.msra.mxu0 %v193
    %1455 = vmatprep.subr.mxu0 %v190
    %1456 = vmatpush1.msra.mxu0 %v189
    %1457 = vmatprep.subr.mxu0 %v186
    %1458 = vmatpush1.msra.mxu0 %v185
    %1459 = vmatprep.subr.mxu0 %v182
    %1460 = vmatpush1.msra.mxu0 %v181
    %1461 = vmatprep.subr.mxu0 %v178
    %1462 = vmatpush1.msra.mxu0 %v177
    %1463 = vmatprep.subr.mxu0 %v174
    %1464 = vmatpush1.msra.mxu0 %v173
    %1465 = vmatprep.subr.mxu0 %v170
    %1466 = vmatpush1.msra.mxu0 %v169
    %1467 = vmatprep.subr.mxu0 %v166
    %1468 = vmatpush1.msra.mxu0 %v165
    %1469 = vmatprep.subr.mxu0 %v162
    %1470 = vmatpush1.msra.mxu0 %v161
    %1471 = vmatprep.subr.mxu0 %v158
    %1472 = vmatpush1.msra.mxu0 %v157
    %1473 = vmatprep.subr.mxu0 %v154
    %1474 = vmatpush1.msra.mxu0 %v153
    %1475 = vmatprep.subr.mxu0 %v150
    %1476 = vmatpush1.msra.mxu0 %v149
    %1477 = vmatprep.subr.mxu0 %v146
    %1478 = vmatpush1.msra.mxu0 %v145
    %1479 = vmatprep.subr.mxu0 0.0
    %1480 = vmatpush2.msra.mxu0 0.0
    %1481 = vmatprep.subr.mxu0 0.0
    %1482 = vmatpush2.msra.mxu0 0.0
    %1483 = vmatprep.subr.mxu0 0.0
    %1484 = vmatpush2.msra.mxu0 0.0
    %1485 = vmatprep.subr.mxu0 0.0
    %1486 = vmatpush2.msra.mxu0 0.0
    %1487 = vmatprep.subr.mxu0 0.0
    %1488 = vmatpush2.msra.mxu0 0.0
    %1489 = vmatprep.subr.mxu0 0.0
    %1490 = vmatpush2.msra.mxu0 0.0
    %1491 = vmatprep.subr.mxu0 0.0
    %1492 = vmatpush2.msra.mxu0 0.0
    %1493 = vmatprep.subr.mxu0 0.0
    %1494 = vmatpush2.msra.mxu0 0.0
    %1495 = vmatprep.subr.mxu0 0.0
    %1496 = vmatpush2.msra.mxu0 0.0
    %1497 = vmatprep.subr.mxu0 0.0
    %1498 = vmatpush2.msra.mxu0 0.0
    %1499 = vmatprep.subr.mxu0 0.0
    %1500 = vmatpush2.msra.mxu0 0.0
    %1501 = vmatprep.subr.mxu0 0.0
    %1502 = vmatpush2.msra.mxu0 0.0
    %1503 = vmatprep.subr.mxu0 0.0
    %1504 = vmatpush2.msra.mxu0 0.0
    %1505 = vmatprep.subr.mxu0 0.0
    %1506 = vmatpush2.msra.mxu0 0.0
    %1507 = vmatprep.subr.mxu0 0.0
    %1508 = vmatpush2.msra.mxu0 0.0
    %1509 = vmatprep.subr.mxu0 0.0
    %1510 = vmatpush2.msra.mxu0 0.0
    %1511 = vmatprep.mubr.f32.mxu0 0.0
    %1512 = vmatmul.mubr.f32.gmra.mxu0 %v1374
    %v1513 = vpop.f32.mrf.mxu0
    %v1514 = vadd.f32 %v1367, %v1513
    %v1515 = vpop.f32.mrf.mxu0
    %v1516 = vadd.f32 %v1369, %v1515
    %1517 = vdwg.mxu0
    %v1518 = vadd.f32 %v1443, %v964
    %v1519 = vadd.f32 %v1445, %v968
    %v1520 = vadd.f32 %v1514, %v972
    %v1521 = vadd.f32 %v1516, %v976
    %v1522 = vxor.u32 %v1518, 2147483648
    %v1523 = vmul.f32 %v1522, 1.442695
    %v1524 = vpow.pop %v1523
    %v1525 = vadd.f32 %v1524, 1.0
    %v1526 = vrcp.pop %v1525
    %v1527 = vmul.f32 1.0, %v1526
    %v1528 = vxor.u32 %v1519, 2147483648
    %v1529 = vmul.f32 %v1528, 1.442695
    %v1530 = vpow.pop %v1529
    %v1531 = vadd.f32 %v1530, 1.0
    %v1532 = vrcp.pop %v1531
    %v1533 = vmul.f32 1.0, %v1532
    %v1534 = vtanh.pop %v1520
    %v1535 = vxor.u32 %v1521, 2147483648
    %v1536 = vmul.f32 %v1535, 1.442695
    %v1537 = vpow.pop %v1536
    %v1538 = vadd.f32 %v1537, 1.0
    %v1539 = vrcp.pop %v1538
    %v1540 = vmul.f32 1.0, %v1539
    %v1541 = vmul.f32 %v1533, %v1006
    %v1542 = vmul.f32 %v1527, %v1534
    %v1543 = vadd.f32 %v1541, %v1542
    %v1544 = vtanh.pop %v1543
    %v1545 = vmul.f32 %v1540, %v1544
    %1546 = vmatprep.subr.mxu0 %v139
    %1547 = vmatpush1.msra.mxu0 %v138
    %1548 = vmatprep.subr.mxu0 %v135
    %1549 = vmatpush1.msra.mxu0 %v134
    %1550 = vmatprep.subr.mxu0 %v131
    %1551 = vmatpush1.msra.mxu0 %v130
    %1552 = vmatprep.subr.mxu0 %v127
    %1553 = vmatpush1.msra.mxu0 %v126
    %1554 = vmatprep.subr.mxu0 %v123
    %1555 = vmatpush1.msra.mxu0 %v122
    %1556 = vmatprep.subr.mxu0 %v119
    %1557 = vmatpush1.msra.mxu0 %v118
    %1558 = vmatprep.subr.mxu0 %v115
    %1559 = vmatpush1.msra.mxu0 %v114
    %1560 = vmatprep.subr.mxu0 %v111
    %1561 = vmatpush1.msra.mxu0 %v110
    %1562 = vmatprep.subr.mxu0 %v107
    %1563 = vmatpush1.msra.mxu0 %v106
    %1564 = vmatprep.subr.mxu0 %v103
    %1565 = vmatpush1.msra.mxu0 %v102
    %1566 = vmatprep.subr.mxu0 %v99
    %1567 = vmatpush1.msra.mxu0 %v98
    %1568 = vmatprep.subr.mxu0 %v95
    %1569 = vmatpush1.msra.mxu0 %v94
    %1570 = vmatprep.subr.mxu0 %v91
    %1571 = vmatpush1.msra.mxu0 %v90
    %1572 = vmatprep.subr.mxu0 %v87
    %1573 = vmatpush1.msra.mxu0 %v86
    %1574 = vmatprep.subr.mxu0 %v83
    %1575 = vmatpush1.msra.mxu0 %v82
    %1576 = vmatprep.subr.mxu0 %v79
    %1577 = vmatpush1.msra.mxu0 %v78
    %1578 = vmatprep.subr.mxu0 0.0
    %1579 = vmatpush2.msra.mxu0 0.0
    %1580 = vmatprep.subr.mxu0 0.0
    %1581 = vmatpush2.msra.mxu0 0.0
    %1582 = vmatprep.subr.mxu0 0.0
    %1583 = vmatpush2.msra.mxu0 0.0
    %1584 = vmatprep.subr.mxu0 0.0
    %1585 = vmatpush2.msra.mxu0 0.0
    %1586 = vmatprep.subr.mxu0 0.0
    %1587 = vmatpush2.msra.mxu0 0.0
    %1588 = vmatprep.subr.mxu0 0.0
    %1589 = vmatpush2.msra.mxu0 0.0
    %1590 = vmatprep.subr.mxu0 0.0
    %1591 = vmatpush2.msra.mxu0 0.0
    %1592 = vmatprep.subr.mxu0 0.0
    %1593 = vmatpush2.msra.mxu0 0.0
    %1594 = vmatprep.subr.mxu0 0.0
    %1595 = vmatpush2.msra.mxu0 0.0
    %1596 = vmatprep.subr.mxu0 0.0
    %1597 = vmatpush2.msra.mxu0 0.0
    %1598 = vmatprep.subr.mxu0 0.0
    %1599 = vmatpush2.msra.mxu0 0.0
    %1600 = vmatprep.subr.mxu0 0.0
    %1601 = vmatpush2.msra.mxu0 0.0
    %1602 = vmatprep.subr.mxu0 0.0
    %1603 = vmatpush2.msra.mxu0 0.0
    %1604 = vmatprep.subr.mxu0 0.0
    %1605 = vmatpush2.msra.mxu0 0.0
    %1606 = vmatprep.subr.mxu0 0.0
    %1607 = vmatpush2.msra.mxu0 0.0
    %1608 = vmatprep.subr.mxu0 0.0
    %1609 = vmatpush2.msra.mxu0 0.0
    %1610 = vmatprep.mubr.f32.mxu0 0.0
    %1611 = vmatmul.mubr.f32.gmra.mxu0 %v1374
    %v1612 = vpop.f32.mrf.mxu0
    %v1613 = vadd.f32 0.0, %v1612
    %v1614 = vpop.f32.mrf.mxu0
    %v1615 = vadd.f32 0.0, %v1614
    %1616 = vdwg.mxu0
    %1617 = vmatprep.subr.mxu0 %v141
    %1618 = vmatpush1.msra.mxu0 %v140
    %1619 = vmatprep.subr.mxu0 %v137
    %1620 = vmatpush1.msra.mxu0 %v136
    %1621 = vmatprep.subr.mxu0 %v133
    %1622 = vmatpush1.msra.mxu0 %v132
    %1623 = vmatprep.subr.mxu0 %v129
    %1624 = vmatpush1.msra.mxu0 %v128
    %1625 = vmatprep.subr.mxu0 %v125
    %1626 = vmatpush1.msra.mxu0 %v124
    %1627 = vmatprep.subr.mxu0 %v121
    %1628 = vmatpush1.msra.mxu0 %v120
    %1629 = vmatprep.subr.mxu0 %v117
    %1630 = vmatpush1.msra.mxu0 %v116
    %1631 = vmatprep.subr.mxu0 %v113
    %1632 = vmatpush1.msra.mxu0 %v112
    %1633 = vmatprep.subr.mxu0 %v109
    %1634 = vmatpush1.msra.mxu0 %v108
    %1635 = vmatprep.subr.mxu0 %v105
    %1636 = vmatpush1.msra.mxu0 %v104
    %1637 = vmatprep.subr.mxu0 %v101
    %1638 = vmatpush1.msra.mxu0 %v100
    %1639 = vmatprep.subr.mxu0 %v97
    %1640 = vmatpush1.msra.mxu0 %v96
    %1641 = vmatprep.subr.mxu0 %v93
    %1642 = vmatpush1.msra.mxu0 %v92
    %1643 = vmatprep.subr.mxu0 %v89
    %1644 = vmatpush1.msra.mxu0 %v88
    %1645 = vmatprep.subr.mxu0 %v85
    %1646 = vmatpush1.msra.mxu0 %v84
    %1647 = vmatprep.subr.mxu0 %v81
    %1648 = vmatpush1.msra.mxu0 %v80
    %1649 = vmatprep.subr.mxu0 0.0
    %1650 = vmatpush2.msra.mxu0 0.0
    %1651 = vmatprep.subr.mxu0 0.0
    %1652 = vmatpush2.msra.mxu0 0.0
    %1653 = vmatprep.subr.mxu0 0.0
    %1654 = vmatpush2.msra.mxu0 0.0
    %1655 = vmatprep.subr.mxu0 0.0
    %1656 = vmatpush2.msra.mxu0 0.0
    %1657 = vmatprep.subr.mxu0 0.0
    %1658 = vmatpush2.msra.mxu0 0.0
    %1659 = vmatprep.subr.mxu0 0.0
    %1660 = vmatpush2.msra.mxu0 0.0
    %1661 = vmatprep.subr.mxu0 0.0
    %1662 = vmatpush2.msra.mxu0 0.0
    %1663 = vmatprep.subr.mxu0 0.0
    %1664 = vmatpush2.msra.mxu0 0.0
    %1665 = vmatprep.subr.mxu0 0.0
    %1666 = vmatpush2.msra.mxu0 0.0
    %1667 = vmatprep.subr.mxu0 0.0
    %1668 = vmatpush2.msra.mxu0 0.0
    %1669 = vmatprep.subr.mxu0 0.0
    %1670 = vmatpush2.msra.mxu0 0.0
    %1671 = vmatprep.subr.mxu0 0.0
    %1672 = vmatpush2.msra.mxu0 0.0
    %1673 = vmatprep.subr.mxu0 0.0
    %1674 = vmatpush2.msra.mxu0 0.0
    %1675 = vmatprep.subr.mxu0 0.0
    %1676 = vmatpush2.msra.mxu0 0.0
    %1677 = vmatprep.subr.mxu0 0.0
    %1678 = vmatpush2.msra.mxu0 0.0
    %1679 = vmatprep.subr.mxu0 0.0
    %1680 = vmatpush2.msra.mxu0 0.0
    %1681 = vmatprep.mubr.f32.mxu0 0.0
    %1682 = vmatmul.mubr.f32.gmra.mxu0 %v1374
    %v1683 = vpop.f32.mrf.mxu0
    %v1684 = vadd.f32 0.0, %v1683
    %v1685 = vpop.f32.mrf.mxu0
    %v1686 = vadd.f32 0.0, %v1685
    %1687 = vdwg.mxu0
    %v1692 = vrot.slane %v1613, 6
    %v1693 = vrot.slane %v1615, 6
    %v1694 = vrot.slane %v1684, 6
    %v1695 = vrot.slane %v1686, 6
    %v1696 = vrot.slane %v1613, 7
    %v1697 = vrot.slane %v1615, 7
    %v1698 = vrot.slane %v1684, 7
    %v1699 = vrot.slane %v1686, 7
    %v1708 = vadd.f32 %v369, %v1692
    %v1709 = vadd.f32 %v371, %v1693
    %v1710 = vadd.f32 %v446, %v1694
    %v1711 = vadd.f32 %v448, %v1695
    %v1712 = vadd.f32 %v375, %v1696
    %v1713 = vadd.f32 %v377, %v1697
    %v1714 = vadd.f32 %v452, %v1698
    %v1715 = vadd.f32 %v454, %v1699
    %v1716 = vxor.u32 %v1708, 2147483648
    %v1717 = vxor.u32 %v1712, 2147483648
    %v1718 = vmul.f32 %v1716, 1.442695
    %v1719 = vpow.pop %v1718
    %v1720 = vmul.f32 %v1717, 1.442695
    %v1721 = vpow.pop %v1720
    %v1722 = vadd.f32 %v1719, 1.0
    %v1723 = vadd.f32 %v1721, 1.0
    %v1724 = vrcp.pop %v1722
    %v1725 = vmul.f32 1.0, %v1724
    %v1726 = vrcp.pop %v1723
    %v1727 = vmul.f32 1.0, %v1726
    %v1728 = vxor.u32 %v1709, 2147483648
    %v1729 = vxor.u32 %v1713, 2147483648
    %v1730 = vmul.f32 %v1728, 1.442695
    %v1731 = vpow.pop %v1730
    %v1732 = vmul.f32 %v1729, 1.442695
    %v1733 = vpow.pop %v1732
    %v1734 = vadd.f32 %v1731, 1.0
    %v1735 = vadd.f32 %v1733, 1.0
    %v1736 = vrcp.pop %v1734
    %v1737 = vmul.f32 1.0, %v1736
    %v1738 = vrcp.pop %v1735
    %v1739 = vmul.f32 1.0, %v1738
    %v1740 = vtanh.pop %v1710
    %v1741 = vtanh.pop %v1714
    %v1742 = vxor.u32 %v1711, 2147483648
    %v1743 = vxor.u32 %v1715, 2147483648
    %v1744 = vmul.f32 %v1742, 1.442695
    %v1745 = vpow.pop %v1744
    %v1746 = vmul.f32 %v1743, 1.442695
    %v1747 = vpow.pop %v1746
    %v1748 = vadd.f32 %v1745, 1.0
    %v1749 = vadd.f32 %v1747, 1.0
    %v1750 = vrcp.pop %v1748
    %v1751 = vmul.f32 1.0, %v1750
    %v1752 = vrcp.pop %v1749
    %v1753 = vmul.f32 1.0, %v1752
    %v1756 = vrot.slane %v1223, 7
    %v1757 = vrot.slane %v1224, 7
    %v1760 = vmul.f32 %v1737, %v1756
    %v1761 = vmul.f32 %v1739, %v1757
    %v1762 = vmul.f32 %v1725, %v1740
    %v1763 = vmul.f32 %v1727, %v1741
    %v1764 = vadd.f32 %v1760, %v1762
    %v1765 = vadd.f32 %v1761, %v1763
    %v1766 = vtanh.pop %v1764
    %v1767 = vtanh.pop %v1765
    %v1768 = vmul.f32 %v1751, %v1766
    %v1769 = vmul.f32 %v1753, %v1767
    %1770 = vmatprep.subr.mxu0 %v268
    %1771 = vmatpush1.msra.mxu0 %v267
    %1772 = vmatprep.subr.mxu0 %v264
    %1773 = vmatpush1.msra.mxu0 %v263
    %1774 = vmatprep.subr.mxu0 %v260
    %1775 = vmatpush1.msra.mxu0 %v259
    %1776 = vmatprep.subr.mxu0 %v256
    %1777 = vmatpush1.msra.mxu0 %v255
    %1778 = vmatprep.subr.mxu0 %v252
    %1779 = vmatpush1.msra.mxu0 %v251
    %1780 = vmatprep.subr.mxu0 %v248
    %1781 = vmatpush1.msra.mxu0 %v247
    %1782 = vmatprep.subr.mxu0 %v244
    %1783 = vmatpush1.msra.mxu0 %v243
    %1784 = vmatprep.subr.mxu0 %v240
    %1785 = vmatpush1.msra.mxu0 %v239
    %1786 = vmatprep.subr.mxu0 %v236
    %1787 = vmatpush1.msra.mxu0 %v235
    %1788 = vmatprep.subr.mxu0 %v232
    %1789 = vmatpush1.msra.mxu0 %v231
    %1790 = vmatprep.subr.mxu0 %v228
    %1791 = vmatpush1.msra.mxu0 %v227
    %1792 = vmatprep.subr.mxu0 %v224
    %1793 = vmatpush1.msra.mxu0 %v223
    %1794 = vmatprep.subr.mxu0 %v220
    %1795 = vmatpush1.msra.mxu0 %v219
    %1796 = vmatprep.subr.mxu0 %v216
    %1797 = vmatpush1.msra.mxu0 %v215
    %1798 = vmatprep.subr.mxu0 %v212
    %1799 = vmatpush1.msra.mxu0 %v211
    %1800 = vmatprep.subr.mxu0 %v208
    %1801 = vmatpush1.msra.mxu0 %v207
    %1802 = vmatprep.subr.mxu0 0.0
    %1803 = vmatpush2.msra.mxu0 0.0
    %1804 = vmatprep.subr.mxu0 0.0
    %1805 = vmatpush2.msra.mxu0 0.0
    %1806 = vmatprep.subr.mxu0 0.0
    %1807 = vmatpush2.msra.mxu0 0.0
    %1808 = vmatprep.subr.mxu0 0.0
    %1809 = vmatpush2.msra.mxu0 0.0
    %1810 = vmatprep.subr.mxu0 0.0
    %1811 = vmatpush2.msra.mxu0 0.0
    %1812 = vmatprep.subr.mxu0 0.0
    %1813 = vmatpush2.msra.mxu0 0.0
    %1814 = vmatprep.subr.mxu0 0.0
    %1815 = vmatpush2.msra.mxu0 0.0
    %1816 = vmatprep.subr.mxu0 0.0
    %1817 = vmatpush2.msra.mxu0 0.0
    %1818 = vmatprep.subr.mxu0 0.0
    %1819 = vmatpush2.msra.mxu0 0.0
    %1820 = vmatprep.subr.mxu0 0.0
    %1821 = vmatpush2.msra.mxu0 0.0
    %1822 = vmatprep.subr.mxu0 0.0
    %1823 = vmatpush2.msra.mxu0 0.0
    %1824 = vmatprep.subr.mxu0 0.0
    %1825 = vmatpush2.msra.mxu0 0.0
    %1826 = vmatprep.subr.mxu0 0.0
    %1827 = vmatpush2.msra.mxu0 0.0
    %1828 = vmatprep.subr.mxu0 0.0
    %1829 = vmatpush2.msra.mxu0 0.0
    %1830 = vmatprep.subr.mxu0 0.0
    %1831 = vmatpush2.msra.mxu0 0.0
    %1832 = vmatprep.subr.mxu0 0.0
    %1833 = vmatpush2.msra.mxu0 0.0
    %1834 = vmatprep.mubr.f32.mxu0 0.0
    %1835 = vmatmul.mubr.f32.gmra.mxu0 %v1545
    %v1836 = vpop.f32.mrf.mxu0
    %v1837 = vadd.f32 0.0, %v1836
    %v1838 = vpop.f32.mrf.mxu0
    %v1839 = vadd.f32 0.0, %v1838
    %1840 = vdwg.mxu0
    %1841 = vmatprep.subr.mxu0 %v270
    %1842 = vmatpush1.msra.mxu0 %v269
    %1843 = vmatprep.subr.mxu0 %v266
    %1844 = vmatpush1.msra.mxu0 %v265
    %1845 = vmatprep.subr.mxu0 %v262
    %1846 = vmatpush1.msra.mxu0 %v261
    %1847 = vmatprep.subr.mxu0 %v258
    %1848 = vmatpush1.msra.mxu0 %v257
    %1849 = vmatprep.subr.mxu0 %v254
    %1850 = vmatpush1.msra.mxu0 %v253
    %1851 = vmatprep.subr.mxu0 %v250
    %1852 = vmatpush1.msra.mxu0 %v249
    %1853 = vmatprep.subr.mxu0 %v246
    %1854 = vmatpush1.msra.mxu0 %v245
    %1855 = vmatprep.subr.mxu0 %v242
    %1856 = vmatpush1.msra.mxu0 %v241
    %1857 = vmatprep.subr.mxu0 %v238
    %1858 = vmatpush1.msra.mxu0 %v237
    %1859 = vmatprep.subr.mxu0 %v234
    %1860 = vmatpush1.msra.mxu0 %v233
    %1861 = vmatprep.subr.mxu0 %v230
    %1862 = vmatpush1.msra.mxu0 %v229
    %1863 = vmatprep.subr.mxu0 %v226
    %1864 = vmatpush1.msra.mxu0 %v225
    %1865 = vmatprep.subr.mxu0 %v222
    %1866 = vmatpush1.msra.mxu0 %v221
    %1867 = vmatprep.subr.mxu0 %v218
    %1868 = vmatpush1.msra.mxu0 %v217
    %1869 = vmatprep.subr.mxu0 %v214
    %1870 = vmatpush1.msra.mxu0 %v213
    %1871 = vmatprep.subr.mxu0 %v210
    %1872 = vmatpush1.msra.mxu0 %v209
    %1873 = vmatprep.subr.mxu0 0.0
    %1874 = vmatpush2.msra.mxu0 0.0
    %1875 = vmatprep.subr.mxu0 0.0
    %1876 = vmatpush2.msra.mxu0 0.0
    %1877 = vmatprep.subr.mxu0 0.0
    %1878 = vmatpush2.msra.mxu0 0.0
    %1879 = vmatprep.subr.mxu0 0.0
    %1880 = vmatpush2.msra.mxu0 0.0
    %1881 = vmatprep.subr.mxu0 0.0
    %1882 = vmatpush2.msra.mxu0 0.0
    %1883 = vmatprep.subr.mxu0 0.0
    %1884 = vmatpush2.msra.mxu0 0.0
    %1885 = vmatprep.subr.mxu0 0.0
    %1886 = vmatpush2.msra.mxu0 0.0
    %1887 = vmatprep.subr.mxu0 0.0
    %1888 = vmatpush2.msra.mxu0 0.0
    %1889 = vmatprep.subr.mxu0 0.0
    %1890 = vmatpush2.msra.mxu0 0.0
    %1891 = vmatprep.subr.mxu0 0.0
    %1892 = vmatpush2.msra.mxu0 0.0
    %1893 = vmatprep.subr.mxu0 0.0
    %1894 = vmatpush2.msra.mxu0 0.0
    %1895 = vmatprep.subr.mxu0 0.0
    %1896 = vmatpush2.msra.mxu0 0.0
    %1897 = vmatprep.subr.mxu0 0.0
    %1898 = vmatpush2.msra.mxu0 0.0
    %1899 = vmatprep.subr.mxu0 0.0
    %1900 = vmatpush2.msra.mxu0 0.0
    %1901 = vmatprep.subr.mxu0 0.0
    %1902 = vmatpush2.msra.mxu0 0.0
    %1903 = vmatprep.subr.mxu0 0.0
    %1904 = vmatpush2.msra.mxu0 0.0
    %1905 = vmatprep.mubr.f32.mxu0 0.0
    %1906 = vmatmul.mubr.f32.gmra.mxu0 %v1545
    %v1907 = vpop.f32.mrf.mxu0
    %v1908 = vadd.f32 0.0, %v1907
    %v1909 = vpop.f32.mrf.mxu0
    %v1910 = vadd.f32 0.0, %v1909
    %1911 = vdwg.mxu0
    %v1914 = vrot.slane %v1768, 2
    %v1915 = vrot.slane %v1769, 1
    %v1916 = vsel %vm815, %v1915, %v1914
    %1918 = vmatprep.subr.mxu0 %v204
    %1919 = vmatpush1.msra.mxu0 %v203
    %1920 = vmatprep.subr.mxu0 %v200
    %1921 = vmatpush1.msra.mxu0 %v199
    %1922 = vmatprep.subr.mxu0 %v196
    %1923 = vmatpush1.msra.mxu0 %v195
    %1924 = vmatprep.subr.mxu0 %v192
    %1925 = vmatpush1.msra.mxu0 %v191
    %1926 = vmatprep.subr.mxu0 %v188
    %1927 = vmatpush1.msra.mxu0 %v187
    %1928 = vmatprep.subr.mxu0 %v184
    %1929 = vmatpush1.msra.mxu0 %v183
    %1930 = vmatprep.subr.mxu0 %v180
    %1931 = vmatpush1.msra.mxu0 %v179
    %1932 = vmatprep.subr.mxu0 %v176
    %1933 = vmatpush1.msra.mxu0 %v175
    %1934 = vmatprep.subr.mxu0 %v172
    %1935 = vmatpush1.msra.mxu0 %v171
    %1936 = vmatprep.subr.mxu0 %v168
    %1937 = vmatpush1.msra.mxu0 %v167
    %1938 = vmatprep.subr.mxu0 %v164
    %1939 = vmatpush1.msra.mxu0 %v163
    %1940 = vmatprep.subr.mxu0 %v160
    %1941 = vmatpush1.msra.mxu0 %v159
    %1942 = vmatprep.subr.mxu0 %v156
    %1943 = vmatpush1.msra.mxu0 %v155
    %1944 = vmatprep.subr.mxu0 %v152
    %1945 = vmatpush1.msra.mxu0 %v151
    %1946 = vmatprep.subr.mxu0 %v148
    %1947 = vmatpush1.msra.mxu0 %v147
    %1948 = vmatprep.subr.mxu0 %v144
    %1949 = vmatpush1.msra.mxu0 %v143
    %1950 = vmatprep.subr.mxu0 0.0
    %1951 = vmatpush2.msra.mxu0 0.0
    %1952 = vmatprep.subr.mxu0 0.0
    %1953 = vmatpush2.msra.mxu0 0.0
    %1954 = vmatprep.subr.mxu0 0.0
    %1955 = vmatpush2.msra.mxu0 0.0
    %1956 = vmatprep.subr.mxu0 0.0
    %1957 = vmatpush2.msra.mxu0 0.0
    %1958 = vmatprep.subr.mxu0 0.0
    %1959 = vmatpush2.msra.mxu0 0.0
    %1960 = vmatprep.subr.mxu0 0.0
    %1961 = vmatpush2.msra.mxu0 0.0
    %1962 = vmatprep.subr.mxu0 0.0
    %1963 = vmatpush2.msra.mxu0 0.0
    %1964 = vmatprep.subr.mxu0 0.0
    %1965 = vmatpush2.msra.mxu0 0.0
    %1966 = vmatprep.subr.mxu0 0.0
    %1967 = vmatpush2.msra.mxu0 0.0
    %1968 = vmatprep.subr.mxu0 0.0
    %1969 = vmatpush2.msra.mxu0 0.0
    %1970 = vmatprep.subr.mxu0 0.0
    %1971 = vmatpush2.msra.mxu0 0.0
    %1972 = vmatprep.subr.mxu0 0.0
    %1973 = vmatpush2.msra.mxu0 0.0
    %1974 = vmatprep.subr.mxu0 0.0
    %1975 = vmatpush2.msra.mxu0 0.0
    %1976 = vmatprep.subr.mxu0 0.0
    %1977 = vmatpush2.msra.mxu0 0.0
    %1978 = vmatprep.subr.mxu0 0.0
    %1979 = vmatpush2.msra.mxu0 0.0
    %1980 = vmatprep.subr.mxu0 0.0
    %1981 = vmatpush2.msra.mxu0 0.0
    %1982 = vmatprep.mubr.f32.mxu0 0.0
    %1983 = vmatmul.mubr.f32.gmra.mxu0 %v1916
    %v1984 = vpop.f32.mrf.mxu0
    %v1985 = vadd.f32 %v1837, %v1984
    %v1986 = vpop.f32.mrf.mxu0
    %v1987 = vadd.f32 %v1839, %v1986
    %1988 = vdwg.mxu0
    %1989 = vmatprep.subr.mxu0 %v206
    %1990 = vmatpush1.msra.mxu0 %v205
    %1991 = vmatprep.subr.mxu0 %v202
    %1992 = vmatpush1.msra.mxu0 %v201
    %1993 = vmatprep.subr.mxu0 %v198
    %1994 = vmatpush1.msra.mxu0 %v197
    %1995 = vmatprep.subr.mxu0 %v194
    %1996 = vmatpush1.msra.mxu0 %v193
    %1997 = vmatprep.subr.mxu0 %v190
    %1998 = vmatpush1.msra.mxu0 %v189
    %1999 = vmatprep.subr.mxu0 %v186
    %2000 = vmatpush1.msra.mxu0 %v185
    %2001 = vmatprep.subr.mxu0 %v182
    %2002 = vmatpush1.msra.mxu0 %v181
    %2003 = vmatprep.subr.mxu0 %v178
    %2004 = vmatpush1.msra.mxu0 %v177
    %2005 = vmatprep.subr.mxu0 %v174
    %2006 = vmatpush1.msra.mxu0 %v173
    %2007 = vmatprep.subr.mxu0 %v170
    %2008 = vmatpush1.msra.mxu0 %v169
    %2009 = vmatprep.subr.mxu0 %v166
    %2010 = vmatpush1.msra.mxu0 %v165
    %2011 = vmatprep.subr.mxu0 %v162
    %2012 = vmatpush1.msra.mxu0 %v161
    %2013 = vmatprep.subr.mxu0 %v158
    %2014 = vmatpush1.msra.mxu0 %v157
    %2015 = vmatprep.subr.mxu0 %v154
    %2016 = vmatpush1.msra.mxu0 %v153
    %2017 = vmatprep.subr.mxu0 %v150
    %2018 = vmatpush1.msra.mxu0 %v149
    %2019 = vmatprep.subr.mxu0 %v146
    %2020 = vmatpush1.msra.mxu0 %v145
    %2021 = vmatprep.subr.mxu0 0.0
    %2022 = vmatpush2.msra.mxu0 0.0
    %2023 = vmatprep.subr.mxu0 0.0
    %2024 = vmatpush2.msra.mxu0 0.0
    %2025 = vmatprep.subr.mxu0 0.0
    %2026 = vmatpush2.msra.mxu0 0.0
    %2027 = vmatprep.subr.mxu0 0.0
    %2028 = vmatpush2.msra.mxu0 0.0
    %2029 = vmatprep.subr.mxu0 0.0
    %2030 = vmatpush2.msra.mxu0 0.0
    %2031 = vmatprep.subr.mxu0 0.0
    %2032 = vmatpush2.msra.mxu0 0.0
    %2033 = vmatprep.subr.mxu0 0.0
    %2034 = vmatpush2.msra.mxu0 0.0
    %2035 = vmatprep.subr.mxu0 0.0
    %2036 = vmatpush2.msra.mxu0 0.0
    %2037 = vmatprep.subr.mxu0 0.0
    %2038 = vmatpush2.msra.mxu0 0.0
    %2039 = vmatprep.subr.mxu0 0.0
    %2040 = vmatpush2.msra.mxu0 0.0
    %2041 = vmatprep.subr.mxu0 0.0
    %2042 = vmatpush2.msra.mxu0 0.0
    %2043 = vmatprep.subr.mxu0 0.0
    %2044 = vmatpush2.msra.mxu0 0.0
    %2045 = vmatprep.subr.mxu0 0.0
    %2046 = vmatpush2.msra.mxu0 0.0
    %2047 = vmatprep.subr.mxu0 0.0
    %2048 = vmatpush2.msra.mxu0 0.0
    %2049 = vmatprep.subr.mxu0 0.0
    %2050 = vmatpush2.msra.mxu0 0.0
    %2051 = vmatprep.subr.mxu0 0.0
    %2052 = vmatpush2.msra.mxu0 0.0
    %2053 = vmatprep.mubr.f32.mxu0 0.0
    %2054 = vmatmul.mubr.f32.gmra.mxu0 %v1916
    %v2055 = vpop.f32.mrf.mxu0
    %v2056 = vadd.f32 %v1908, %v2055
    %v2057 = vpop.f32.mrf.mxu0
    %v2058 = vadd.f32 %v1910, %v2057
    %2059 = vdwg.mxu0
    %v2060 = vadd.f32 %v1985, %v964
    %v2061 = vadd.f32 %v1987, %v968
    %v2062 = vadd.f32 %v2056, %v972
    %v2063 = vadd.f32 %v2058, %v976
    %v2064 = vxor.u32 %v2060, 2147483648
    %v2065 = vmul.f32 %v2064, 1.442695
    %v2066 = vpow.pop %v2065
    %v2067 = vadd.f32 %v2066, 1.0
    %v2068 = vrcp.pop %v2067
    %v2069 = vmul.f32 1.0, %v2068
    %v2070 = vxor.u32 %v2061, 2147483648
    %v2071 = vmul.f32 %v2070, 1.442695
    %v2072 = vpow.pop %v2071
    %v2073 = vadd.f32 %v2072, 1.0
    %v2074 = vrcp.pop %v2073
    %v2075 = vmul.f32 1.0, %v2074
    %v2076 = vtanh.pop %v2062
    %v2077 = vxor.u32 %v2063, 2147483648
    %v2078 = vmul.f32 %v2077, 1.442695
    %v2079 = vpow.pop %v2078
    %v2080 = vadd.f32 %v2079, 1.0
    %v2081 = vrcp.pop %v2080
    %v2082 = vmul.f32 1.0, %v2081
    %v2083 = vmul.f32 %v2075, %v1543
    %v2084 = vmul.f32 %v2069, %v2076
    %v2085 = vadd.f32 %v2083, %v2084
    %v2086 = vtanh.pop %v2085
    %v2087 = vmul.f32 %v2082, %v2086
    %2088 = vmatprep.subr.mxu0 %v139
    %2089 = vmatpush1.msra.mxu0 %v138
    %2090 = vmatprep.subr.mxu0 %v135
    %2091 = vmatpush1.msra.mxu0 %v134
    %2092 = vmatprep.subr.mxu0 %v131
    %2093 = vmatpush1.msra.mxu0 %v130
    %2094 = vmatprep.subr.mxu0 %v127
    %2095 = vmatpush1.msra.mxu0 %v126
    %2096 = vmatprep.subr.mxu0 %v123
    %2097 = vmatpush1.msra.mxu0 %v122
    %2098 = vmatprep.subr.mxu0 %v119
    %2099 = vmatpush1.msra.mxu0 %v118
    %2100 = vmatprep.subr.mxu0 %v115
    %2101 = vmatpush1.msra.mxu0 %v114
    %2102 = vmatprep.subr.mxu0 %v111
    %2103 = vmatpush1.msra.mxu0 %v110
    %2104 = vmatprep.subr.mxu0 %v107
    %2105 = vmatpush1.msra.mxu0 %v106
    %2106 = vmatprep.subr.mxu0 %v103
    %2107 = vmatpush1.msra.mxu0 %v102
    %2108 = vmatprep.subr.mxu0 %v99
    %2109 = vmatpush1.msra.mxu0 %v98
    %2110 = vmatprep.subr.mxu0 %v95
    %2111 = vmatpush1.msra.mxu0 %v94
    %2112 = vmatprep.subr.mxu0 %v91
    %2113 = vmatpush1.msra.mxu0 %v90
    %2114 = vmatprep.subr.mxu0 %v87
    %2115 = vmatpush1.msra.mxu0 %v86
    %2116 = vmatprep.subr.mxu0 %v83
    %2117 = vmatpush1.msra.mxu0 %v82
    %2118 = vmatprep.subr.mxu0 %v79
    %2119 = vmatpush1.msra.mxu0 %v78
    %2120 = vmatprep.subr.mxu0 0.0
    %2121 = vmatpush2.msra.mxu0 0.0
    %2122 = vmatprep.subr.mxu0 0.0
    %2123 = vmatpush2.msra.mxu0 0.0
    %2124 = vmatprep.subr.mxu0 0.0
    %2125 = vmatpush2.msra.mxu0 0.0
    %2126 = vmatprep.subr.mxu0 0.0
    %2127 = vmatpush2.msra.mxu0 0.0
    %2128 = vmatprep.subr.mxu0 0.0
    %2129 = vmatpush2.msra.mxu0 0.0
    %2130 = vmatprep.subr.mxu0 0.0
    %2131 = vmatpush2.msra.mxu0 0.0
    %2132 = vmatprep.subr.mxu0 0.0
    %2133 = vmatpush2.msra.mxu0 0.0
    %2134 = vmatprep.subr.mxu0 0.0
    %2135 = vmatpush2.msra.mxu0 0.0
    %2136 = vmatprep.subr.mxu0 0.0
    %2137 = vmatpush2.msra.mxu0 0.0
    %2138 = vmatprep.subr.mxu0 0.0
    %2139 = vmatpush2.msra.mxu0 0.0
    %2140 = vmatprep.subr.mxu0 0.0
    %2141 = vmatpush2.msra.mxu0 0.0
    %2142 = vmatprep.subr.mxu0 0.0
    %2143 = vmatpush2.msra.mxu0 0.0
    %2144 = vmatprep.subr.mxu0 0.0
    %2145 = vmatpush2.msra.mxu0 0.0
    %2146 = vmatprep.subr.mxu0 0.0
    %2147 = vmatpush2.msra.mxu0 0.0
    %2148 = vmatprep.subr.mxu0 0.0
    %2149 = vmatpush2.msra.mxu0 0.0
    %2150 = vmatprep.subr.mxu0 0.0
    %2151 = vmatpush2.msra.mxu0 0.0
    %2152 = vmatprep.mubr.f32.mxu0 0.0
    %2153 = vmatmul.mubr.f32.gmra.mxu0 %v1916
    %v2154 = vpop.f32.mrf.mxu0
    %v2155 = vadd.f32 0.0, %v2154
    %v2156 = vpop.f32.mrf.mxu0
    %v2157 = vadd.f32 0.0, %v2156
    %2158 = vdwg.mxu0
    %2159 = vmatprep.subr.mxu0 %v141
    %2160 = vmatpush1.msra.mxu0 %v140
    %2161 = vmatprep.subr.mxu0 %v137
    %2162 = vmatpush1.msra.mxu0 %v136
    %2163 = vmatprep.subr.mxu0 %v133
    %2164 = vmatpush1.msra.mxu0 %v132
    %2165 = vmatprep.subr.mxu0 %v129
    %2166 = vmatpush1.msra.mxu0 %v128
    %2167 = vmatprep.subr.mxu0 %v125
    %2168 = vmatpush1.msra.mxu0 %v124
    %2169 = vmatprep.subr.mxu0 %v121
    %2170 = vmatpush1.msra.mxu0 %v120
    %2171 = vmatprep.subr.mxu0 %v117
    %2172 = vmatpush1.msra.mxu0 %v116
    %2173 = vmatprep.subr.mxu0 %v113
    %2174 = vmatpush1.msra.mxu0 %v112
    %2175 = vmatprep.subr.mxu0 %v109
    %2176 = vmatpush1.msra.mxu0 %v108
    %2177 = vmatprep.subr.mxu0 %v105
    %2178 = vmatpush1.msra.mxu0 %v104
    %2179 = vmatprep.subr.mxu0 %v101
    %2180 = vmatpush1.msra.mxu0 %v100
    %2181 = vmatprep.subr.mxu0 %v97
    %2182 = vmatpush1.msra.mxu0 %v96
    %2183 = vmatprep.subr.mxu0 %v93
    %2184 = vmatpush1.msra.mxu0 %v92
    %2185 = vmatprep.subr.mxu0 %v89
    %2186 = vmatpush1.msra.mxu0 %v88
    %2187 = vmatprep.subr.mxu0 %v85
    %2188 = vmatpush1.msra.mxu0 %v84
    %2189 = vmatprep.subr.mxu0 %v81
    %2190 = vmatpush1.msra.mxu0 %v80
    %2191 = vmatprep.subr.mxu0 0.0
    %2192 = vmatpush2.msra.mxu0 0.0
    %2193 = vmatprep.subr.mxu0 0.0
    %2194 = vmatpush2.msra.mxu0 0.0
    %2195 = vmatprep.subr.mxu0 0.0
    %2196 = vmatpush2.msra.mxu0 0.0
    %2197 = vmatprep.subr.mxu0 0.0
    %2198 = vmatpush2.msra.mxu0 0.0
    %2199 = vmatprep.subr.mxu0 0.0
    %2200 = vmatpush2.msra.mxu0 0.0
    %2201 = vmatprep.subr.mxu0 0.0
    %2202 = vmatpush2.msra.mxu0 0.0
    %2203 = vmatprep.subr.mxu0 0.0
    %2204 = vmatpush2.msra.mxu0 0.0
    %2205 = vmatprep.subr.mxu0 0.0
    %2206 = vmatpush2.msra.mxu0 0.0
    %2207 = vmatprep.subr.mxu0 0.0
    %2208 = vmatpush2.msra.mxu0 0.0
    %2209 = vmatprep.subr.mxu0 0.0
    %2210 = vmatpush2.msra.mxu0 0.0
    %2211 = vmatprep.subr.mxu0 0.0
    %2212 = vmatpush2.msra.mxu0 0.0
    %2213 = vmatprep.subr.mxu0 0.0
    %2214 = vmatpush2.msra.mxu0 0.0
    %2215 = vmatprep.subr.mxu0 0.0
    %2216 = vmatpush2.msra.mxu0 0.0
    %2217 = vmatprep.subr.mxu0 0.0
    %2218 = vmatpush2.msra.mxu0 0.0
    %2219 = vmatprep.subr.mxu0 0.0
    %2220 = vmatpush2.msra.mxu0 0.0
    %2221 = vmatprep.subr.mxu0 0.0
    %2222 = vmatpush2.msra.mxu0 0.0
    %2223 = vmatprep.mubr.f32.mxu0 0.0
    %2224 = vmatmul.mubr.f32.gmra.mxu0 %v1916
    %v2225 = vpop.f32.mrf.mxu0
    %v2226 = vadd.f32 0.0, %v2225
    %v2227 = vpop.f32.mrf.mxu0
    %v2228 = vadd.f32 0.0, %v2227
    %2229 = vdwg.mxu0
    %v2234 = vrot.slane %v2155, 5
    %v2235 = vrot.slane %v2157, 5
    %v2236 = vrot.slane %v2226, 5
    %v2237 = vrot.slane %v2228, 5
    %v2238 = vrot.slane %v2155, 6
    %v2239 = vrot.slane %v2157, 6
    %v2240 = vrot.slane %v2226, 6
    %v2241 = vrot.slane %v2228, 6
    %v2250 = vadd.f32 %v369, %v2234
    %v2251 = vadd.f32 %v371, %v2235
    %v2252 = vadd.f32 %v446, %v2236
    %v2253 = vadd.f32 %v448, %v2237
    %v2254 = vadd.f32 %v375, %v2238
    %v2255 = vadd.f32 %v377, %v2239
    %v2256 = vadd.f32 %v452, %v2240
    %v2257 = vadd.f32 %v454, %v2241
    %v2258 = vxor.u32 %v2250, 2147483648
    %v2259 = vxor.u32 %v2254, 2147483648
    %v2260 = vmul.f32 %v2258, 1.442695
    %v2261 = vpow.pop %v2260
    %v2262 = vmul.f32 %v2259, 1.442695
    %v2263 = vpow.pop %v2262
    %v2264 = vadd.f32 %v2261, 1.0
    %v2265 = vadd.f32 %v2263, 1.0
    %v2266 = vrcp.pop %v2264
    %v2267 = vmul.f32 1.0, %v2266
    %v2268 = vrcp.pop %v2265
    %v2269 = vmul.f32 1.0, %v2268
    %v2270 = vxor.u32 %v2251, 2147483648
    %v2271 = vxor.u32 %v2255, 2147483648
    %v2272 = vmul.f32 %v2270, 1.442695
    %v2273 = vpow.pop %v2272
    %v2274 = vmul.f32 %v2271, 1.442695
    %v2275 = vpow.pop %v2274
    %v2276 = vadd.f32 %v2273, 1.0
    %v2277 = vadd.f32 %v2275, 1.0
    %v2278 = vrcp.pop %v2276
    %v2279 = vmul.f32 1.0, %v2278
    %v2280 = vrcp.pop %v2277
    %v2281 = vmul.f32 1.0, %v2280
    %v2282 = vtanh.pop %v2252
    %v2283 = vtanh.pop %v2256
    %v2284 = vxor.u32 %v2253, 2147483648
    %v2285 = vxor.u32 %v2257, 2147483648
    %v2286 = vmul.f32 %v2284, 1.442695
    %v2287 = vpow.pop %v2286
    %v2288 = vmul.f32 %v2285, 1.442695
    %v2289 = vpow.pop %v2288
    %v2290 = vadd.f32 %v2287, 1.0
    %v2291 = vadd.f32 %v2289, 1.0
    %v2292 = vrcp.pop %v2290
    %v2293 = vmul.f32 1.0, %v2292
    %v2294 = vrcp.pop %v2291
    %v2295 = vmul.f32 1.0, %v2294
    %v2298 = vrot.slane %v1764, 7
    %v2299 = vrot.slane %v1765, 7
    %v2302 = vmul.f32 %v2279, %v2298
    %v2303 = vmul.f32 %v2281, %v2299
    %v2304 = vmul.f32 %v2267, %v2282
    %v2305 = vmul.f32 %v2269, %v2283
    %v2306 = vadd.f32 %v2302, %v2304
    %v2307 = vadd.f32 %v2303, %v2305
    %v2308 = vtanh.pop %v2306
    %v2309 = vtanh.pop %v2307
    %v2310 = vmul.f32 %v2293, %v2308
    %v2311 = vmul.f32 %v2295, %v2309
    %2312 = vmatprep.subr.mxu0 %v268
    %2313 = vmatpush1.msra.mxu0 %v267
    %2314 = vmatprep.subr.mxu0 %v264
    %2315 = vmatpush1.msra.mxu0 %v263
    %2316 = vmatprep.subr.mxu0 %v260
    %2317 = vmatpush1.msra.mxu0 %v259
    %2318 = vmatprep.subr.mxu0 %v256
    %2319 = vmatpush1.msra.mxu0 %v255
    %2320 = vmatprep.subr.mxu0 %v252
    %2321 = vmatpush1.msra.mxu0 %v251
    %2322 = vmatprep.subr.mxu0 %v248
    %2323 = vmatpush1.msra.mxu0 %v247
    %2324 = vmatprep.subr.mxu0 %v244
    %2325 = vmatpush1.msra.mxu0 %v243
    %2326 = vmatprep.subr.mxu0 %v240
    %2327 = vmatpush1.msra.mxu0 %v239
    %2328 = vmatprep.subr.mxu0 %v236
    %2329 = vmatpush1.msra.mxu0 %v235
    %2330 = vmatprep.subr.mxu0 %v232
    %2331 = vmatpush1.msra.mxu0 %v231
    %2332 = vmatprep.subr.mxu0 %v228
    %2333 = vmatpush1.msra.mxu0 %v227
    %2334 = vmatprep.subr.mxu0 %v224
    %2335 = vmatpush1.msra.mxu0 %v223
    %2336 = vmatprep.subr.mxu0 %v220
    %2337 = vmatpush1.msra.mxu0 %v219
    %2338 = vmatprep.subr.mxu0 %v216
    %2339 = vmatpush1.msra.mxu0 %v215
    %2340 = vmatprep.subr.mxu0 %v212
    %2341 = vmatpush1.msra.mxu0 %v211
    %2342 = vmatprep.subr.mxu0 %v208
    %2343 = vmatpush1.msra.mxu0 %v207
    %2344 = vmatprep.subr.mxu0 0.0
    %2345 = vmatpush2.msra.mxu0 0.0
    %2346 = vmatprep.subr.mxu0 0.0
    %2347 = vmatpush2.msra.mxu0 0.0
    %2348 = vmatprep.subr.mxu0 0.0
    %2349 = vmatpush2.msra.mxu0 0.0
    %2350 = vmatprep.subr.mxu0 0.0
    %2351 = vmatpush2.msra.mxu0 0.0
    %2352 = vmatprep.subr.mxu0 0.0
    %2353 = vmatpush2.msra.mxu0 0.0
    %2354 = vmatprep.subr.mxu0 0.0
    %2355 = vmatpush2.msra.mxu0 0.0
    %2356 = vmatprep.subr.mxu0 0.0
    %2357 = vmatpush2.msra.mxu0 0.0
    %2358 = vmatprep.subr.mxu0 0.0
    %2359 = vmatpush2.msra.mxu0 0.0
    %2360 = vmatprep.subr.mxu0 0.0
    %2361 = vmatpush2.msra.mxu0 0.0
    %2362 = vmatprep.subr.mxu0 0.0
    %2363 = vmatpush2.msra.mxu0 0.0
    %2364 = vmatprep.subr.mxu0 0.0
    %2365 = vmatpush2.msra.mxu0 0.0
    %2366 = vmatprep.subr.mxu0 0.0
    %2367 = vmatpush2.msra.mxu0 0.0
    %2368 = vmatprep.subr.mxu0 0.0
    %2369 = vmatpush2.msra.mxu0 0.0
    %2370 = vmatprep.subr.mxu0 0.0
    %2371 = vmatpush2.msra.mxu0 0.0
    %2372 = vmatprep.subr.mxu0 0.0
    %2373 = vmatpush2.msra.mxu0 0.0
    %2374 = vmatprep.subr.mxu0 0.0
    %2375 = vmatpush2.msra.mxu0 0.0
    %2376 = vmatprep.mubr.f32.mxu0 0.0
    %2377 = vmatmul.mubr.f32.gmra.mxu0 %v2087
    %v2378 = vpop.f32.mrf.mxu0
    %v2379 = vadd.f32 0.0, %v2378
    %v2380 = vpop.f32.mrf.mxu0
    %v2381 = vadd.f32 0.0, %v2380
    %2382 = vdwg.mxu0
    %2383 = vmatprep.subr.mxu0 %v270
    %2384 = vmatpush1.msra.mxu0 %v269
    %2385 = vmatprep.subr.mxu0 %v266
    %2386 = vmatpush1.msra.mxu0 %v265
    %2387 = vmatprep.subr.mxu0 %v262
    %2388 = vmatpush1.msra.mxu0 %v261
    %2389 = vmatprep.subr.mxu0 %v258
    %2390 = vmatpush1.msra.mxu0 %v257
    %2391 = vmatprep.subr.mxu0 %v254
    %2392 = vmatpush1.msra.mxu0 %v253
    %2393 = vmatprep.subr.mxu0 %v250
    %2394 = vmatpush1.msra.mxu0 %v249
    %2395 = vmatprep.subr.mxu0 %v246
    %2396 = vmatpush1.msra.mxu0 %v245
    %2397 = vmatprep.subr.mxu0 %v242
    %2398 = vmatpush1.msra.mxu0 %v241
    %2399 = vmatprep.subr.mxu0 %v238
    %2400 = vmatpush1.msra.mxu0 %v237
    %2401 = vmatprep.subr.mxu0 %v234
    %2402 = vmatpush1.msra.mxu0 %v233
    %2403 = vmatprep.subr.mxu0 %v230
    %2404 = vmatpush1.msra.mxu0 %v229
    %2405 = vmatprep.subr.mxu0 %v226
    %2406 = vmatpush1.msra.mxu0 %v225
    %2407 = vmatprep.subr.mxu0 %v222
    %2408 = vmatpush1.msra.mxu0 %v221
    %2409 = vmatprep.subr.mxu0 %v218
    %2410 = vmatpush1.msra.mxu0 %v217
    %2411 = vmatprep.subr.mxu0 %v214
    %2412 = vmatpush1.msra.mxu0 %v213
    %2413 = vmatprep.subr.mxu0 %v210
    %2414 = vmatpush1.msra.mxu0 %v209
    %2415 = vmatprep.subr.mxu0 0.0
    %2416 = vmatpush2.msra.mxu0 0.0
    %2417 = vmatprep.subr.mxu0 0.0
    %2418 = vmatpush2.msra.mxu0 0.0
    %2419 = vmatprep.subr.mxu0 0.0
    %2420 = vmatpush2.msra.mxu0 0.0
    %2421 = vmatprep.subr.mxu0 0.0
    %2422 = vmatpush2.msra.mxu0 0.0
    %2423 = vmatprep.subr.mxu0 0.0
    %2424 = vmatpush2.msra.mxu0 0.0
    %2425 = vmatprep.subr.mxu0 0.0
    %2426 = vmatpush2.msra.mxu0 0.0
    %2427 = vmatprep.subr.mxu0 0.0
    %2428 = vmatpush2.msra.mxu0 0.0
    %2429 = vmatprep.subr.mxu0 0.0
    %2430 = vmatpush2.msra.mxu0 0.0
    %2431 = vmatprep.subr.mxu0 0.0
    %2432 = vmatpush2.msra.mxu0 0.0
    %2433 = vmatprep.subr.mxu0 0.0
    %2434 = vmatpush2.msra.mxu0 0.0
    %2435 = vmatprep.subr.mxu0 0.0
    %2436 = vmatpush2.msra.mxu0 0.0
    %2437 = vmatprep.subr.mxu0 0.0
    %2438 = vmatpush2.msra.mxu0 0.0
    %2439 = vmatprep.subr.mxu0 0.0
    %2440 = vmatpush2.msra.mxu0 0.0
    %2441 = vmatprep.subr.mxu0 0.0
    %2442 = vmatpush2.msra.mxu0 0.0
    %2443 = vmatprep.subr.mxu0 0.0
    %2444 = vmatpush2.msra.mxu0 0.0
    %2445 = vmatprep.subr.mxu0 0.0
    %2446 = vmatpush2.msra.mxu0 0.0
    %2447 = vmatprep.mubr.f32.mxu0 0.0
    %2448 = vmatmul.mubr.f32.gmra.mxu0 %v2087
    %v2449 = vpop.f32.mrf.mxu0
    %v2450 = vadd.f32 0.0, %v2449
    %v2451 = vpop.f32.mrf.mxu0
    %v2452 = vadd.f32 0.0, %v2451
    %2453 = vdwg.mxu0
    %v2456 = vrot.slane %v2310, 3
    %v2457 = vrot.slane %v2311, 2
    %v2458 = vsel %vm815, %v2457, %v2456
    %2460 = vmatprep.subr.mxu0 %v204
    %2461 = vmatpush1.msra.mxu0 %v203
    %2462 = vmatprep.subr.mxu0 %v200
    %2463 = vmatpush1.msra.mxu0 %v199
    %2464 = vmatprep.subr.mxu0 %v196
    %2465 = vmatpush1.msra.mxu0 %v195
    %2466 = vmatprep.subr.mxu0 %v192
    %2467 = vmatpush1.msra.mxu0 %v191
    %2468 = vmatprep.subr.mxu0 %v188
    %2469 = vmatpush1.msra.mxu0 %v187
    %2470 = vmatprep.subr.mxu0 %v184
    %2471 = vmatpush1.msra.mxu0 %v183
    %2472 = vmatprep.subr.mxu0 %v180
    %2473 = vmatpush1.msra.mxu0 %v179
    %2474 = vmatprep.subr.mxu0 %v176
    %2475 = vmatpush1.msra.mxu0 %v175
    %2476 = vmatprep.subr.mxu0 %v172
    %2477 = vmatpush1.msra.mxu0 %v171
    %2478 = vmatprep.subr.mxu0 %v168
    %2479 = vmatpush1.msra.mxu0 %v167
    %2480 = vmatprep.subr.mxu0 %v164
    %2481 = vmatpush1.msra.mxu0 %v163
    %2482 = vmatprep.subr.mxu0 %v160
    %2483 = vmatpush1.msra.mxu0 %v159
    %2484 = vmatprep.subr.mxu0 %v156
    %2485 = vmatpush1.msra.mxu0 %v155
    %2486 = vmatprep.subr.mxu0 %v152
    %2487 = vmatpush1.msra.mxu0 %v151
    %2488 = vmatprep.subr.mxu0 %v148
    %2489 = vmatpush1.msra.mxu0 %v147
    %2490 = vmatprep.subr.mxu0 %v144
    %2491 = vmatpush1.msra.mxu0 %v143
    %2492 = vmatprep.subr.mxu0 0.0
    %2493 = vmatpush2.msra.mxu0 0.0
    %2494 = vmatprep.subr.mxu0 0.0
    %2495 = vmatpush2.msra.mxu0 0.0
    %2496 = vmatprep.subr.mxu0 0.0
    %2497 = vmatpush2.msra.mxu0 0.0
    %2498 = vmatprep.subr.mxu0 0.0
    %2499 = vmatpush2.msra.mxu0 0.0
    %2500 = vmatprep.subr.mxu0 0.0
    %2501 = vmatpush2.msra.mxu0 0.0
    %2502 = vmatprep.subr.mxu0 0.0
    %2503 = vmatpush2.msra.mxu0 0.0
    %2504 = vmatprep.subr.mxu0 0.0
    %2505 = vmatpush2.msra.mxu0 0.0
    %2506 = vmatprep.subr.mxu0 0.0
    %2507 = vmatpush2.msra.mxu0 0.0
    %2508 = vmatprep.subr.mxu0 0.0
    %2509 = vmatpush2.msra.mxu0 0.0
    %2510 = vmatprep.subr.mxu0 0.0
    %2511 = vmatpush2.msra.mxu0 0.0
    %2512 = vmatprep.subr.mxu0 0.0
    %2513 = vmatpush2.msra.mxu0 0.0
    %2514 = vmatprep.subr.mxu0 0.0
    %2515 = vmatpush2.msra.mxu0 0.0
    %2516 = vmatprep.subr.mxu0 0.0
    %2517 = vmatpush2.msra.mxu0 0.0
    %2518 = vmatprep.subr.mxu0 0.0
    %2519 = vmatpush2.msra.mxu0 0.0
    %2520 = vmatprep.subr.mxu0 0.0
    %2521 = vmatpush2.msra.mxu0 0.0
    %2522 = vmatprep.subr.mxu0 0.0
    %2523 = vmatpush2.msra.mxu0 0.0
    %2524 = vmatprep.mubr.f32.mxu0 0.0
    %2525 = vmatmul.mubr.f32.gmra.mxu0 %v2458
    %v2526 = vpop.f32.mrf.mxu0
    %v2527 = vadd.f32 %v2379, %v2526
    %v2528 = vpop.f32.mrf.mxu0
    %v2529 = vadd.f32 %v2381, %v2528
    %2530 = vdwg.mxu0
    %2531 = vmatprep.subr.mxu0 %v206
    %2532 = vmatpush1.msra.mxu0 %v205
    %2533 = vmatprep.subr.mxu0 %v202
    %2534 = vmatpush1.msra.mxu0 %v201
    %2535 = vmatprep.subr.mxu0 %v198
    %2536 = vmatpush1.msra.mxu0 %v197
    %2537 = vmatprep.subr.mxu0 %v194
    %2538 = vmatpush1.msra.mxu0 %v193
    %2539 = vmatprep.subr.mxu0 %v190
    %2540 = vmatpush1.msra.mxu0 %v189
    %2541 = vmatprep.subr.mxu0 %v186
    %2542 = vmatpush1.msra.mxu0 %v185
    %2543 = vmatprep.subr.mxu0 %v182
    %2544 = vmatpush1.msra.mxu0 %v181
    %2545 = vmatprep.subr.mxu0 %v178
    %2546 = vmatpush1.msra.mxu0 %v177
    %2547 = vmatprep.subr.mxu0 %v174
    %2548 = vmatpush1.msra.mxu0 %v173
    %2549 = vmatprep.subr.mxu0 %v170
    %2550 = vmatpush1.msra.mxu0 %v169
    %2551 = vmatprep.subr.mxu0 %v166
    %2552 = vmatpush1.msra.mxu0 %v165
    %2553 = vmatprep.subr.mxu0 %v162
    %2554 = vmatpush1.msra.mxu0 %v161
    %2555 = vmatprep.subr.mxu0 %v158
    %2556 = vmatpush1.msra.mxu0 %v157
    %2557 = vmatprep.subr.mxu0 %v154
    %2558 = vmatpush1.msra.mxu0 %v153
    %2559 = vmatprep.subr.mxu0 %v150
    %2560 = vmatpush1.msra.mxu0 %v149
    %2561 = vmatprep.subr.mxu0 %v146
    %2562 = vmatpush1.msra.mxu0 %v145
    %2563 = vmatprep.subr.mxu0 0.0
    %2564 = vmatpush2.msra.mxu0 0.0
    %2565 = vmatprep.subr.mxu0 0.0
    %2566 = vmatpush2.msra.mxu0 0.0
    %2567 = vmatprep.subr.mxu0 0.0
    %2568 = vmatpush2.msra.mxu0 0.0
    %2569 = vmatprep.subr.mxu0 0.0
    %2570 = vmatpush2.msra.mxu0 0.0
    %2571 = vmatprep.subr.mxu0 0.0
    %2572 = vmatpush2.msra.mxu0 0.0
    %2573 = vmatprep.subr.mxu0 0.0
    %2574 = vmatpush2.msra.mxu0 0.0
    %2575 = vmatprep.subr.mxu0 0.0
    %2576 = vmatpush2.msra.mxu0 0.0
    %2577 = vmatprep.subr.mxu0 0.0
    %2578 = vmatpush2.msra.mxu0 0.0
    %2579 = vmatprep.subr.mxu0 0.0
    %2580 = vmatpush2.msra.mxu0 0.0
    %2581 = vmatprep.subr.mxu0 0.0
    %2582 = vmatpush2.msra.mxu0 0.0
    %2583 = vmatprep.subr.mxu0 0.0
    %2584 = vmatpush2.msra.mxu0 0.0
    %2585 = vmatprep.subr.mxu0 0.0
    %2586 = vmatpush2.msra.mxu0 0.0
    %2587 = vmatprep.subr.mxu0 0.0
    %2588 = vmatpush2.msra.mxu0 0.0
    %2589 = vmatprep.subr.mxu0 0.0
    %2590 = vmatpush2.msra.mxu0 0.0
    %2591 = vmatprep.subr.mxu0 0.0
    %2592 = vmatpush2.msra.mxu0 0.0
    %2593 = vmatprep.subr.mxu0 0.0
    %2594 = vmatpush2.msra.mxu0 0.0
    %2595 = vmatprep.mubr.f32.mxu0 0.0
    %2596 = vmatmul.mubr.f32.gmra.mxu0 %v2458
    %v2597 = vpop.f32.mrf.mxu0
    %v2598 = vadd.f32 %v2450, %v2597
    %v2599 = vpop.f32.mrf.mxu0
    %v2600 = vadd.f32 %v2452, %v2599
    %2601 = vdwg.mxu0
    %v2602 = vadd.f32 %v2527, %v964
    %v2603 = vadd.f32 %v2529, %v968
    %v2604 = vadd.f32 %v2598, %v972
    %v2605 = vadd.f32 %v2600, %v976
    %v2606 = vxor.u32 %v2602, 2147483648
    %v2607 = vmul.f32 %v2606, 1.442695
    %v2608 = vpow.pop %v2607
    %v2609 = vadd.f32 %v2608, 1.0
    %v2610 = vrcp.pop %v2609
    %v2611 = vmul.f32 1.0, %v2610
    %v2612 = vxor.u32 %v2603, 2147483648
    %v2613 = vmul.f32 %v2612, 1.442695
    %v2614 = vpow.pop %v2613
    %v2615 = vadd.f32 %v2614, 1.0
    %v2616 = vrcp.pop %v2615
    %v2617 = vmul.f32 1.0, %v2616
    %v2618 = vtanh.pop %v2604
    %v2619 = vxor.u32 %v2605, 2147483648
    %v2620 = vmul.f32 %v2619, 1.442695
    %v2621 = vpow.pop %v2620
    %v2622 = vadd.f32 %v2621, 1.0
    %v2623 = vrcp.pop %v2622
    %v2624 = vmul.f32 1.0, %v2623
    %v2625 = vmul.f32 %v2617, %v2085
    %v2626 = vmul.f32 %v2611, %v2618
    %v2627 = vadd.f32 %v2625, %v2626
    %v2628 = vtanh.pop %v2627
    %v2629 = vmul.f32 %v2624, %v2628
    %2630 = vmatprep.subr.mxu0 %v139
    %2631 = vmatpush1.msra.mxu0 %v138
    %2632 = vmatprep.subr.mxu0 %v135
    %2633 = vmatpush1.msra.mxu0 %v134
    %2634 = vmatprep.subr.mxu0 %v131
    %2635 = vmatpush1.msra.mxu0 %v130
    %2636 = vmatprep.subr.mxu0 %v127
    %2637 = vmatpush1.msra.mxu0 %v126
    %2638 = vmatprep.subr.mxu0 %v123
    %2639 = vmatpush1.msra.mxu0 %v122
    %2640 = vmatprep.subr.mxu0 %v119
    %2641 = vmatpush1.msra.mxu0 %v118
    %2642 = vmatprep.subr.mxu0 %v115
    %2643 = vmatpush1.msra.mxu0 %v114
    %2644 = vmatprep.subr.mxu0 %v111
    %2645 = vmatpush1.msra.mxu0 %v110
    %2646 = vmatprep.subr.mxu0 %v107
    %2647 = vmatpush1.msra.mxu0 %v106
    %2648 = vmatprep.subr.mxu0 %v103
    %2649 = vmatpush1.msra.mxu0 %v102
    %2650 = vmatprep.subr.mxu0 %v99
    %2651 = vmatpush1.msra.mxu0 %v98
    %2652 = vmatprep.subr.mxu0 %v95
    %2653 = vmatpush1.msra.mxu0 %v94
    %2654 = vmatprep.subr.mxu0 %v91
    %2655 = vmatpush1.msra.mxu0 %v90
    %2656 = vmatprep.subr.mxu0 %v87
    %2657 = vmatpush1.msra.mxu0 %v86
    %2658 = vmatprep.subr.mxu0 %v83
    %2659 = vmatpush1.msra.mxu0 %v82
    %2660 = vmatprep.subr.mxu0 %v79
    %2661 = vmatpush1.msra.mxu0 %v78
    %2662 = vmatprep.subr.mxu0 0.0
    %2663 = vmatpush2.msra.mxu0 0.0
    %2664 = vmatprep.subr.mxu0 0.0
    %2665 = vmatpush2.msra.mxu0 0.0
    %2666 = vmatprep.subr.mxu0 0.0
    %2667 = vmatpush2.msra.mxu0 0.0
    %2668 = vmatprep.subr.mxu0 0.0
    %2669 = vmatpush2.msra.mxu0 0.0
    %2670 = vmatprep.subr.mxu0 0.0
    %2671 = vmatpush2.msra.mxu0 0.0
    %2672 = vmatprep.subr.mxu0 0.0
    %2673 = vmatpush2.msra.mxu0 0.0
    %2674 = vmatprep.subr.mxu0 0.0
    %2675 = vmatpush2.msra.mxu0 0.0
    %2676 = vmatprep.subr.mxu0 0.0
    %2677 = vmatpush2.msra.mxu0 0.0
    %2678 = vmatprep.subr.mxu0 0.0
    %2679 = vmatpush2.msra.mxu0 0.0
    %2680 = vmatprep.subr.mxu0 0.0
    %2681 = vmatpush2.msra.mxu0 0.0
    %2682 = vmatprep.subr.mxu0 0.0
    %2683 = vmatpush2.msra.mxu0 0.0
    %2684 = vmatprep.subr.mxu0 0.0
    %2685 = vmatpush2.msra.mxu0 0.0
    %2686 = vmatprep.subr.mxu0 0.0
    %2687 = vmatpush2.msra.mxu0 0.0
    %2688 = vmatprep.subr.mxu0 0.0
    %2689 = vmatpush2.msra.mxu0 0.0
    %2690 = vmatprep.subr.mxu0 0.0
    %2691 = vmatpush2.msra.mxu0 0.0
    %2692 = vmatprep.subr.mxu0 0.0
    %2693 = vmatpush2.msra.mxu0 0.0
    %2694 = vmatprep.mubr.f32.mxu0 0.0
    %2695 = vmatmul.mubr.f32.gmra.mxu0 %v2458
    %v2696 = vpop.f32.mrf.mxu0
    %v2697 = vadd.f32 0.0, %v2696
    %v2698 = vpop.f32.mrf.mxu0
    %v2699 = vadd.f32 0.0, %v2698
    %2700 = vdwg.mxu0
    %2701 = vmatprep.subr.mxu0 %v141
    %2702 = vmatpush1.msra.mxu0 %v140
    %2703 = vmatprep.subr.mxu0 %v137
    %2704 = vmatpush1.msra.mxu0 %v136
    %2705 = vmatprep.subr.mxu0 %v133
    %2706 = vmatpush1.msra.mxu0 %v132
    %2707 = vmatprep.subr.mxu0 %v129
    %2708 = vmatpush1.msra.mxu0 %v128
    %2709 = vmatprep.subr.mxu0 %v125
    %2710 = vmatpush1.msra.mxu0 %v124
    %2711 = vmatprep.subr.mxu0 %v121
    %2712 = vmatpush1.msra.mxu0 %v120
    %2713 = vmatprep.subr.mxu0 %v117
    %2714 = vmatpush1.msra.mxu0 %v116
    %2715 = vmatprep.subr.mxu0 %v113
    %2716 = vmatpush1.msra.mxu0 %v112
    %2717 = vmatprep.subr.mxu0 %v109
    %2718 = vmatpush1.msra.mxu0 %v108
    %2719 = vmatprep.subr.mxu0 %v105
    %2720 = vmatpush1.msra.mxu0 %v104
    %2721 = vmatprep.subr.mxu0 %v101
    %2722 = vmatpush1.msra.mxu0 %v100
    %2723 = vmatprep.subr.mxu0 %v97
    %2724 = vmatpush1.msra.mxu0 %v96
    %2725 = vmatprep.subr.mxu0 %v93
    %2726 = vmatpush1.msra.mxu0 %v92
    %2727 = vmatprep.subr.mxu0 %v89
    %2728 = vmatpush1.msra.mxu0 %v88
    %2729 = vmatprep.subr.mxu0 %v85
    %2730 = vmatpush1.msra.mxu0 %v84
    %2731 = vmatprep.subr.mxu0 %v81
    %2732 = vmatpush1.msra.mxu0 %v80
    %2733 = vmatprep.subr.mxu0 0.0
    %2734 = vmatpush2.msra.mxu0 0.0
    %2735 = vmatprep.subr.mxu0 0.0
    %2736 = vmatpush2.msra.mxu0 0.0
    %2737 = vmatprep.subr.mxu0 0.0
    %2738 = vmatpush2.msra.mxu0 0.0
    %2739 = vmatprep.subr.mxu0 0.0
    %2740 = vmatpush2.msra.mxu0 0.0
    %2741 = vmatprep.subr.mxu0 0.0
    %2742 = vmatpush2.msra.mxu0 0.0
    %2743 = vmatprep.subr.mxu0 0.0
    %2744 = vmatpush2.msra.mxu0 0.0
    %2745 = vmatprep.subr.mxu0 0.0
    %2746 = vmatpush2.msra.mxu0 0.0
    %2747 = vmatprep.subr.mxu0 0.0
    %2748 = vmatpush2.msra.mxu0 0.0
    %2749 = vmatprep.subr.mxu0 0.0
    %2750 = vmatpush2.msra.mxu0 0.0
    %2751 = vmatprep.subr.mxu0 0.0
    %2752 = vmatpush2.msra.mxu0 0.0
    %2753 = vmatprep.subr.mxu0 0.0
    %2754 = vmatpush2.msra.mxu0 0.0
    %2755 = vmatprep.subr.mxu0 0.0
    %2756 = vmatpush2.msra.mxu0 0.0
    %2757 = vmatprep.subr.mxu0 0.0
    %2758 = vmatpush2.msra.mxu0 0.0
    %2759 = vmatprep.subr.mxu0 0.0
    %2760 = vmatpush2.msra.mxu0 0.0
    %2761 = vmatprep.subr.mxu0 0.0
    %2762 = vmatpush2.msra.mxu0 0.0
    %2763 = vmatprep.subr.mxu0 0.0
    %2764 = vmatpush2.msra.mxu0 0.0
    %2765 = vmatprep.mubr.f32.mxu0 0.0
    %2766 = vmatmul.mubr.f32.gmra.mxu0 %v2458
    %v2767 = vpop.f32.mrf.mxu0
    %v2768 = vadd.f32 0.0, %v2767
    %v2769 = vpop.f32.mrf.mxu0
    %v2770 = vadd.f32 0.0, %v2769
    %2771 = vdwg.mxu0
    %v2776 = vrot.slane %v2697, 4
    %v2777 = vrot.slane %v2699, 4
    %v2778 = vrot.slane %v2768, 4
    %v2779 = vrot.slane %v2770, 4
    %v2780 = vrot.slane %v2697, 5
    %v2781 = vrot.slane %v2699, 5
    %v2782 = vrot.slane %v2768, 5
    %v2783 = vrot.slane %v2770, 5
    %v2792 = vadd.f32 %v369, %v2776
    %v2793 = vadd.f32 %v371, %v2777
    %v2794 = vadd.f32 %v446, %v2778
    %v2795 = vadd.f32 %v448, %v2779
    %v2796 = vadd.f32 %v375, %v2780
    %v2797 = vadd.f32 %v377, %v2781
    %v2798 = vadd.f32 %v452, %v2782
    %v2799 = vadd.f32 %v454, %v2783
    %v2800 = vxor.u32 %v2792, 2147483648
    %v2801 = vxor.u32 %v2796, 2147483648
    %v2802 = vmul.f32 %v2800, 1.442695
    %v2803 = vpow.pop %v2802
    %v2804 = vmul.f32 %v2801, 1.442695
    %v2805 = vpow.pop %v2804
    %v2806 = vadd.f32 %v2803, 1.0
    %v2807 = vadd.f32 %v2805, 1.0
    %v2808 = vrcp.pop %v2806
    %v2809 = vmul.f32 1.0, %v2808
    %v2810 = vrcp.pop %v2807
    %v2811 = vmul.f32 1.0, %v2810
    %v2812 = vxor.u32 %v2793, 2147483648
    %v2813 = vxor.u32 %v2797, 2147483648
    %v2814 = vmul.f32 %v2812, 1.442695
    %v2815 = vpow.pop %v2814
    %v2816 = vmul.f32 %v2813, 1.442695
    %v2817 = vpow.pop %v2816
    %v2818 = vadd.f32 %v2815, 1.0
    %v2819 = vadd.f32 %v2817, 1.0
    %v2820 = vrcp.pop %v2818
    %v2821 = vmul.f32 1.0, %v2820
    %v2822 = vrcp.pop %v2819
    %v2823 = vmul.f32 1.0, %v2822
    %v2824 = vtanh.pop %v2794
    %v2825 = vtanh.pop %v2798
    %v2826 = vxor.u32 %v2795, 2147483648
    %v2827 = vxor.u32 %v2799, 2147483648
    %v2828 = vmul.f32 %v2826, 1.442695
    %v2829 = vpow.pop %v2828
    %v2830 = vmul.f32 %v2827, 1.442695
    %v2831 = vpow.pop %v2830
    %v2832 = vadd.f32 %v2829, 1.0
    %v2833 = vadd.f32 %v2831, 1.0
    %v2834 = vrcp.pop %v2832
    %v2835 = vmul.f32 1.0, %v2834
    %v2836 = vrcp.pop %v2833
    %v2837 = vmul.f32 1.0, %v2836
    %v2840 = vrot.slane %v2306, 7
    %v2841 = vrot.slane %v2307, 7
    %v2844 = vmul.f32 %v2821, %v2840
    %v2845 = vmul.f32 %v2823, %v2841
    %v2846 = vmul.f32 %v2809, %v2824
    %v2847 = vmul.f32 %v2811, %v2825
    %v2848 = vadd.f32 %v2844, %v2846
    %v2849 = vadd.f32 %v2845, %v2847
    %v2850 = vtanh.pop %v2848
    %v2851 = vtanh.pop %v2849
    %v2852 = vmul.f32 %v2835, %v2850
    %v2853 = vmul.f32 %v2837, %v2851
    %2854 = vmatprep.subr.mxu0 %v268
    %2855 = vmatpush1.msra.mxu0 %v267
    %2856 = vmatprep.subr.mxu0 %v264
    %2857 = vmatpush1.msra.mxu0 %v263
    %2858 = vmatprep.subr.mxu0 %v260
    %2859 = vmatpush1.msra.mxu0 %v259
    %2860 = vmatprep.subr.mxu0 %v256
    %2861 = vmatpush1.msra.mxu0 %v255
    %2862 = vmatprep.subr.mxu0 %v252
    %2863 = vmatpush1.msra.mxu0 %v251
    %2864 = vmatprep.subr.mxu0 %v248
    %2865 = vmatpush1.msra.mxu0 %v247
    %2866 = vmatprep.subr.mxu0 %v244
    %2867 = vmatpush1.msra.mxu0 %v243
    %2868 = vmatprep.subr.mxu0 %v240
    %2869 = vmatpush1.msra.mxu0 %v239
    %2870 = vmatprep.subr.mxu0 %v236
    %2871 = vmatpush1.msra.mxu0 %v235
    %2872 = vmatprep.subr.mxu0 %v232
    %2873 = vmatpush1.msra.mxu0 %v231
    %2874 = vmatprep.subr.mxu0 %v228
    %2875 = vmatpush1.msra.mxu0 %v227
    %2876 = vmatprep.subr.mxu0 %v224
    %2877 = vmatpush1.msra.mxu0 %v223
    %2878 = vmatprep.subr.mxu0 %v220
    %2879 = vmatpush1.msra.mxu0 %v219
    %2880 = vmatprep.subr.mxu0 %v216
    %2881 = vmatpush1.msra.mxu0 %v215
    %2882 = vmatprep.subr.mxu0 %v212
    %2883 = vmatpush1.msra.mxu0 %v211
    %2884 = vmatprep.subr.mxu0 %v208
    %2885 = vmatpush1.msra.mxu0 %v207
    %2886 = vmatprep.subr.mxu0 0.0
    %2887 = vmatpush2.msra.mxu0 0.0
    %2888 = vmatprep.subr.mxu0 0.0
    %2889 = vmatpush2.msra.mxu0 0.0
    %2890 = vmatprep.subr.mxu0 0.0
    %2891 = vmatpush2.msra.mxu0 0.0
    %2892 = vmatprep.subr.mxu0 0.0
    %2893 = vmatpush2.msra.mxu0 0.0
    %2894 = vmatprep.subr.mxu0 0.0
    %2895 = vmatpush2.msra.mxu0 0.0
    %2896 = vmatprep.subr.mxu0 0.0
    %2897 = vmatpush2.msra.mxu0 0.0
    %2898 = vmatprep.subr.mxu0 0.0
    %2899 = vmatpush2.msra.mxu0 0.0
    %2900 = vmatprep.subr.mxu0 0.0
    %2901 = vmatpush2.msra.mxu0 0.0
    %2902 = vmatprep.subr.mxu0 0.0
    %2903 = vmatpush2.msra.mxu0 0.0
    %2904 = vmatprep.subr.mxu0 0.0
    %2905 = vmatpush2.msra.mxu0 0.0
    %2906 = vmatprep.subr.mxu0 0.0
    %2907 = vmatpush2.msra.mxu0 0.0
    %2908 = vmatprep.subr.mxu0 0.0
    %2909 = vmatpush2.msra.mxu0 0.0
    %2910 = vmatprep.subr.mxu0 0.0
    %2911 = vmatpush2.msra.mxu0 0.0
    %2912 = vmatprep.subr.mxu0 0.0
    %2913 = vmatpush2.msra.mxu0 0.0
    %2914 = vmatprep.subr.mxu0 0.0
    %2915 = vmatpush2.msra.mxu0 0.0
    %2916 = vmatprep.subr.mxu0 0.0
    %2917 = vmatpush2.msra.mxu0 0.0
    %2918 = vmatprep.mubr.f32.mxu0 0.0
    %2919 = vmatmul.mubr.f32.gmra.mxu0 %v2629
    %v2920 = vpop.f32.mrf.mxu0
    %v2921 = vadd.f32 0.0, %v2920
    %v2922 = vpop.f32.mrf.mxu0
    %v2923 = vadd.f32 0.0, %v2922
    %2924 = vdwg.mxu0
    %2925 = vmatprep.subr.mxu0 %v270
    %2926 = vmatpush1.msra.mxu0 %v269
    %2927 = vmatprep.subr.mxu0 %v266
    %2928 = vmatpush1.msra.mxu0 %v265
    %2929 = vmatprep.subr.mxu0 %v262
    %2930 = vmatpush1.msra.mxu0 %v261
    %2931 = vmatprep.subr.mxu0 %v258
    %2932 = vmatpush1.msra.mxu0 %v257
    %2933 = vmatprep.subr.mxu0 %v254
    %2934 = vmatpush1.msra.mxu0 %v253
    %2935 = vmatprep.subr.mxu0 %v250
    %2936 = vmatpush1.msra.mxu0 %v249
    %2937 = vmatprep.subr.mxu0 %v246
    %2938 = vmatpush1.msra.mxu0 %v245
    %2939 = vmatprep.subr.mxu0 %v242
    %2940 = vmatpush1.msra.mxu0 %v241
    %2941 = vmatprep.subr.mxu0 %v238
    %2942 = vmatpush1.msra.mxu0 %v237
    %2943 = vmatprep.subr.mxu0 %v234
    %2944 = vmatpush1.msra.mxu0 %v233
    %2945 = vmatprep.subr.mxu0 %v230
    %2946 = vmatpush1.msra.mxu0 %v229
    %2947 = vmatprep.subr.mxu0 %v226
    %2948 = vmatpush1.msra.mxu0 %v225
    %2949 = vmatprep.subr.mxu0 %v222
    %2950 = vmatpush1.msra.mxu0 %v221
    %2951 = vmatprep.subr.mxu0 %v218
    %2952 = vmatpush1.msra.mxu0 %v217
    %2953 = vmatprep.subr.mxu0 %v214
    %2954 = vmatpush1.msra.mxu0 %v213
    %2955 = vmatprep.subr.mxu0 %v210
    %2956 = vmatpush1.msra.mxu0 %v209
    %2957 = vmatprep.subr.mxu0 0.0
    %2958 = vmatpush2.msra.mxu0 0.0
    %2959 = vmatprep.subr.mxu0 0.0
    %2960 = vmatpush2.msra.mxu0 0.0
    %2961 = vmatprep.subr.mxu0 0.0
    %2962 = vmatpush2.msra.mxu0 0.0
    %2963 = vmatprep.subr.mxu0 0.0
    %2964 = vmatpush2.msra.mxu0 0.0
    %2965 = vmatprep.subr.mxu0 0.0
    %2966 = vmatpush2.msra.mxu0 0.0
    %2967 = vmatprep.subr.mxu0 0.0
    %2968 = vmatpush2.msra.mxu0 0.0
    %2969 = vmatprep.subr.mxu0 0.0
    %2970 = vmatpush2.msra.mxu0 0.0
    %2971 = vmatprep.subr.mxu0 0.0
    %2972 = vmatpush2.msra.mxu0 0.0
    %2973 = vmatprep.subr.mxu0 0.0
    %2974 = vmatpush2.msra.mxu0 0.0
    %2975 = vmatprep.subr.mxu0 0.0
    %2976 = vmatpush2.msra.mxu0 0.0
    %2977 = vmatprep.subr.mxu0 0.0
    %2978 = vmatpush2.msra.mxu0 0.0
    %2979 = vmatprep.subr.mxu0 0.0
    %2980 = vmatpush2.msra.mxu0 0.0
    %2981 = vmatprep.subr.mxu0 0.0
    %2982 = vmatpush2.msra.mxu0 0.0
    %2983 = vmatprep.subr.mxu0 0.0
    %2984 = vmatpush2.msra.mxu0 0.0
    %2985 = vmatprep.subr.mxu0 0.0
    %2986 = vmatpush2.msra.mxu0 0.0
    %2987 = vmatprep.subr.mxu0 0.0
    %2988 = vmatpush2.msra.mxu0 0.0
    %2989 = vmatprep.mubr.f32.mxu0 0.0
    %2990 = vmatmul.mubr.f32.gmra.mxu0 %v2629
    %v2991 = vpop.f32.mrf.mxu0
    %v2992 = vadd.f32 0.0, %v2991
    %v2993 = vpop.f32.mrf.mxu0
    %v2994 = vadd.f32 0.0, %v2993
    %2995 = vdwg.mxu0
    %v2998 = vrot.slane %v2852, 4
    %v2999 = vrot.slane %v2853, 3
    %v3000 = vsel %vm815, %v2999, %v2998
    %3002 = vmatprep.subr.mxu0 %v204
    %3003 = vmatpush1.msra.mxu0 %v203
    %3004 = vmatprep.subr.mxu0 %v200
    %3005 = vmatpush1.msra.mxu0 %v199
    %3006 = vmatprep.subr.mxu0 %v196
    %3007 = vmatpush1.msra.mxu0 %v195
    %3008 = vmatprep.subr.mxu0 %v192
    %3009 = vmatpush1.msra.mxu0 %v191
    %3010 = vmatprep.subr.mxu0 %v188
    %3011 = vmatpush1.msra.mxu0 %v187
    %3012 = vmatprep.subr.mxu0 %v184
    %3013 = vmatpush1.msra.mxu0 %v183
    %3014 = vmatprep.subr.mxu0 %v180
    %3015 = vmatpush1.msra.mxu0 %v179
    %3016 = vmatprep.subr.mxu0 %v176
    %3017 = vmatpush1.msra.mxu0 %v175
    %3018 = vmatprep.subr.mxu0 %v172
    %3019 = vmatpush1.msra.mxu0 %v171
    %3020 = vmatprep.subr.mxu0 %v168
    %3021 = vmatpush1.msra.mxu0 %v167
    %3022 = vmatprep.subr.mxu0 %v164
    %3023 = vmatpush1.msra.mxu0 %v163
    %3024 = vmatprep.subr.mxu0 %v160
    %3025 = vmatpush1.msra.mxu0 %v159
    %3026 = vmatprep.subr.mxu0 %v156
    %3027 = vmatpush1.msra.mxu0 %v155
    %3028 = vmatprep.subr.mxu0 %v152
    %3029 = vmatpush1.msra.mxu0 %v151
    %3030 = vmatprep.subr.mxu0 %v148
    %3031 = vmatpush1.msra.mxu0 %v147
    %3032 = vmatprep.subr.mxu0 %v144
    %3033 = vmatpush1.msra.mxu0 %v143
    %3034 = vmatprep.subr.mxu0 0.0
    %3035 = vmatpush2.msra.mxu0 0.0
    %3036 = vmatprep.subr.mxu0 0.0
    %3037 = vmatpush2.msra.mxu0 0.0
    %3038 = vmatprep.subr.mxu0 0.0
    %3039 = vmatpush2.msra.mxu0 0.0
    %3040 = vmatprep.subr.mxu0 0.0
    %3041 = vmatpush2.msra.mxu0 0.0
    %3042 = vmatprep.subr.mxu0 0.0
    %3043 = vmatpush2.msra.mxu0 0.0
    %3044 = vmatprep.subr.mxu0 0.0
    %3045 = vmatpush2.msra.mxu0 0.0
    %3046 = vmatprep.subr.mxu0 0.0
    %3047 = vmatpush2.msra.mxu0 0.0
    %3048 = vmatprep.subr.mxu0 0.0
    %3049 = vmatpush2.msra.mxu0 0.0
    %3050 = vmatprep.subr.mxu0 0.0
    %3051 = vmatpush2.msra.mxu0 0.0
    %3052 = vmatprep.subr.mxu0 0.0
    %3053 = vmatpush2.msra.mxu0 0.0
    %3054 = vmatprep.subr.mxu0 0.0
    %3055 = vmatpush2.msra.mxu0 0.0
    %3056 = vmatprep.subr.mxu0 0.0
    %3057 = vmatpush2.msra.mxu0 0.0
    %3058 = vmatprep.subr.mxu0 0.0
    %3059 = vmatpush2.msra.mxu0 0.0
    %3060 = vmatprep.subr.mxu0 0.0
    %3061 = vmatpush2.msra.mxu0 0.0
    %3062 = vmatprep.subr.mxu0 0.0
    %3063 = vmatpush2.msra.mxu0 0.0
    %3064 = vmatprep.subr.mxu0 0.0
    %3065 = vmatpush2.msra.mxu0 0.0
    %3066 = vmatprep.mubr.f32.mxu0 0.0
    %3067 = vmatmul.mubr.f32.gmra.mxu0 %v3000
    %v3068 = vpop.f32.mrf.mxu0
    %v3069 = vadd.f32 %v2921, %v3068
    %v3070 = vpop.f32.mrf.mxu0
    %v3071 = vadd.f32 %v2923, %v3070
    %3072 = vdwg.mxu0
    %3073 = vmatprep.subr.mxu0 %v206
    %3074 = vmatpush1.msra.mxu0 %v205
    %3075 = vmatprep.subr.mxu0 %v202
    %3076 = vmatpush1.msra.mxu0 %v201
    %3077 = vmatprep.subr.mxu0 %v198
    %3078 = vmatpush1.msra.mxu0 %v197
    %3079 = vmatprep.subr.mxu0 %v194
    %3080 = vmatpush1.msra.mxu0 %v193
    %3081 = vmatprep.subr.mxu0 %v190
    %3082 = vmatpush1.msra.mxu0 %v189
    %3083 = vmatprep.subr.mxu0 %v186
    %3084 = vmatpush1.msra.mxu0 %v185
    %3085 = vmatprep.subr.mxu0 %v182
    %3086 = vmatpush1.msra.mxu0 %v181
    %3087 = vmatprep.subr.mxu0 %v178
    %3088 = vmatpush1.msra.mxu0 %v177
    %3089 = vmatprep.subr.mxu0 %v174
    %3090 = vmatpush1.msra.mxu0 %v173
    %3091 = vmatprep.subr.mxu0 %v170
    %3092 = vmatpush1.msra.mxu0 %v169
    %3093 = vmatprep.subr.mxu0 %v166
    %3094 = vmatpush1.msra.mxu0 %v165
    %3095 = vmatprep.subr.mxu0 %v162
    %3096 = vmatpush1.msra.mxu0 %v161
    %3097 = vmatprep.subr.mxu0 %v158
    %3098 = vmatpush1.msra.mxu0 %v157
    %3099 = vmatprep.subr.mxu0 %v154
    %3100 = vmatpush1.msra.mxu0 %v153
    %3101 = vmatprep.subr.mxu0 %v150
    %3102 = vmatpush1.msra.mxu0 %v149
    %3103 = vmatprep.subr.mxu0 %v146
    %3104 = vmatpush1.msra.mxu0 %v145
    %3105 = vmatprep.subr.mxu0 0.0
    %3106 = vmatpush2.msra.mxu0 0.0
    %3107 = vmatprep.subr.mxu0 0.0
    %3108 = vmatpush2.msra.mxu0 0.0
    %3109 = vmatprep.subr.mxu0 0.0
    %3110 = vmatpush2.msra.mxu0 0.0
    %3111 = vmatprep.subr.mxu0 0.0
    %3112 = vmatpush2.msra.mxu0 0.0
    %3113 = vmatprep.subr.mxu0 0.0
    %3114 = vmatpush2.msra.mxu0 0.0
    %3115 = vmatprep.subr.mxu0 0.0
    %3116 = vmatpush2.msra.mxu0 0.0
    %3117 = vmatprep.subr.mxu0 0.0
    %3118 = vmatpush2.msra.mxu0 0.0
    %3119 = vmatprep.subr.mxu0 0.0
    %3120 = vmatpush2.msra.mxu0 0.0
    %3121 = vmatprep.subr.mxu0 0.0
    %3122 = vmatpush2.msra.mxu0 0.0
    %3123 = vmatprep.subr.mxu0 0.0
    %3124 = vmatpush2.msra.mxu0 0.0
    %3125 = vmatprep.subr.mxu0 0.0
    %3126 = vmatpush2.msra.mxu0 0.0
    %3127 = vmatprep.subr.mxu0 0.0
    %3128 = vmatpush2.msra.mxu0 0.0
    %3129 = vmatprep.subr.mxu0 0.0
    %3130 = vmatpush2.msra.mxu0 0.0
    %3131 = vmatprep.subr.mxu0 0.0
    %3132 = vmatpush2.msra.mxu0 0.0
    %3133 = vmatprep.subr.mxu0 0.0
    %3134 = vmatpush2.msra.mxu0 0.0
    %3135 = vmatprep.subr.mxu0 0.0
    %3136 = vmatpush2.msra.mxu0 0.0
    %3137 = vmatprep.mubr.f32.mxu0 0.0
    %3138 = vmatmul.mubr.f32.gmra.mxu0 %v3000
    %v3139 = vpop.f32.mrf.mxu0
    %v3140 = vadd.f32 %v2992, %v3139
    %v3141 = vpop.f32.mrf.mxu0
    %v3142 = vadd.f32 %v2994, %v3141
    %3143 = vdwg.mxu0
    %v3144 = vadd.f32 %v3069, %v964
    %v3145 = vadd.f32 %v3071, %v968
    %v3146 = vadd.f32 %v3140, %v972
    %v3147 = vadd.f32 %v3142, %v976
    %v3148 = vxor.u32 %v3144, 2147483648
    %v3149 = vmul.f32 %v3148, 1.442695
    %v3150 = vpow.pop %v3149
    %v3151 = vadd.f32 %v3150, 1.0
    %v3152 = vrcp.pop %v3151
    %v3153 = vmul.f32 1.0, %v3152
    %v3154 = vxor.u32 %v3145, 2147483648
    %v3155 = vmul.f32 %v3154, 1.442695
    %v3156 = vpow.pop %v3155
    %v3157 = vadd.f32 %v3156, 1.0
    %v3158 = vrcp.pop %v3157
    %v3159 = vmul.f32 1.0, %v3158
    %v3160 = vtanh.pop %v3146
    %v3161 = vxor.u32 %v3147, 2147483648
    %v3162 = vmul.f32 %v3161, 1.442695
    %v3163 = vpow.pop %v3162
    %v3164 = vadd.f32 %v3163, 1.0
    %v3165 = vrcp.pop %v3164
    %v3166 = vmul.f32 1.0, %v3165
    %v3167 = vmul.f32 %v3159, %v2627
    %v3168 = vmul.f32 %v3153, %v3160
    %v3169 = vadd.f32 %v3167, %v3168
    %v3170 = vtanh.pop %v3169
    %v3171 = vmul.f32 %v3166, %v3170
    %3172 = vmatprep.subr.mxu0 %v139
    %3173 = vmatpush1.msra.mxu0 %v138
    %3174 = vmatprep.subr.mxu0 %v135
    %3175 = vmatpush1.msra.mxu0 %v134
    %3176 = vmatprep.subr.mxu0 %v131
    %3177 = vmatpush1.msra.mxu0 %v130
    %3178 = vmatprep.subr.mxu0 %v127
    %3179 = vmatpush1.msra.mxu0 %v126
    %3180 = vmatprep.subr.mxu0 %v123
    %3181 = vmatpush1.msra.mxu0 %v122
    %3182 = vmatprep.subr.mxu0 %v119
    %3183 = vmatpush1.msra.mxu0 %v118
    %3184 = vmatprep.subr.mxu0 %v115
    %3185 = vmatpush1.msra.mxu0 %v114
    %3186 = vmatprep.subr.mxu0 %v111
    %3187 = vmatpush1.msra.mxu0 %v110
    %3188 = vmatprep.subr.mxu0 %v107
    %3189 = vmatpush1.msra.mxu0 %v106
    %3190 = vmatprep.subr.mxu0 %v103
    %3191 = vmatpush1.msra.mxu0 %v102
    %3192 = vmatprep.subr.mxu0 %v99
    %3193 = vmatpush1.msra.mxu0 %v98
    %3194 = vmatprep.subr.mxu0 %v95
    %3195 = vmatpush1.msra.mxu0 %v94
    %3196 = vmatprep.subr.mxu0 %v91
    %3197 = vmatpush1.msra.mxu0 %v90
    %3198 = vmatprep.subr.mxu0 %v87
    %3199 = vmatpush1.msra.mxu0 %v86
    %3200 = vmatprep.subr.mxu0 %v83
    %3201 = vmatpush1.msra.mxu0 %v82
    %3202 = vmatprep.subr.mxu0 %v79
    %3203 = vmatpush1.msra.mxu0 %v78
    %3204 = vmatprep.subr.mxu0 0.0
    %3205 = vmatpush2.msra.mxu0 0.0
    %3206 = vmatprep.subr.mxu0 0.0
    %3207 = vmatpush2.msra.mxu0 0.0
    %3208 = vmatprep.subr.mxu0 0.0
    %3209 = vmatpush2.msra.mxu0 0.0
    %3210 = vmatprep.subr.mxu0 0.0
    %3211 = vmatpush2.msra.mxu0 0.0
    %3212 = vmatprep.subr.mxu0 0.0
    %3213 = vmatpush2.msra.mxu0 0.0
    %3214 = vmatprep.subr.mxu0 0.0
    %3215 = vmatpush2.msra.mxu0 0.0
    %3216 = vmatprep.subr.mxu0 0.0
    %3217 = vmatpush2.msra.mxu0 0.0
    %3218 = vmatprep.subr.mxu0 0.0
    %3219 = vmatpush2.msra.mxu0 0.0
    %3220 = vmatprep.subr.mxu0 0.0
    %3221 = vmatpush2.msra.mxu0 0.0
    %3222 = vmatprep.subr.mxu0 0.0
    %3223 = vmatpush2.msra.mxu0 0.0
    %3224 = vmatprep.subr.mxu0 0.0
    %3225 = vmatpush2.msra.mxu0 0.0
    %3226 = vmatprep.subr.mxu0 0.0
    %3227 = vmatpush2.msra.mxu0 0.0
    %3228 = vmatprep.subr.mxu0 0.0
    %3229 = vmatpush2.msra.mxu0 0.0
    %3230 = vmatprep.subr.mxu0 0.0
    %3231 = vmatpush2.msra.mxu0 0.0
    %3232 = vmatprep.subr.mxu0 0.0
    %3233 = vmatpush2.msra.mxu0 0.0
    %3234 = vmatprep.subr.mxu0 0.0
    %3235 = vmatpush2.msra.mxu0 0.0
    %3236 = vmatprep.mubr.f32.mxu0 0.0
    %3237 = vmatmul.mubr.f32.gmra.mxu0 %v3000
    %v3238 = vpop.f32.mrf.mxu0
    %v3239 = vadd.f32 0.0, %v3238
    %v3240 = vpop.f32.mrf.mxu0
    %v3241 = vadd.f32 0.0, %v3240
    %3242 = vdwg.mxu0
    %3243 = vmatprep.subr.mxu0 %v141
    %3244 = vmatpush1.msra.mxu0 %v140
    %3245 = vmatprep.subr.mxu0 %v137
    %3246 = vmatpush1.msra.mxu0 %v136
    %3247 = vmatprep.subr.mxu0 %v133
    %3248 = vmatpush1.msra.mxu0 %v132
    %3249 = vmatprep.subr.mxu0 %v129
    %3250 = vmatpush1.msra.mxu0 %v128
    %3251 = vmatprep.subr.mxu0 %v125
    %3252 = vmatpush1.msra.mxu0 %v124
    %3253 = vmatprep.subr.mxu0 %v121
    %3254 = vmatpush1.msra.mxu0 %v120
    %3255 = vmatprep.subr.mxu0 %v117
    %3256 = vmatpush1.msra.mxu0 %v116
    %3257 = vmatprep.subr.mxu0 %v113
    %3258 = vmatpush1.msra.mxu0 %v112
    %3259 = vmatprep.subr.mxu0 %v109
    %3260 = vmatpush1.msra.mxu0 %v108
    %3261 = vmatprep.subr.mxu0 %v105
    %3262 = vmatpush1.msra.mxu0 %v104
    %3263 = vmatprep.subr.mxu0 %v101
    %3264 = vmatpush1.msra.mxu0 %v100
    %3265 = vmatprep.subr.mxu0 %v97
    %3266 = vmatpush1.msra.mxu0 %v96
    %3267 = vmatprep.subr.mxu0 %v93
    %3268 = vmatpush1.msra.mxu0 %v92
    %3269 = vmatprep.subr.mxu0 %v89
    %3270 = vmatpush1.msra.mxu0 %v88
    %3271 = vmatprep.subr.mxu0 %v85
    %3272 = vmatpush1.msra.mxu0 %v84
    %3273 = vmatprep.subr.mxu0 %v81
    %3274 = vmatpush1.msra.mxu0 %v80
    %3275 = vmatprep.subr.mxu0 0.0
    %3276 = vmatpush2.msra.mxu0 0.0
    %3277 = vmatprep.subr.mxu0 0.0
    %3278 = vmatpush2.msra.mxu0 0.0
    %3279 = vmatprep.subr.mxu0 0.0
    %3280 = vmatpush2.msra.mxu0 0.0
    %3281 = vmatprep.subr.mxu0 0.0
    %3282 = vmatpush2.msra.mxu0 0.0
    %3283 = vmatprep.subr.mxu0 0.0
    %3284 = vmatpush2.msra.mxu0 0.0
    %3285 = vmatprep.subr.mxu0 0.0
    %3286 = vmatpush2.msra.mxu0 0.0
    %3287 = vmatprep.subr.mxu0 0.0
    %3288 = vmatpush2.msra.mxu0 0.0
    %3289 = vmatprep.subr.mxu0 0.0
    %3290 = vmatpush2.msra.mxu0 0.0
    %3291 = vmatprep.subr.mxu0 0.0
    %3292 = vmatpush2.msra.mxu0 0.0
    %3293 = vmatprep.subr.mxu0 0.0
    %3294 = vmatpush2.msra.mxu0 0.0
    %3295 = vmatprep.subr.mxu0 0.0
    %3296 = vmatpush2.msra.mxu0 0.0
    %3297 = vmatprep.subr.mxu0 0.0
    %3298 = vmatpush2.msra.mxu0 0.0
    %3299 = vmatprep.subr.mxu0 0.0
    %3300 = vmatpush2.msra.mxu0 0.0
    %3301 = vmatprep.subr.mxu0 0.0
    %3302 = vmatpush2.msra.mxu0 0.0
    %3303 = vmatprep.subr.mxu0 0.0
    %3304 = vmatpush2.msra.mxu0 0.0
    %3305 = vmatprep.subr.mxu0 0.0
    %3306 = vmatpush2.msra.mxu0 0.0
    %3307 = vmatprep.mubr.f32.mxu0 0.0
    %3308 = vmatmul.mubr.f32.gmra.mxu0 %v3000
    %v3309 = vpop.f32.mrf.mxu0
    %v3310 = vadd.f32 0.0, %v3309
    %v3311 = vpop.f32.mrf.mxu0
    %v3312 = vadd.f32 0.0, %v3311
    %3313 = vdwg.mxu0
    %v3318 = vrot.slane %v3239, 3
    %v3319 = vrot.slane %v3241, 3
    %v3320 = vrot.slane %v3310, 3
    %v3321 = vrot.slane %v3312, 3
    %v3322 = vrot.slane %v3239, 4
    %v3323 = vrot.slane %v3241, 4
    %v3324 = vrot.slane %v3310, 4
    %v3325 = vrot.slane %v3312, 4
    %v3334 = vadd.f32 %v369, %v3318
    %v3335 = vadd.f32 %v371, %v3319
    %v3336 = vadd.f32 %v446, %v3320
    %v3337 = vadd.f32 %v448, %v3321
    %v3338 = vadd.f32 %v375, %v3322
    %v3339 = vadd.f32 %v377, %v3323
    %v3340 = vadd.f32 %v452, %v3324
    %v3341 = vadd.f32 %v454, %v3325
    %v3342 = vxor.u32 %v3334, 2147483648
    %v3343 = vxor.u32 %v3338, 2147483648
    %v3344 = vmul.f32 %v3342, 1.442695
    %v3345 = vpow.pop %v3344
    %v3346 = vmul.f32 %v3343, 1.442695
    %v3347 = vpow.pop %v3346
    %v3348 = vadd.f32 %v3345, 1.0
    %v3349 = vadd.f32 %v3347, 1.0
    %v3350 = vrcp.pop %v3348
    %v3351 = vmul.f32 1.0, %v3350
    %v3352 = vrcp.pop %v3349
    %v3353 = vmul.f32 1.0, %v3352
    %v3354 = vxor.u32 %v3335, 2147483648
    %v3355 = vxor.u32 %v3339, 2147483648
    %v3356 = vmul.f32 %v3354, 1.442695
    %v3357 = vpow.pop %v3356
    %v3358 = vmul.f32 %v3355, 1.442695
    %v3359 = vpow.pop %v3358
    %v3360 = vadd.f32 %v3357, 1.0
    %v3361 = vadd.f32 %v3359, 1.0
    %v3362 = vrcp.pop %v3360
    %v3363 = vmul.f32 1.0, %v3362
    %v3364 = vrcp.pop %v3361
    %v3365 = vmul.f32 1.0, %v3364
    %v3366 = vtanh.pop %v3336
    %v3367 = vtanh.pop %v3340
    %v3368 = vxor.u32 %v3337, 2147483648
    %v3369 = vxor.u32 %v3341, 2147483648
    %v3370 = vmul.f32 %v3368, 1.442695
    %v3371 = vpow.pop %v3370
    %v3372 = vmul.f32 %v3369, 1.442695
    %v3373 = vpow.pop %v3372
    %v3374 = vadd.f32 %v3371, 1.0
    %v3375 = vadd.f32 %v3373, 1.0
    %v3376 = vrcp.pop %v3374
    %v3377 = vmul.f32 1.0, %v3376
    %v3378 = vrcp.pop %v3375
    %v3379 = vmul.f32 1.0, %v3378
    %v3382 = vrot.slane %v2848, 7
    %v3383 = vrot.slane %v2849, 7
    %v3386 = vmul.f32 %v3363, %v3382
    %v3387 = vmul.f32 %v3365, %v3383
    %v3388 = vmul.f32 %v3351, %v3366
    %v3389 = vmul.f32 %v3353, %v3367
    %v3390 = vadd.f32 %v3386, %v3388
    %v3391 = vadd.f32 %v3387, %v3389
    %v3392 = vtanh.pop %v3390
    %v3393 = vtanh.pop %v3391
    %v3394 = vmul.f32 %v3377, %v3392
    %v3395 = vmul.f32 %v3379, %v3393
    %3396 = vmatprep.subr.mxu0 %v268
    %3397 = vmatpush1.msra.mxu0 %v267
    %3398 = vmatprep.subr.mxu0 %v264
    %3399 = vmatpush1.msra.mxu0 %v263
    %3400 = vmatprep.subr.mxu0 %v260
    %3401 = vmatpush1.msra.mxu0 %v259
    %3402 = vmatprep.subr.mxu0 %v256
    %3403 = vmatpush1.msra.mxu0 %v255
    %3404 = vmatprep.subr.mxu0 %v252
    %3405 = vmatpush1.msra.mxu0 %v251
    %3406 = vmatprep.subr.mxu0 %v248
    %3407 = vmatpush1.msra.mxu0 %v247
    %3408 = vmatprep.subr.mxu0 %v244
    %3409 = vmatpush1.msra.mxu0 %v243
    %3410 = vmatprep.subr.mxu0 %v240
    %3411 = vmatpush1.msra.mxu0 %v239
    %3412 = vmatprep.subr.mxu0 %v236
    %3413 = vmatpush1.msra.mxu0 %v235
    %3414 = vmatprep.subr.mxu0 %v232
    %3415 = vmatpush1.msra.mxu0 %v231
    %3416 = vmatprep.subr.mxu0 %v228
    %3417 = vmatpush1.msra.mxu0 %v227
    %3418 = vmatprep.subr.mxu0 %v224
    %3419 = vmatpush1.msra.mxu0 %v223
    %3420 = vmatprep.subr.mxu0 %v220
    %3421 = vmatpush1.msra.mxu0 %v219
    %3422 = vmatprep.subr.mxu0 %v216
    %3423 = vmatpush1.msra.mxu0 %v215
    %3424 = vmatprep.subr.mxu0 %v212
    %3425 = vmatpush1.msra.mxu0 %v211
    %3426 = vmatprep.subr.mxu0 %v208
    %3427 = vmatpush1.msra.mxu0 %v207
    %3428 = vmatprep.subr.mxu0 0.0
    %3429 = vmatpush2.msra.mxu0 0.0
    %3430 = vmatprep.subr.mxu0 0.0
    %3431 = vmatpush2.msra.mxu0 0.0
    %3432 = vmatprep.subr.mxu0 0.0
    %3433 = vmatpush2.msra.mxu0 0.0
    %3434 = vmatprep.subr.mxu0 0.0
    %3435 = vmatpush2.msra.mxu0 0.0
    %3436 = vmatprep.subr.mxu0 0.0
    %3437 = vmatpush2.msra.mxu0 0.0
    %3438 = vmatprep.subr.mxu0 0.0
    %3439 = vmatpush2.msra.mxu0 0.0
    %3440 = vmatprep.subr.mxu0 0.0
    %3441 = vmatpush2.msra.mxu0 0.0
    %3442 = vmatprep.subr.mxu0 0.0
    %3443 = vmatpush2.msra.mxu0 0.0
    %3444 = vmatprep.subr.mxu0 0.0
    %3445 = vmatpush2.msra.mxu0 0.0
    %3446 = vmatprep.subr.mxu0 0.0
    %3447 = vmatpush2.msra.mxu0 0.0
    %3448 = vmatprep.subr.mxu0 0.0
    %3449 = vmatpush2.msra.mxu0 0.0
    %3450 = vmatprep.subr.mxu0 0.0
    %3451 = vmatpush2.msra.mxu0 0.0
    %3452 = vmatprep.subr.mxu0 0.0
    %3453 = vmatpush2.msra.mxu0 0.0
    %3454 = vmatprep.subr.mxu0 0.0
    %3455 = vmatpush2.msra.mxu0 0.0
    %3456 = vmatprep.subr.mxu0 0.0
    %3457 = vmatpush2.msra.mxu0 0.0
    %3458 = vmatprep.subr.mxu0 0.0
    %3459 = vmatpush2.msra.mxu0 0.0
    %3460 = vmatprep.mubr.f32.mxu0 0.0
    %3461 = vmatmul.mubr.f32.gmra.mxu0 %v3171
    %v3462 = vpop.f32.mrf.mxu0
    %v3463 = vadd.f32 0.0, %v3462
    %v3464 = vpop.f32.mrf.mxu0
    %v3465 = vadd.f32 0.0, %v3464
    %3466 = vdwg.mxu0
    %3467 = vmatprep.subr.mxu0 %v270
    %3468 = vmatpush1.msra.mxu0 %v269
    %3469 = vmatprep.subr.mxu0 %v266
    %3470 = vmatpush1.msra.mxu0 %v265
    %3471 = vmatprep.subr.mxu0 %v262
    %3472 = vmatpush1.msra.mxu0 %v261
    %3473 = vmatprep.subr.mxu0 %v258
    %3474 = vmatpush1.msra.mxu0 %v257
    %3475 = vmatprep.subr.mxu0 %v254
    %3476 = vmatpush1.msra.mxu0 %v253
    %3477 = vmatprep.subr.mxu0 %v250
    %3478 = vmatpush1.msra.mxu0 %v249
    %3479 = vmatprep.subr.mxu0 %v246
    %3480 = vmatpush1.msra.mxu0 %v245
    %3481 = vmatprep.subr.mxu0 %v242
    %3482 = vmatpush1.msra.mxu0 %v241
    %3483 = vmatprep.subr.mxu0 %v238
    %3484 = vmatpush1.msra.mxu0 %v237
    %3485 = vmatprep.subr.mxu0 %v234
    %3486 = vmatpush1.msra.mxu0 %v233
    %3487 = vmatprep.subr.mxu0 %v230
    %3488 = vmatpush1.msra.mxu0 %v229
    %3489 = vmatprep.subr.mxu0 %v226
    %3490 = vmatpush1.msra.mxu0 %v225
    %3491 = vmatprep.subr.mxu0 %v222
    %3492 = vmatpush1.msra.mxu0 %v221
    %3493 = vmatprep.subr.mxu0 %v218
    %3494 = vmatpush1.msra.mxu0 %v217
    %3495 = vmatprep.subr.mxu0 %v214
    %3496 = vmatpush1.msra.mxu0 %v213
    %3497 = vmatprep.subr.mxu0 %v210
    %3498 = vmatpush1.msra.mxu0 %v209
    %3499 = vmatprep.subr.mxu0 0.0
    %3500 = vmatpush2.msra.mxu0 0.0
    %3501 = vmatprep.subr.mxu0 0.0
    %3502 = vmatpush2.msra.mxu0 0.0
    %3503 = vmatprep.subr.mxu0 0.0
    %3504 = vmatpush2.msra.mxu0 0.0
    %3505 = vmatprep.subr.mxu0 0.0
    %3506 = vmatpush2.msra.mxu0 0.0
    %3507 = vmatprep.subr.mxu0 0.0
    %3508 = vmatpush2.msra.mxu0 0.0
    %3509 = vmatprep.subr.mxu0 0.0
    %3510 = vmatpush2.msra.mxu0 0.0
    %3511 = vmatprep.subr.mxu0 0.0
    %3512 = vmatpush2.msra.mxu0 0.0
    %3513 = vmatprep.subr.mxu0 0.0
    %3514 = vmatpush2.msra.mxu0 0.0
    %3515 = vmatprep.subr.mxu0 0.0
    %3516 = vmatpush2.msra.mxu0 0.0
    %3517 = vmatprep.subr.mxu0 0.0
    %3518 = vmatpush2.msra.mxu0 0.0
    %3519 = vmatprep.subr.mxu0 0.0
    %3520 = vmatpush2.msra.mxu0 0.0
    %3521 = vmatprep.subr.mxu0 0.0
    %3522 = vmatpush2.msra.mxu0 0.0
    %3523 = vmatprep.subr.mxu0 0.0
    %3524 = vmatpush2.msra.mxu0 0.0
    %3525 = vmatprep.subr.mxu0 0.0
    %3526 = vmatpush2.msra.mxu0 0.0
    %3527 = vmatprep.subr.mxu0 0.0
    %3528 = vmatpush2.msra.mxu0 0.0
    %3529 = vmatprep.subr.mxu0 0.0
    %3530 = vmatpush2.msra.mxu0 0.0
    %3531 = vmatprep.mubr.f32.mxu0 0.0
    %3532 = vmatmul.mubr.f32.gmra.mxu0 %v3171
    %v3533 = vpop.f32.mrf.mxu0
    %v3534 = vadd.f32 0.0, %v3533
    %v3535 = vpop.f32.mrf.mxu0
    %v3536 = vadd.f32 0.0, %v3535
    %3537 = vdwg.mxu0
    %v3540 = vrot.slane %v3394, 5
    %v3541 = vrot.slane %v3395, 4
    %v3542 = vsel %vm815, %v3541, %v3540
    %3544 = vmatprep.subr.mxu0 %v204
    %3545 = vmatpush1.msra.mxu0 %v203
    %3546 = vmatprep.subr.mxu0 %v200
    %3547 = vmatpush1.msra.mxu0 %v199
    %3548 = vmatprep.subr.mxu0 %v196
    %3549 = vmatpush1.msra.mxu0 %v195
    %3550 = vmatprep.subr.mxu0 %v192
    %3551 = vmatpush1.msra.mxu0 %v191
    %3552 = vmatprep.subr.mxu0 %v188
    %3553 = vmatpush1.msra.mxu0 %v187
    %3554 = vmatprep.subr.mxu0 %v184
    %3555 = vmatpush1.msra.mxu0 %v183
    %3556 = vmatprep.subr.mxu0 %v180
    %3557 = vmatpush1.msra.mxu0 %v179
    %3558 = vmatprep.subr.mxu0 %v176
    %3559 = vmatpush1.msra.mxu0 %v175
    %3560 = vmatprep.subr.mxu0 %v172
    %3561 = vmatpush1.msra.mxu0 %v171
    %3562 = vmatprep.subr.mxu0 %v168
    %3563 = vmatpush1.msra.mxu0 %v167
    %3564 = vmatprep.subr.mxu0 %v164
    %3565 = vmatpush1.msra.mxu0 %v163
    %3566 = vmatprep.subr.mxu0 %v160
    %3567 = vmatpush1.msra.mxu0 %v159
    %3568 = vmatprep.subr.mxu0 %v156
    %3569 = vmatpush1.msra.mxu0 %v155
    %3570 = vmatprep.subr.mxu0 %v152
    %3571 = vmatpush1.msra.mxu0 %v151
    %3572 = vmatprep.subr.mxu0 %v148
    %3573 = vmatpush1.msra.mxu0 %v147
    %3574 = vmatprep.subr.mxu0 %v144
    %3575 = vmatpush1.msra.mxu0 %v143
    %3576 = vmatprep.subr.mxu0 0.0
    %3577 = vmatpush2.msra.mxu0 0.0
    %3578 = vmatprep.subr.mxu0 0.0
    %3579 = vmatpush2.msra.mxu0 0.0
    %3580 = vmatprep.subr.mxu0 0.0
    %3581 = vmatpush2.msra.mxu0 0.0
    %3582 = vmatprep.subr.mxu0 0.0
    %3583 = vmatpush2.msra.mxu0 0.0
    %3584 = vmatprep.subr.mxu0 0.0
    %3585 = vmatpush2.msra.mxu0 0.0
    %3586 = vmatprep.subr.mxu0 0.0
    %3587 = vmatpush2.msra.mxu0 0.0
    %3588 = vmatprep.subr.mxu0 0.0
    %3589 = vmatpush2.msra.mxu0 0.0
    %3590 = vmatprep.subr.mxu0 0.0
    %3591 = vmatpush2.msra.mxu0 0.0
    %3592 = vmatprep.subr.mxu0 0.0
    %3593 = vmatpush2.msra.mxu0 0.0
    %3594 = vmatprep.subr.mxu0 0.0
    %3595 = vmatpush2.msra.mxu0 0.0
    %3596 = vmatprep.subr.mxu0 0.0
    %3597 = vmatpush2.msra.mxu0 0.0
    %3598 = vmatprep.subr.mxu0 0.0
    %3599 = vmatpush2.msra.mxu0 0.0
    %3600 = vmatprep.subr.mxu0 0.0
    %3601 = vmatpush2.msra.mxu0 0.0
    %3602 = vmatprep.subr.mxu0 0.0
    %3603 = vmatpush2.msra.mxu0 0.0
    %3604 = vmatprep.subr.mxu0 0.0
    %3605 = vmatpush2.msra.mxu0 0.0
    %3606 = vmatprep.subr.mxu0 0.0
    %3607 = vmatpush2.msra.mxu0 0.0
    %3608 = vmatprep.mubr.f32.mxu0 0.0
    %3609 = vmatmul.mubr.f32.gmra.mxu0 %v3542
    %v3610 = vpop.f32.mrf.mxu0
    %v3611 = vadd.f32 %v3463, %v3610
    %v3612 = vpop.f32.mrf.mxu0
    %v3613 = vadd.f32 %v3465, %v3612
    %3614 = vdwg.mxu0
    %3615 = vmatprep.subr.mxu0 %v206
    %3616 = vmatpush1.msra.mxu0 %v205
    %3617 = vmatprep.subr.mxu0 %v202
    %3618 = vmatpush1.msra.mxu0 %v201
    %3619 = vmatprep.subr.mxu0 %v198
    %3620 = vmatpush1.msra.mxu0 %v197
    %3621 = vmatprep.subr.mxu0 %v194
    %3622 = vmatpush1.msra.mxu0 %v193
    %3623 = vmatprep.subr.mxu0 %v190
    %3624 = vmatpush1.msra.mxu0 %v189
    %3625 = vmatprep.subr.mxu0 %v186
    %3626 = vmatpush1.msra.mxu0 %v185
    %3627 = vmatprep.subr.mxu0 %v182
    %3628 = vmatpush1.msra.mxu0 %v181
    %3629 = vmatprep.subr.mxu0 %v178
    %3630 = vmatpush1.msra.mxu0 %v177
    %3631 = vmatprep.subr.mxu0 %v174
    %3632 = vmatpush1.msra.mxu0 %v173
    %3633 = vmatprep.subr.mxu0 %v170
    %3634 = vmatpush1.msra.mxu0 %v169
    %3635 = vmatprep.subr.mxu0 %v166
    %3636 = vmatpush1.msra.mxu0 %v165
    %3637 = vmatprep.subr.mxu0 %v162
    %3638 = vmatpush1.msra.mxu0 %v161
    %3639 = vmatprep.subr.mxu0 %v158
    %3640 = vmatpush1.msra.mxu0 %v157
    %3641 = vmatprep.subr.mxu0 %v154
    %3642 = vmatpush1.msra.mxu0 %v153
    %3643 = vmatprep.subr.mxu0 %v150
    %3644 = vmatpush1.msra.mxu0 %v149
    %3645 = vmatprep.subr.mxu0 %v146
    %3646 = vmatpush1.msra.mxu0 %v145
    %3647 = vmatprep.subr.mxu0 0.0
    %3648 = vmatpush2.msra.mxu0 0.0
    %3649 = vmatprep.subr.mxu0 0.0
    %3650 = vmatpush2.msra.mxu0 0.0
    %3651 = vmatprep.subr.mxu0 0.0
    %3652 = vmatpush2.msra.mxu0 0.0
    %3653 = vmatprep.subr.mxu0 0.0
    %3654 = vmatpush2.msra.mxu0 0.0
    %3655 = vmatprep.subr.mxu0 0.0
    %3656 = vmatpush2.msra.mxu0 0.0
    %3657 = vmatprep.subr.mxu0 0.0
    %3658 = vmatpush2.msra.mxu0 0.0
    %3659 = vmatprep.subr.mxu0 0.0
    %3660 = vmatpush2.msra.mxu0 0.0
    %3661 = vmatprep.subr.mxu0 0.0
    %3662 = vmatpush2.msra.mxu0 0.0
    %3663 = vmatprep.subr.mxu0 0.0
    %3664 = vmatpush2.msra.mxu0 0.0
    %3665 = vmatprep.subr.mxu0 0.0
    %3666 = vmatpush2.msra.mxu0 0.0
    %3667 = vmatprep.subr.mxu0 0.0
    %3668 = vmatpush2.msra.mxu0 0.0
    %3669 = vmatprep.subr.mxu0 0.0
    %3670 = vmatpush2.msra.mxu0 0.0
    %3671 = vmatprep.subr.mxu0 0.0
    %3672 = vmatpush2.msra.mxu0 0.0
    %3673 = vmatprep.subr.mxu0 0.0
    %3674 = vmatpush2.msra.mxu0 0.0
    %3675 = vmatprep.subr.mxu0 0.0
    %3676 = vmatpush2.msra.mxu0 0.0
    %3677 = vmatprep.subr.mxu0 0.0
    %3678 = vmatpush2.msra.mxu0 0.0
    %3679 = vmatprep.mubr.f32.mxu0 0.0
    %3680 = vmatmul.mubr.f32.gmra.mxu0 %v3542
    %v3681 = vpop.f32.mrf.mxu0
    %v3682 = vadd.f32 %v3534, %v3681
    %v3683 = vpop.f32.mrf.mxu0
    %v3684 = vadd.f32 %v3536, %v3683
    %3685 = vdwg.mxu0
    %v3686 = vadd.f32 %v3611, %v964
    %v3687 = vadd.f32 %v3613, %v968
    %v3688 = vadd.f32 %v3682, %v972
    %v3689 = vadd.f32 %v3684, %v976
    %v3690 = vxor.u32 %v3686, 2147483648
    %v3691 = vmul.f32 %v3690, 1.442695
    %v3692 = vpow.pop %v3691
    %v3693 = vadd.f32 %v3692, 1.0
    %v3694 = vrcp.pop %v3693
    %v3695 = vmul.f32 1.0, %v3694
    %v3696 = vxor.u32 %v3687, 2147483648
    %v3697 = vmul.f32 %v3696, 1.442695
    %v3698 = vpow.pop %v3697
    %v3699 = vadd.f32 %v3698, 1.0
    %v3700 = vrcp.pop %v3699
    %v3701 = vmul.f32 1.0, %v3700
    %v3702 = vtanh.pop %v3688
    %v3703 = vxor.u32 %v3689, 2147483648
    %v3704 = vmul.f32 %v3703, 1.442695
    %v3705 = vpow.pop %v3704
    %v3706 = vadd.f32 %v3705, 1.0
    %v3707 = vrcp.pop %v3706
    %v3708 = vmul.f32 1.0, %v3707
    %v3709 = vmul.f32 %v3701, %v3169
    %v3710 = vmul.f32 %v3695, %v3702
    %v3711 = vadd.f32 %v3709, %v3710
    %v3712 = vtanh.pop %v3711
    %v3713 = vmul.f32 %v3708, %v3712
    %3714 = vmatprep.subr.mxu0 %v139
    %3715 = vmatpush1.msra.mxu0 %v138
    %3716 = vmatprep.subr.mxu0 %v135
    %3717 = vmatpush1.msra.mxu0 %v134
    %3718 = vmatprep.subr.mxu0 %v131
    %3719 = vmatpush1.msra.mxu0 %v130
    %3720 = vmatprep.subr.mxu0 %v127
    %3721 = vmatpush1.msra.mxu0 %v126
    %3722 = vmatprep.subr.mxu0 %v123
    %3723 = vmatpush1.msra.mxu0 %v122
    %3724 = vmatprep.subr.mxu0 %v119
    %3725 = vmatpush1.msra.mxu0 %v118
    %3726 = vmatprep.subr.mxu0 %v115
    %3727 = vmatpush1.msra.mxu0 %v114
    %3728 = vmatprep.subr.mxu0 %v111
    %3729 = vmatpush1.msra.mxu0 %v110
    %3730 = vmatprep.subr.mxu0 %v107
    %3731 = vmatpush1.msra.mxu0 %v106
    %3732 = vmatprep.subr.mxu0 %v103
    %3733 = vmatpush1.msra.mxu0 %v102
    %3734 = vmatprep.subr.mxu0 %v99
    %3735 = vmatpush1.msra.mxu0 %v98
    %3736 = vmatprep.subr.mxu0 %v95
    %3737 = vmatpush1.msra.mxu0 %v94
    %3738 = vmatprep.subr.mxu0 %v91
    %3739 = vmatpush1.msra.mxu0 %v90
    %3740 = vmatprep.subr.mxu0 %v87
    %3741 = vmatpush1.msra.mxu0 %v86
    %3742 = vmatprep.subr.mxu0 %v83
    %3743 = vmatpush1.msra.mxu0 %v82
    %3744 = vmatprep.subr.mxu0 %v79
    %3745 = vmatpush1.msra.mxu0 %v78
    %3746 = vmatprep.subr.mxu0 0.0
    %3747 = vmatpush2.msra.mxu0 0.0
    %3748 = vmatprep.subr.mxu0 0.0
    %3749 = vmatpush2.msra.mxu0 0.0
    %3750 = vmatprep.subr.mxu0 0.0
    %3751 = vmatpush2.msra.mxu0 0.0
    %3752 = vmatprep.subr.mxu0 0.0
    %3753 = vmatpush2.msra.mxu0 0.0
    %3754 = vmatprep.subr.mxu0 0.0
    %3755 = vmatpush2.msra.mxu0 0.0
    %3756 = vmatprep.subr.mxu0 0.0
    %3757 = vmatpush2.msra.mxu0 0.0
    %3758 = vmatprep.subr.mxu0 0.0
    %3759 = vmatpush2.msra.mxu0 0.0
    %3760 = vmatprep.subr.mxu0 0.0
    %3761 = vmatpush2.msra.mxu0 0.0
    %3762 = vmatprep.subr.mxu0 0.0
    %3763 = vmatpush2.msra.mxu0 0.0
    %3764 = vmatprep.subr.mxu0 0.0
    %3765 = vmatpush2.msra.mxu0 0.0
    %3766 = vmatprep.subr.mxu0 0.0
    %3767 = vmatpush2.msra.mxu0 0.0
    %3768 = vmatprep.subr.mxu0 0.0
    %3769 = vmatpush2.msra.mxu0 0.0
    %3770 = vmatprep.subr.mxu0 0.0
    %3771 = vmatpush2.msra.mxu0 0.0
    %3772 = vmatprep.subr.mxu0 0.0
    %3773 = vmatpush2.msra.mxu0 0.0
    %3774 = vmatprep.subr.mxu0 0.0
    %3775 = vmatpush2.msra.mxu0 0.0
    %3776 = vmatprep.subr.mxu0 0.0
    %3777 = vmatpush2.msra.mxu0 0.0
    %3778 = vmatprep.mubr.f32.mxu0 0.0
    %3779 = vmatmul.mubr.f32.gmra.mxu0 %v3542
    %v3780 = vpop.f32.mrf.mxu0
    %v3781 = vadd.f32 0.0, %v3780
    %v3782 = vpop.f32.mrf.mxu0
    %v3783 = vadd.f32 0.0, %v3782
    %3784 = vdwg.mxu0
    %3785 = vmatprep.subr.mxu0 %v141
    %3786 = vmatpush1.msra.mxu0 %v140
    %3787 = vmatprep.subr.mxu0 %v137
    %3788 = vmatpush1.msra.mxu0 %v136
    %3789 = vmatprep.subr.mxu0 %v133
    %3790 = vmatpush1.msra.mxu0 %v132
    %3791 = vmatprep.subr.mxu0 %v129
    %3792 = vmatpush1.msra.mxu0 %v128
    %3793 = vmatprep.subr.mxu0 %v125
    %3794 = vmatpush1.msra.mxu0 %v124
    %3795 = vmatprep.subr.mxu0 %v121
    %3796 = vmatpush1.msra.mxu0 %v120
    %3797 = vmatprep.subr.mxu0 %v117
    %3798 = vmatpush1.msra.mxu0 %v116
    %3799 = vmatprep.subr.mxu0 %v113
    %3800 = vmatpush1.msra.mxu0 %v112
    %3801 = vmatprep.subr.mxu0 %v109
    %3802 = vmatpush1.msra.mxu0 %v108
    %3803 = vmatprep.subr.mxu0 %v105
    %3804 = vmatpush1.msra.mxu0 %v104
    %3805 = vmatprep.subr.mxu0 %v101
    %3806 = vmatpush1.msra.mxu0 %v100
    %3807 = vmatprep.subr.mxu0 %v97
    %3808 = vmatpush1.msra.mxu0 %v96
    %3809 = vmatprep.subr.mxu0 %v93
    %3810 = vmatpush1.msra.mxu0 %v92
    %3811 = vmatprep.subr.mxu0 %v89
    %3812 = vmatpush1.msra.mxu0 %v88
    %3813 = vmatprep.subr.mxu0 %v85
    %3814 = vmatpush1.msra.mxu0 %v84
    %3815 = vmatprep.subr.mxu0 %v81
    %3816 = vmatpush1.msra.mxu0 %v80
    %3817 = vmatprep.subr.mxu0 0.0
    %3818 = vmatpush2.msra.mxu0 0.0
    %3819 = vmatprep.subr.mxu0 0.0
    %3820 = vmatpush2.msra.mxu0 0.0
    %3821 = vmatprep.subr.mxu0 0.0
    %3822 = vmatpush2.msra.mxu0 0.0
    %3823 = vmatprep.subr.mxu0 0.0
    %3824 = vmatpush2.msra.mxu0 0.0
    %3825 = vmatprep.subr.mxu0 0.0
    %3826 = vmatpush2.msra.mxu0 0.0
    %3827 = vmatprep.subr.mxu0 0.0
    %3828 = vmatpush2.msra.mxu0 0.0
    %3829 = vmatprep.subr.mxu0 0.0
    %3830 = vmatpush2.msra.mxu0 0.0
    %3831 = vmatprep.subr.mxu0 0.0
    %3832 = vmatpush2.msra.mxu0 0.0
    %3833 = vmatprep.subr.mxu0 0.0
    %3834 = vmatpush2.msra.mxu0 0.0
    %3835 = vmatprep.subr.mxu0 0.0
    %3836 = vmatpush2.msra.mxu0 0.0
    %3837 = vmatprep.subr.mxu0 0.0
    %3838 = vmatpush2.msra.mxu0 0.0
    %3839 = vmatprep.subr.mxu0 0.0
    %3840 = vmatpush2.msra.mxu0 0.0
    %3841 = vmatprep.subr.mxu0 0.0
    %3842 = vmatpush2.msra.mxu0 0.0
    %3843 = vmatprep.subr.mxu0 0.0
    %3844 = vmatpush2.msra.mxu0 0.0
    %3845 = vmatprep.subr.mxu0 0.0
    %3846 = vmatpush2.msra.mxu0 0.0
    %3847 = vmatprep.subr.mxu0 0.0
    %3848 = vmatpush2.msra.mxu0 0.0
    %3849 = vmatprep.mubr.f32.mxu0 0.0
    %3850 = vmatmul.mubr.f32.gmra.mxu0 %v3542
    %v3851 = vpop.f32.mrf.mxu0
    %v3852 = vadd.f32 0.0, %v3851
    %v3853 = vpop.f32.mrf.mxu0
    %v3854 = vadd.f32 0.0, %v3853
    %3855 = vdwg.mxu0
    %v3860 = vrot.slane %v3781, 2
    %v3861 = vrot.slane %v3783, 2
    %v3862 = vrot.slane %v3852, 2
    %v3863 = vrot.slane %v3854, 2
    %v3864 = vrot.slane %v3781, 3
    %v3865 = vrot.slane %v3783, 3
    %v3866 = vrot.slane %v3852, 3
    %v3867 = vrot.slane %v3854, 3
    %v3876 = vadd.f32 %v369, %v3860
    %v3877 = vadd.f32 %v371, %v3861
    %v3878 = vadd.f32 %v446, %v3862
    %v3879 = vadd.f32 %v448, %v3863
    %v3880 = vadd.f32 %v375, %v3864
    %v3881 = vadd.f32 %v377, %v3865
    %v3882 = vadd.f32 %v452, %v3866
    %v3883 = vadd.f32 %v454, %v3867
    %v3884 = vxor.u32 %v3876, 2147483648
    %v3885 = vxor.u32 %v3880, 2147483648
    %v3886 = vmul.f32 %v3884, 1.442695
    %v3887 = vpow.pop %v3886
    %v3888 = vmul.f32 %v3885, 1.442695
    %v3889 = vpow.pop %v3888
    %v3890 = vadd.f32 %v3887, 1.0
    %v3891 = vadd.f32 %v3889, 1.0
    %v3892 = vrcp.pop %v3890
    %v3893 = vmul.f32 1.0, %v3892
    %v3894 = vrcp.pop %v3891
    %v3895 = vmul.f32 1.0, %v3894
    %v3896 = vxor.u32 %v3877, 2147483648
    %v3897 = vxor.u32 %v3881, 2147483648
    %v3898 = vmul.f32 %v3896, 1.442695
    %v3899 = vpow.pop %v3898
    %v3900 = vmul.f32 %v3897, 1.442695
    %v3901 = vpow.pop %v3900
    %v3902 = vadd.f32 %v3899, 1.0
    %v3903 = vadd.f32 %v3901, 1.0
    %v3904 = vrcp.pop %v3902
    %v3905 = vmul.f32 1.0, %v3904
    %v3906 = vrcp.pop %v3903
    %v3907 = vmul.f32 1.0, %v3906
    %v3908 = vtanh.pop %v3878
    %v3909 = vtanh.pop %v3882
    %v3910 = vxor.u32 %v3879, 2147483648
    %v3911 = vxor.u32 %v3883, 2147483648
    %v3912 = vmul.f32 %v3910, 1.442695
    %v3913 = vpow.pop %v3912
    %v3914 = vmul.f32 %v3911, 1.442695
    %v3915 = vpow.pop %v3914
    %v3916 = vadd.f32 %v3913, 1.0
    %v3917 = vadd.f32 %v3915, 1.0
    %v3918 = vrcp.pop %v3916
    %v3919 = vmul.f32 1.0, %v3918
    %v3920 = vrcp.pop %v3917
    %v3921 = vmul.f32 1.0, %v3920
    %v3924 = vrot.slane %v3390, 7
    %v3925 = vrot.slane %v3391, 7
    %v3928 = vmul.f32 %v3905, %v3924
    %v3929 = vmul.f32 %v3907, %v3925
    %v3930 = vmul.f32 %v3893, %v3908
    %v3931 = vmul.f32 %v3895, %v3909
    %v3932 = vadd.f32 %v3928, %v3930
    %v3933 = vadd.f32 %v3929, %v3931
    %v3934 = vtanh.pop %v3932
    %v3935 = vtanh.pop %v3933
    %v3936 = vmul.f32 %v3919, %v3934
    %v3937 = vmul.f32 %v3921, %v3935
    %3938 = vmatprep.subr.mxu0 %v268
    %3939 = vmatpush1.msra.mxu0 %v267
    %3940 = vmatprep.subr.mxu0 %v264
    %3941 = vmatpush1.msra.mxu0 %v263
    %3942 = vmatprep.subr.mxu0 %v260
    %3943 = vmatpush1.msra.mxu0 %v259
    %3944 = vmatprep.subr.mxu0 %v256
    %3945 = vmatpush1.msra.mxu0 %v255
    %3946 = vmatprep.subr.mxu0 %v252
    %3947 = vmatpush1.msra.mxu0 %v251
    %3948 = vmatprep.subr.mxu0 %v248
    %3949 = vmatpush1.msra.mxu0 %v247
    %3950 = vmatprep.subr.mxu0 %v244
    %3951 = vmatpush1.msra.mxu0 %v243
    %3952 = vmatprep.subr.mxu0 %v240
    %3953 = vmatpush1.msra.mxu0 %v239
    %3954 = vmatprep.subr.mxu0 %v236
    %3955 = vmatpush1.msra.mxu0 %v235
    %3956 = vmatprep.subr.mxu0 %v232
    %3957 = vmatpush1.msra.mxu0 %v231
    %3958 = vmatprep.subr.mxu0 %v228
    %3959 = vmatpush1.msra.mxu0 %v227
    %3960 = vmatprep.subr.mxu0 %v224
    %3961 = vmatpush1.msra.mxu0 %v223
    %3962 = vmatprep.subr.mxu0 %v220
    %3963 = vmatpush1.msra.mxu0 %v219
    %3964 = vmatprep.subr.mxu0 %v216
    %3965 = vmatpush1.msra.mxu0 %v215
    %3966 = vmatprep.subr.mxu0 %v212
    %3967 = vmatpush1.msra.mxu0 %v211
    %3968 = vmatprep.subr.mxu0 %v208
    %3969 = vmatpush1.msra.mxu0 %v207
    %3970 = vmatprep.subr.mxu0 0.0
    %3971 = vmatpush2.msra.mxu0 0.0
    %3972 = vmatprep.subr.mxu0 0.0
    %3973 = vmatpush2.msra.mxu0 0.0
    %3974 = vmatprep.subr.mxu0 0.0
    %3975 = vmatpush2.msra.mxu0 0.0
    %3976 = vmatprep.subr.mxu0 0.0
    %3977 = vmatpush2.msra.mxu0 0.0
    %3978 = vmatprep.subr.mxu0 0.0
    %3979 = vmatpush2.msra.mxu0 0.0
    %3980 = vmatprep.subr.mxu0 0.0
    %3981 = vmatpush2.msra.mxu0 0.0
    %3982 = vmatprep.subr.mxu0 0.0
    %3983 = vmatpush2.msra.mxu0 0.0
    %3984 = vmatprep.subr.mxu0 0.0
    %3985 = vmatpush2.msra.mxu0 0.0
    %3986 = vmatprep.subr.mxu0 0.0
    %3987 = vmatpush2.msra.mxu0 0.0
    %3988 = vmatprep.subr.mxu0 0.0
    %3989 = vmatpush2.msra.mxu0 0.0
    %3990 = vmatprep.subr.mxu0 0.0
    %3991 = vmatpush2.msra.mxu0 0.0
    %3992 = vmatprep.subr.mxu0 0.0
    %3993 = vmatpush2.msra.mxu0 0.0
    %3994 = vmatprep.subr.mxu0 0.0
    %3995 = vmatpush2.msra.mxu0 0.0
    %3996 = vmatprep.subr.mxu0 0.0
    %3997 = vmatpush2.msra.mxu0 0.0
    %3998 = vmatprep.subr.mxu0 0.0
    %3999 = vmatpush2.msra.mxu0 0.0
    %4000 = vmatprep.subr.mxu0 0.0
    %4001 = vmatpush2.msra.mxu0 0.0
    %4002 = vmatprep.mubr.f32.mxu0 0.0
    %4003 = vmatmul.mubr.f32.gmra.mxu0 %v3713
    %v4004 = vpop.f32.mrf.mxu0
    %v4005 = vadd.f32 0.0, %v4004
    %v4006 = vpop.f32.mrf.mxu0
    %v4007 = vadd.f32 0.0, %v4006
    %4008 = vdwg.mxu0
    %4009 = vmatprep.subr.mxu0 %v270
    %4010 = vmatpush1.msra.mxu0 %v269
    %4011 = vmatprep.subr.mxu0 %v266
    %4012 = vmatpush1.msra.mxu0 %v265
    %4013 = vmatprep.subr.mxu0 %v262
    %4014 = vmatpush1.msra.mxu0 %v261
    %4015 = vmatprep.subr.mxu0 %v258
    %4016 = vmatpush1.msra.mxu0 %v257
    %4017 = vmatprep.subr.mxu0 %v254
    %4018 = vmatpush1.msra.mxu0 %v253
    %4019 = vmatprep.subr.mxu0 %v250
    %4020 = vmatpush1.msra.mxu0 %v249
    %4021 = vmatprep.subr.mxu0 %v246
    %4022 = vmatpush1.msra.mxu0 %v245
    %4023 = vmatprep.subr.mxu0 %v242
    %4024 = vmatpush1.msra.mxu0 %v241
    %4025 = vmatprep.subr.mxu0 %v238
    %4026 = vmatpush1.msra.mxu0 %v237
    %4027 = vmatprep.subr.mxu0 %v234
    %4028 = vmatpush1.msra.mxu0 %v233
    %4029 = vmatprep.subr.mxu0 %v230
    %4030 = vmatpush1.msra.mxu0 %v229
    %4031 = vmatprep.subr.mxu0 %v226
    %4032 = vmatpush1.msra.mxu0 %v225
    %4033 = vmatprep.subr.mxu0 %v222
    %4034 = vmatpush1.msra.mxu0 %v221
    %4035 = vmatprep.subr.mxu0 %v218
    %4036 = vmatpush1.msra.mxu0 %v217
    %4037 = vmatprep.subr.mxu0 %v214
    %4038 = vmatpush1.msra.mxu0 %v213
    %4039 = vmatprep.subr.mxu0 %v210
    %4040 = vmatpush1.msra.mxu0 %v209
    %4041 = vmatprep.subr.mxu0 0.0
    %4042 = vmatpush2.msra.mxu0 0.0
    %4043 = vmatprep.subr.mxu0 0.0
    %4044 = vmatpush2.msra.mxu0 0.0
    %4045 = vmatprep.subr.mxu0 0.0
    %4046 = vmatpush2.msra.mxu0 0.0
    %4047 = vmatprep.subr.mxu0 0.0
    %4048 = vmatpush2.msra.mxu0 0.0
    %4049 = vmatprep.subr.mxu0 0.0
    %4050 = vmatpush2.msra.mxu0 0.0
    %4051 = vmatprep.subr.mxu0 0.0
    %4052 = vmatpush2.msra.mxu0 0.0
    %4053 = vmatprep.subr.mxu0 0.0
    %4054 = vmatpush2.msra.mxu0 0.0
    %4055 = vmatprep.subr.mxu0 0.0
    %4056 = vmatpush2.msra.mxu0 0.0
    %4057 = vmatprep.subr.mxu0 0.0
    %4058 = vmatpush2.msra.mxu0 0.0
    %4059 = vmatprep.subr.mxu0 0.0
    %4060 = vmatpush2.msra.mxu0 0.0
    %4061 = vmatprep.subr.mxu0 0.0
    %4062 = vmatpush2.msra.mxu0 0.0
    %4063 = vmatprep.subr.mxu0 0.0
    %4064 = vmatpush2.msra.mxu0 0.0
    %4065 = vmatprep.subr.mxu0 0.0
    %4066 = vmatpush2.msra.mxu0 0.0
    %4067 = vmatprep.subr.mxu0 0.0
    %4068 = vmatpush2.msra.mxu0 0.0
    %4069 = vmatprep.subr.mxu0 0.0
    %4070 = vmatpush2.msra.mxu0 0.0
    %4071 = vmatprep.subr.mxu0 0.0
    %4072 = vmatpush2.msra.mxu0 0.0
    %4073 = vmatprep.mubr.f32.mxu0 0.0
    %4074 = vmatmul.mubr.f32.gmra.mxu0 %v3713
    %v4075 = vpop.f32.mrf.mxu0
    %v4076 = vadd.f32 0.0, %v4075
    %v4077 = vpop.f32.mrf.mxu0
    %v4078 = vadd.f32 0.0, %v4077
    %4079 = vdwg.mxu0
    %v4082 = vrot.slane %v3936, 6
    %v4083 = vrot.slane %v3937, 5
    %v4084 = vsel %vm815, %v4083, %v4082
    %4086 = vmatprep.subr.mxu0 %v204
    %4087 = vmatpush1.msra.mxu0 %v203
    %4088 = vmatprep.subr.mxu0 %v200
    %4089 = vmatpush1.msra.mxu0 %v199
    %4090 = vmatprep.subr.mxu0 %v196
    %4091 = vmatpush1.msra.mxu0 %v195
    %4092 = vmatprep.subr.mxu0 %v192
    %4093 = vmatpush1.msra.mxu0 %v191
    %4094 = vmatprep.subr.mxu0 %v188
    %4095 = vmatpush1.msra.mxu0 %v187
    %4096 = vmatprep.subr.mxu0 %v184
    %4097 = vmatpush1.msra.mxu0 %v183
    %4098 = vmatprep.subr.mxu0 %v180
    %4099 = vmatpush1.msra.mxu0 %v179
    %4100 = vmatprep.subr.mxu0 %v176
    %4101 = vmatpush1.msra.mxu0 %v175
    %4102 = vmatprep.subr.mxu0 %v172
    %4103 = vmatpush1.msra.mxu0 %v171
    %4104 = vmatprep.subr.mxu0 %v168
    %4105 = vmatpush1.msra.mxu0 %v167
    %4106 = vmatprep.subr.mxu0 %v164
    %4107 = vmatpush1.msra.mxu0 %v163
    %4108 = vmatprep.subr.mxu0 %v160
    %4109 = vmatpush1.msra.mxu0 %v159
    %4110 = vmatprep.subr.mxu0 %v156
    %4111 = vmatpush1.msra.mxu0 %v155
    %4112 = vmatprep.subr.mxu0 %v152
    %4113 = vmatpush1.msra.mxu0 %v151
    %4114 = vmatprep.subr.mxu0 %v148
    %4115 = vmatpush1.msra.mxu0 %v147
    %4116 = vmatprep.subr.mxu0 %v144
    %4117 = vmatpush1.msra.mxu0 %v143
    %4118 = vmatprep.subr.mxu0 0.0
    %4119 = vmatpush2.msra.mxu0 0.0
    %4120 = vmatprep.subr.mxu0 0.0
    %4121 = vmatpush2.msra.mxu0 0.0
    %4122 = vmatprep.subr.mxu0 0.0
    %4123 = vmatpush2.msra.mxu0 0.0
    %4124 = vmatprep.subr.mxu0 0.0
    %4125 = vmatpush2.msra.mxu0 0.0
    %4126 = vmatprep.subr.mxu0 0.0
    %4127 = vmatpush2.msra.mxu0 0.0
    %4128 = vmatprep.subr.mxu0 0.0
    %4129 = vmatpush2.msra.mxu0 0.0
    %4130 = vmatprep.subr.mxu0 0.0
    %4131 = vmatpush2.msra.mxu0 0.0
    %4132 = vmatprep.subr.mxu0 0.0
    %4133 = vmatpush2.msra.mxu0 0.0
    %4134 = vmatprep.subr.mxu0 0.0
    %4135 = vmatpush2.msra.mxu0 0.0
    %4136 = vmatprep.subr.mxu0 0.0
    %4137 = vmatpush2.msra.mxu0 0.0
    %4138 = vmatprep.subr.mxu0 0.0
    %4139 = vmatpush2.msra.mxu0 0.0
    %4140 = vmatprep.subr.mxu0 0.0
    %4141 = vmatpush2.msra.mxu0 0.0
    %4142 = vmatprep.subr.mxu0 0.0
    %4143 = vmatpush2.msra.mxu0 0.0
    %4144 = vmatprep.subr.mxu0 0.0
    %4145 = vmatpush2.msra.mxu0 0.0
    %4146 = vmatprep.subr.mxu0 0.0
    %4147 = vmatpush2.msra.mxu0 0.0
    %4148 = vmatprep.subr.mxu0 0.0
    %4149 = vmatpush2.msra.mxu0 0.0
    %4150 = vmatprep.mubr.f32.mxu0 0.0
    %4151 = vmatmul.mubr.f32.gmra.mxu0 %v4084
    %v4152 = vpop.f32.mrf.mxu0
    %v4153 = vadd.f32 %v4005, %v4152
    %v4154 = vpop.f32.mrf.mxu0
    %v4155 = vadd.f32 %v4007, %v4154
    %4156 = vdwg.mxu0
    %4157 = vmatprep.subr.mxu0 %v206
    %4158 = vmatpush1.msra.mxu0 %v205
    %4159 = vmatprep.subr.mxu0 %v202
    %4160 = vmatpush1.msra.mxu0 %v201
    %4161 = vmatprep.subr.mxu0 %v198
    %4162 = vmatpush1.msra.mxu0 %v197
    %4163 = vmatprep.subr.mxu0 %v194
    %4164 = vmatpush1.msra.mxu0 %v193
    %4165 = vmatprep.subr.mxu0 %v190
    %4166 = vmatpush1.msra.mxu0 %v189
    %4167 = vmatprep.subr.mxu0 %v186
    %4168 = vmatpush1.msra.mxu0 %v185
    %4169 = vmatprep.subr.mxu0 %v182
    %4170 = vmatpush1.msra.mxu0 %v181
    %4171 = vmatprep.subr.mxu0 %v178
    %4172 = vmatpush1.msra.mxu0 %v177
    %4173 = vmatprep.subr.mxu0 %v174
    %4174 = vmatpush1.msra.mxu0 %v173
    %4175 = vmatprep.subr.mxu0 %v170
    %4176 = vmatpush1.msra.mxu0 %v169
    %4177 = vmatprep.subr.mxu0 %v166
    %4178 = vmatpush1.msra.mxu0 %v165
    %4179 = vmatprep.subr.mxu0 %v162
    %4180 = vmatpush1.msra.mxu0 %v161
    %4181 = vmatprep.subr.mxu0 %v158
    %4182 = vmatpush1.msra.mxu0 %v157
    %4183 = vmatprep.subr.mxu0 %v154
    %4184 = vmatpush1.msra.mxu0 %v153
    %4185 = vmatprep.subr.mxu0 %v150
    %4186 = vmatpush1.msra.mxu0 %v149
    %4187 = vmatprep.subr.mxu0 %v146
    %4188 = vmatpush1.msra.mxu0 %v145
    %4189 = vmatprep.subr.mxu0 0.0
    %4190 = vmatpush2.msra.mxu0 0.0
    %4191 = vmatprep.subr.mxu0 0.0
    %4192 = vmatpush2.msra.mxu0 0.0
    %4193 = vmatprep.subr.mxu0 0.0
    %4194 = vmatpush2.msra.mxu0 0.0
    %4195 = vmatprep.subr.mxu0 0.0
    %4196 = vmatpush2.msra.mxu0 0.0
    %4197 = vmatprep.subr.mxu0 0.0
    %4198 = vmatpush2.msra.mxu0 0.0
    %4199 = vmatprep.subr.mxu0 0.0
    %4200 = vmatpush2.msra.mxu0 0.0
    %4201 = vmatprep.subr.mxu0 0.0
    %4202 = vmatpush2.msra.mxu0 0.0
    %4203 = vmatprep.subr.mxu0 0.0
    %4204 = vmatpush2.msra.mxu0 0.0
    %4205 = vmatprep.subr.mxu0 0.0
    %4206 = vmatpush2.msra.mxu0 0.0
    %4207 = vmatprep.subr.mxu0 0.0
    %4208 = vmatpush2.msra.mxu0 0.0
    %4209 = vmatprep.subr.mxu0 0.0
    %4210 = vmatpush2.msra.mxu0 0.0
    %4211 = vmatprep.subr.mxu0 0.0
    %4212 = vmatpush2.msra.mxu0 0.0
    %4213 = vmatprep.subr.mxu0 0.0
    %4214 = vmatpush2.msra.mxu0 0.0
    %4215 = vmatprep.subr.mxu0 0.0
    %4216 = vmatpush2.msra.mxu0 0.0
    %4217 = vmatprep.subr.mxu0 0.0
    %4218 = vmatpush2.msra.mxu0 0.0
    %4219 = vmatprep.subr.mxu0 0.0
    %4220 = vmatpush2.msra.mxu0 0.0
    %4221 = vmatprep.mubr.f32.mxu0 0.0
    %4222 = vmatmul.mubr.f32.gmra.mxu0 %v4084
    %v4223 = vpop.f32.mrf.mxu0
    %v4224 = vadd.f32 %v4076, %v4223
    %v4225 = vpop.f32.mrf.mxu0
    %v4226 = vadd.f32 %v4078, %v4225
    %4227 = vdwg.mxu0
    %v4228 = vadd.f32 %v4153, %v964
    %v4229 = vadd.f32 %v4155, %v968
    %v4230 = vadd.f32 %v4224, %v972
    %v4231 = vadd.f32 %v4226, %v976
    %v4232 = vxor.u32 %v4228, 2147483648
    %v4233 = vmul.f32 %v4232, 1.442695
    %v4234 = vpow.pop %v4233
    %v4235 = vadd.f32 %v4234, 1.0
    %v4236 = vrcp.pop %v4235
    %v4237 = vmul.f32 1.0, %v4236
    %v4238 = vxor.u32 %v4229, 2147483648
    %v4239 = vmul.f32 %v4238, 1.442695
    %v4240 = vpow.pop %v4239
    %v4241 = vadd.f32 %v4240, 1.0
    %v4242 = vrcp.pop %v4241
    %v4243 = vmul.f32 1.0, %v4242
    %v4244 = vtanh.pop %v4230
    %v4245 = vxor.u32 %v4231, 2147483648
    %v4246 = vmul.f32 %v4245, 1.442695
    %v4247 = vpow.pop %v4246
    %v4248 = vadd.f32 %v4247, 1.0
    %v4249 = vrcp.pop %v4248
    %v4250 = vmul.f32 1.0, %v4249
    %v4251 = vmul.f32 %v4243, %v3711
    %v4252 = vmul.f32 %v4237, %v4244
    %v4253 = vadd.f32 %v4251, %v4252
    %v4254 = vtanh.pop %v4253
    %v4255 = vmul.f32 %v4250, %v4254
    %4256 = vmatprep.subr.mxu0 %v139
    %4257 = vmatpush1.msra.mxu0 %v138
    %4258 = vmatprep.subr.mxu0 %v135
    %4259 = vmatpush1.msra.mxu0 %v134
    %4260 = vmatprep.subr.mxu0 %v131
    %4261 = vmatpush1.msra.mxu0 %v130
    %4262 = vmatprep.subr.mxu0 %v127
    %4263 = vmatpush1.msra.mxu0 %v126
    %4264 = vmatprep.subr.mxu0 %v123
    %4265 = vmatpush1.msra.mxu0 %v122
    %4266 = vmatprep.subr.mxu0 %v119
    %4267 = vmatpush1.msra.mxu0 %v118
    %4268 = vmatprep.subr.mxu0 %v115
    %4269 = vmatpush1.msra.mxu0 %v114
    %4270 = vmatprep.subr.mxu0 %v111
    %4271 = vmatpush1.msra.mxu0 %v110
    %4272 = vmatprep.subr.mxu0 %v107
    %4273 = vmatpush1.msra.mxu0 %v106
    %4274 = vmatprep.subr.mxu0 %v103
    %4275 = vmatpush1.msra.mxu0 %v102
    %4276 = vmatprep.subr.mxu0 %v99
    %4277 = vmatpush1.msra.mxu0 %v98
    %4278 = vmatprep.subr.mxu0 %v95
    %4279 = vmatpush1.msra.mxu0 %v94
    %4280 = vmatprep.subr.mxu0 %v91
    %4281 = vmatpush1.msra.mxu0 %v90
    %4282 = vmatprep.subr.mxu0 %v87
    %4283 = vmatpush1.msra.mxu0 %v86
    %4284 = vmatprep.subr.mxu0 %v83
    %4285 = vmatpush1.msra.mxu0 %v82
    %4286 = vmatprep.subr.mxu0 %v79
    %4287 = vmatpush1.msra.mxu0 %v78
    %4288 = vmatprep.subr.mxu0 0.0
    %4289 = vmatpush2.msra.mxu0 0.0
    %4290 = vmatprep.subr.mxu0 0.0
    %4291 = vmatpush2.msra.mxu0 0.0
    %4292 = vmatprep.subr.mxu0 0.0
    %4293 = vmatpush2.msra.mxu0 0.0
    %4294 = vmatprep.subr.mxu0 0.0
    %4295 = vmatpush2.msra.mxu0 0.0
    %4296 = vmatprep.subr.mxu0 0.0
    %4297 = vmatpush2.msra.mxu0 0.0
    %4298 = vmatprep.subr.mxu0 0.0
    %4299 = vmatpush2.msra.mxu0 0.0
    %4300 = vmatprep.subr.mxu0 0.0
    %4301 = vmatpush2.msra.mxu0 0.0
    %4302 = vmatprep.subr.mxu0 0.0
    %4303 = vmatpush2.msra.mxu0 0.0
    %4304 = vmatprep.subr.mxu0 0.0
    %4305 = vmatpush2.msra.mxu0 0.0
    %4306 = vmatprep.subr.mxu0 0.0
    %4307 = vmatpush2.msra.mxu0 0.0
    %4308 = vmatprep.subr.mxu0 0.0
    %4309 = vmatpush2.msra.mxu0 0.0
    %4310 = vmatprep.subr.mxu0 0.0
    %4311 = vmatpush2.msra.mxu0 0.0
    %4312 = vmatprep.subr.mxu0 0.0
    %4313 = vmatpush2.msra.mxu0 0.0
    %4314 = vmatprep.subr.mxu0 0.0
    %4315 = vmatpush2.msra.mxu0 0.0
    %4316 = vmatprep.subr.mxu0 0.0
    %4317 = vmatpush2.msra.mxu0 0.0
    %4318 = vmatprep.subr.mxu0 0.0
    %4319 = vmatpush2.msra.mxu0 0.0
    %4320 = vmatprep.mubr.f32.mxu0 0.0
    %4321 = vmatmul.mubr.f32.gmra.mxu0 %v4084
    %v4322 = vpop.f32.mrf.mxu0
    %v4323 = vadd.f32 0.0, %v4322
    %v4324 = vpop.f32.mrf.mxu0
    %v4325 = vadd.f32 0.0, %v4324
    %4326 = vdwg.mxu0
    %4327 = vmatprep.subr.mxu0 %v141
    %4328 = vmatpush1.msra.mxu0 %v140
    %4329 = vmatprep.subr.mxu0 %v137
    %4330 = vmatpush1.msra.mxu0 %v136
    %4331 = vmatprep.subr.mxu0 %v133
    %4332 = vmatpush1.msra.mxu0 %v132
    %4333 = vmatprep.subr.mxu0 %v129
    %4334 = vmatpush1.msra.mxu0 %v128
    %4335 = vmatprep.subr.mxu0 %v125
    %4336 = vmatpush1.msra.mxu0 %v124
    %4337 = vmatprep.subr.mxu0 %v121
    %4338 = vmatpush1.msra.mxu0 %v120
    %4339 = vmatprep.subr.mxu0 %v117
    %4340 = vmatpush1.msra.mxu0 %v116
    %4341 = vmatprep.subr.mxu0 %v113
    %4342 = vmatpush1.msra.mxu0 %v112
    %4343 = vmatprep.subr.mxu0 %v109
    %4344 = vmatpush1.msra.mxu0 %v108
    %4345 = vmatprep.subr.mxu0 %v105
    %4346 = vmatpush1.msra.mxu0 %v104
    %4347 = vmatprep.subr.mxu0 %v101
    %4348 = vmatpush1.msra.mxu0 %v100
    %4349 = vmatprep.subr.mxu0 %v97
    %4350 = vmatpush1.msra.mxu0 %v96
    %4351 = vmatprep.subr.mxu0 %v93
    %4352 = vmatpush1.msra.mxu0 %v92
    %4353 = vmatprep.subr.mxu0 %v89
    %4354 = vmatpush1.msra.mxu0 %v88
    %4355 = vmatprep.subr.mxu0 %v85
    %4356 = vmatpush1.msra.mxu0 %v84
    %4357 = vmatprep.subr.mxu0 %v81
    %4358 = vmatpush1.msra.mxu0 %v80
    %4359 = vmatprep.subr.mxu0 0.0
    %4360 = vmatpush2.msra.mxu0 0.0
    %4361 = vmatprep.subr.mxu0 0.0
    %4362 = vmatpush2.msra.mxu0 0.0
    %4363 = vmatprep.subr.mxu0 0.0
    %4364 = vmatpush2.msra.mxu0 0.0
    %4365 = vmatprep.subr.mxu0 0.0
    %4366 = vmatpush2.msra.mxu0 0.0
    %4367 = vmatprep.subr.mxu0 0.0
    %4368 = vmatpush2.msra.mxu0 0.0
    %4369 = vmatprep.subr.mxu0 0.0
    %4370 = vmatpush2.msra.mxu0 0.0
    %4371 = vmatprep.subr.mxu0 0.0
    %4372 = vmatpush2.msra.mxu0 0.0
    %4373 = vmatprep.subr.mxu0 0.0
    %4374 = vmatpush2.msra.mxu0 0.0
    %4375 = vmatprep.subr.mxu0 0.0
    %4376 = vmatpush2.msra.mxu0 0.0
    %4377 = vmatprep.subr.mxu0 0.0
    %4378 = vmatpush2.msra.mxu0 0.0
    %4379 = vmatprep.subr.mxu0 0.0
    %4380 = vmatpush2.msra.mxu0 0.0
    %4381 = vmatprep.subr.mxu0 0.0
    %4382 = vmatpush2.msra.mxu0 0.0
    %4383 = vmatprep.subr.mxu0 0.0
    %4384 = vmatpush2.msra.mxu0 0.0
    %4385 = vmatprep.subr.mxu0 0.0
    %4386 = vmatpush2.msra.mxu0 0.0
    %4387 = vmatprep.subr.mxu0 0.0
    %4388 = vmatpush2.msra.mxu0 0.0
    %4389 = vmatprep.subr.mxu0 0.0
    %4390 = vmatpush2.msra.mxu0 0.0
    %4391 = vmatprep.mubr.f32.mxu0 0.0
    %4392 = vmatmul.mubr.f32.gmra.mxu0 %v4084
    %v4393 = vpop.f32.mrf.mxu0
    %v4394 = vadd.f32 0.0, %v4393
    %v4395 = vpop.f32.mrf.mxu0
    %v4396 = vadd.f32 0.0, %v4395
    %4397 = vdwg.mxu0
    %v4402 = vrot.slane %v4323, 1
    %v4403 = vrot.slane %v4325, 1
    %v4404 = vrot.slane %v4394, 1
    %v4405 = vrot.slane %v4396, 1
    %v4406 = vrot.slane %v4323, 2
    %v4407 = vrot.slane %v4325, 2
    %v4408 = vrot.slane %v4394, 2
    %v4409 = vrot.slane %v4396, 2
    %v4418 = vadd.f32 %v369, %v4402
    %v4419 = vadd.f32 %v371, %v4403
    %v4420 = vadd.f32 %v446, %v4404
    %v4421 = vadd.f32 %v448, %v4405
    %v4422 = vadd.f32 %v375, %v4406
    %v4423 = vadd.f32 %v377, %v4407
    %v4424 = vadd.f32 %v452, %v4408
    %v4425 = vadd.f32 %v454, %v4409
    %v4426 = vxor.u32 %v4418, 2147483648
    %v4427 = vxor.u32 %v4422, 2147483648
    %v4428 = vmul.f32 %v4426, 1.442695
    %v4429 = vpow.pop %v4428
    %v4430 = vmul.f32 %v4427, 1.442695
    %v4431 = vpow.pop %v4430
    %v4432 = vadd.f32 %v4429, 1.0
    %v4433 = vadd.f32 %v4431, 1.0
    %v4434 = vrcp.pop %v4432
    %v4435 = vmul.f32 1.0, %v4434
    %v4436 = vrcp.pop %v4433
    %v4437 = vmul.f32 1.0, %v4436
    %v4438 = vxor.u32 %v4419, 2147483648
    %v4439 = vxor.u32 %v4423, 2147483648
    %v4440 = vmul.f32 %v4438, 1.442695
    %v4441 = vpow.pop %v4440
    %v4442 = vmul.f32 %v4439, 1.442695
    %v4443 = vpow.pop %v4442
    %v4444 = vadd.f32 %v4441, 1.0
    %v4445 = vadd.f32 %v4443, 1.0
    %v4446 = vrcp.pop %v4444
    %v4447 = vmul.f32 1.0, %v4446
    %v4448 = vrcp.pop %v4445
    %v4449 = vmul.f32 1.0, %v4448
    %v4450 = vtanh.pop %v4420
    %v4451 = vtanh.pop %v4424
    %v4452 = vxor.u32 %v4421, 2147483648
    %v4453 = vxor.u32 %v4425, 2147483648
    %v4454 = vmul.f32 %v4452, 1.442695
    %v4455 = vpow.pop %v4454
    %v4456 = vmul.f32 %v4453, 1.442695
    %v4457 = vpow.pop %v4456
    %v4458 = vadd.f32 %v4455, 1.0
    %v4459 = vadd.f32 %v4457, 1.0
    %v4460 = vrcp.pop %v4458
    %v4461 = vmul.f32 1.0, %v4460
    %v4462 = vrcp.pop %v4459
    %v4463 = vmul.f32 1.0, %v4462
    %v4466 = vrot.slane %v3932, 7
    %v4467 = vrot.slane %v3933, 7
    %v4470 = vmul.f32 %v4447, %v4466
    %v4471 = vmul.f32 %v4449, %v4467
    %v4472 = vmul.f32 %v4435, %v4450
    %v4473 = vmul.f32 %v4437, %v4451
    %v4474 = vadd.f32 %v4470, %v4472
    %v4475 = vadd.f32 %v4471, %v4473
    %v4476 = vtanh.pop %v4474
    %v4477 = vtanh.pop %v4475
    %v4478 = vmul.f32 %v4461, %v4476
    %v4479 = vmul.f32 %v4463, %v4477
    %4480 = vmatprep.subr.mxu0 %v268
    %4481 = vmatpush1.msra.mxu0 %v267
    %4482 = vmatprep.subr.mxu0 %v264
    %4483 = vmatpush1.msra.mxu0 %v263
    %4484 = vmatprep.subr.mxu0 %v260
    %4485 = vmatpush1.msra.mxu0 %v259
    %4486 = vmatprep.subr.mxu0 %v256
    %4487 = vmatpush1.msra.mxu0 %v255
    %4488 = vmatprep.subr.mxu0 %v252
    %4489 = vmatpush1.msra.mxu0 %v251
    %4490 = vmatprep.subr.mxu0 %v248
    %4491 = vmatpush1.msra.mxu0 %v247
    %4492 = vmatprep.subr.mxu0 %v244
    %4493 = vmatpush1.msra.mxu0 %v243
    %4494 = vmatprep.subr.mxu0 %v240
    %4495 = vmatpush1.msra.mxu0 %v239
    %4496 = vmatprep.subr.mxu0 %v236
    %4497 = vmatpush1.msra.mxu0 %v235
    %4498 = vmatprep.subr.mxu0 %v232
    %4499 = vmatpush1.msra.mxu0 %v231
    %4500 = vmatprep.subr.mxu0 %v228
    %4501 = vmatpush1.msra.mxu0 %v227
    %4502 = vmatprep.subr.mxu0 %v224
    %4503 = vmatpush1.msra.mxu0 %v223
    %4504 = vmatprep.subr.mxu0 %v220
    %4505 = vmatpush1.msra.mxu0 %v219
    %4506 = vmatprep.subr.mxu0 %v216
    %4507 = vmatpush1.msra.mxu0 %v215
    %4508 = vmatprep.subr.mxu0 %v212
    %4509 = vmatpush1.msra.mxu0 %v211
    %4510 = vmatprep.subr.mxu0 %v208
    %4511 = vmatpush1.msra.mxu0 %v207
    %4512 = vmatprep.subr.mxu0 0.0
    %4513 = vmatpush2.msra.mxu0 0.0
    %4514 = vmatprep.subr.mxu0 0.0
    %4515 = vmatpush2.msra.mxu0 0.0
    %4516 = vmatprep.subr.mxu0 0.0
    %4517 = vmatpush2.msra.mxu0 0.0
    %4518 = vmatprep.subr.mxu0 0.0
    %4519 = vmatpush2.msra.mxu0 0.0
    %4520 = vmatprep.subr.mxu0 0.0
    %4521 = vmatpush2.msra.mxu0 0.0
    %4522 = vmatprep.subr.mxu0 0.0
    %4523 = vmatpush2.msra.mxu0 0.0
    %4524 = vmatprep.subr.mxu0 0.0
    %4525 = vmatpush2.msra.mxu0 0.0
    %4526 = vmatprep.subr.mxu0 0.0
    %4527 = vmatpush2.msra.mxu0 0.0
    %4528 = vmatprep.subr.mxu0 0.0
    %4529 = vmatpush2.msra.mxu0 0.0
    %4530 = vmatprep.subr.mxu0 0.0
    %4531 = vmatpush2.msra.mxu0 0.0
    %4532 = vmatprep.subr.mxu0 0.0
    %4533 = vmatpush2.msra.mxu0 0.0
    %4534 = vmatprep.subr.mxu0 0.0
    %4535 = vmatpush2.msra.mxu0 0.0
    %4536 = vmatprep.subr.mxu0 0.0
    %4537 = vmatpush2.msra.mxu0 0.0
    %4538 = vmatprep.subr.mxu0 0.0
    %4539 = vmatpush2.msra.mxu0 0.0
    %4540 = vmatprep.subr.mxu0 0.0
    %4541 = vmatpush2.msra.mxu0 0.0
    %4542 = vmatprep.subr.mxu0 0.0
    %4543 = vmatpush2.msra.mxu0 0.0
    %4544 = vmatprep.mubr.f32.mxu0 0.0
    %4545 = vmatmul.mubr.f32.gmra.mxu0 %v4255
    %v4546 = vpop.f32.mrf.mxu0
    %v4547 = vadd.f32 0.0, %v4546
    %v4548 = vpop.f32.mrf.mxu0
    %v4549 = vadd.f32 0.0, %v4548
    %4550 = vdwg.mxu0
    %4551 = vmatprep.subr.mxu0 %v270
    %4552 = vmatpush1.msra.mxu0 %v269
    %4553 = vmatprep.subr.mxu0 %v266
    %4554 = vmatpush1.msra.mxu0 %v265
    %4555 = vmatprep.subr.mxu0 %v262
    %4556 = vmatpush1.msra.mxu0 %v261
    %4557 = vmatprep.subr.mxu0 %v258
    %4558 = vmatpush1.msra.mxu0 %v257
    %4559 = vmatprep.subr.mxu0 %v254
    %4560 = vmatpush1.msra.mxu0 %v253
    %4561 = vmatprep.subr.mxu0 %v250
    %4562 = vmatpush1.msra.mxu0 %v249
    %4563 = vmatprep.subr.mxu0 %v246
    %4564 = vmatpush1.msra.mxu0 %v245
    %4565 = vmatprep.subr.mxu0 %v242
    %4566 = vmatpush1.msra.mxu0 %v241
    %4567 = vmatprep.subr.mxu0 %v238
    %4568 = vmatpush1.msra.mxu0 %v237
    %4569 = vmatprep.subr.mxu0 %v234
    %4570 = vmatpush1.msra.mxu0 %v233
    %4571 = vmatprep.subr.mxu0 %v230
    %4572 = vmatpush1.msra.mxu0 %v229
    %4573 = vmatprep.subr.mxu0 %v226
    %4574 = vmatpush1.msra.mxu0 %v225
    %4575 = vmatprep.subr.mxu0 %v222
    %4576 = vmatpush1.msra.mxu0 %v221
    %4577 = vmatprep.subr.mxu0 %v218
    %4578 = vmatpush1.msra.mxu0 %v217
    %4579 = vmatprep.subr.mxu0 %v214
    %4580 = vmatpush1.msra.mxu0 %v213
    %4581 = vmatprep.subr.mxu0 %v210
    %4582 = vmatpush1.msra.mxu0 %v209
    %4583 = vmatprep.subr.mxu0 0.0
    %4584 = vmatpush2.msra.mxu0 0.0
    %4585 = vmatprep.subr.mxu0 0.0
    %4586 = vmatpush2.msra.mxu0 0.0
    %4587 = vmatprep.subr.mxu0 0.0
    %4588 = vmatpush2.msra.mxu0 0.0
    %4589 = vmatprep.subr.mxu0 0.0
    %4590 = vmatpush2.msra.mxu0 0.0
    %4591 = vmatprep.subr.mxu0 0.0
    %4592 = vmatpush2.msra.mxu0 0.0
    %4593 = vmatprep.subr.mxu0 0.0
    %4594 = vmatpush2.msra.mxu0 0.0
    %4595 = vmatprep.subr.mxu0 0.0
    %4596 = vmatpush2.msra.mxu0 0.0
    %4597 = vmatprep.subr.mxu0 0.0
    %4598 = vmatpush2.msra.mxu0 0.0
    %4599 = vmatprep.subr.mxu0 0.0
    %4600 = vmatpush2.msra.mxu0 0.0
    %4601 = vmatprep.subr.mxu0 0.0
    %4602 = vmatpush2.msra.mxu0 0.0
    %4603 = vmatprep.subr.mxu0 0.0
    %4604 = vmatpush2.msra.mxu0 0.0
    %4605 = vmatprep.subr.mxu0 0.0
    %4606 = vmatpush2.msra.mxu0 0.0
    %4607 = vmatprep.subr.mxu0 0.0
    %4608 = vmatpush2.msra.mxu0 0.0
    %4609 = vmatprep.subr.mxu0 0.0
    %4610 = vmatpush2.msra.mxu0 0.0
    %4611 = vmatprep.subr.mxu0 0.0
    %4612 = vmatpush2.msra.mxu0 0.0
    %4613 = vmatprep.subr.mxu0 0.0
    %4614 = vmatpush2.msra.mxu0 0.0
    %4615 = vmatprep.mubr.f32.mxu0 0.0
    %4616 = vmatmul.mubr.f32.gmra.mxu0 %v4255
    %v4617 = vpop.f32.mrf.mxu0
    %v4618 = vadd.f32 0.0, %v4617
    %v4619 = vpop.f32.mrf.mxu0
    %v4620 = vadd.f32 0.0, %v4619
    %4621 = vdwg.mxu0
    %v4624 = vrot.slane %v4478, 7
    %v4625 = vrot.slane %v4479, 6
    %v4626 = vsel %vm815, %v4625, %v4624
    %4628 = vmatprep.subr.mxu0 %v204
    %4629 = vmatpush1.msra.mxu0 %v203
    %4630 = vmatprep.subr.mxu0 %v200
    %4631 = vmatpush1.msra.mxu0 %v199
    %4632 = vmatprep.subr.mxu0 %v196
    %4633 = vmatpush1.msra.mxu0 %v195
    %4634 = vmatprep.subr.mxu0 %v192
    %4635 = vmatpush1.msra.mxu0 %v191
    %4636 = vmatprep.subr.mxu0 %v188
    %4637 = vmatpush1.msra.mxu0 %v187
    %4638 = vmatprep.subr.mxu0 %v184
    %4639 = vmatpush1.msra.mxu0 %v183
    %4640 = vmatprep.subr.mxu0 %v180
    %4641 = vmatpush1.msra.mxu0 %v179
    %4642 = vmatprep.subr.mxu0 %v176
    %4643 = vmatpush1.msra.mxu0 %v175
    %4644 = vmatprep.subr.mxu0 %v172
    %4645 = vmatpush1.msra.mxu0 %v171
    %4646 = vmatprep.subr.mxu0 %v168
    %4647 = vmatpush1.msra.mxu0 %v167
    %4648 = vmatprep.subr.mxu0 %v164
    %4649 = vmatpush1.msra.mxu0 %v163
    %4650 = vmatprep.subr.mxu0 %v160
    %4651 = vmatpush1.msra.mxu0 %v159
    %4652 = vmatprep.subr.mxu0 %v156
    %4653 = vmatpush1.msra.mxu0 %v155
    %4654 = vmatprep.subr.mxu0 %v152
    %4655 = vmatpush1.msra.mxu0 %v151
    %4656 = vmatprep.subr.mxu0 %v148
    %4657 = vmatpush1.msra.mxu0 %v147
    %4658 = vmatprep.subr.mxu0 %v144
    %4659 = vmatpush1.msra.mxu0 %v143
    %4660 = vmatprep.subr.mxu0 0.0
    %4661 = vmatpush2.msra.mxu0 0.0
    %4662 = vmatprep.subr.mxu0 0.0
    %4663 = vmatpush2.msra.mxu0 0.0
    %4664 = vmatprep.subr.mxu0 0.0
    %4665 = vmatpush2.msra.mxu0 0.0
    %4666 = vmatprep.subr.mxu0 0.0
    %4667 = vmatpush2.msra.mxu0 0.0
    %4668 = vmatprep.subr.mxu0 0.0
    %4669 = vmatpush2.msra.mxu0 0.0
    %4670 = vmatprep.subr.mxu0 0.0
    %4671 = vmatpush2.msra.mxu0 0.0
    %4672 = vmatprep.subr.mxu0 0.0
    %4673 = vmatpush2.msra.mxu0 0.0
    %4674 = vmatprep.subr.mxu0 0.0
    %4675 = vmatpush2.msra.mxu0 0.0
    %4676 = vmatprep.subr.mxu0 0.0
    %4677 = vmatpush2.msra.mxu0 0.0
    %4678 = vmatprep.subr.mxu0 0.0
    %4679 = vmatpush2.msra.mxu0 0.0
    %4680 = vmatprep.subr.mxu0 0.0
    %4681 = vmatpush2.msra.mxu0 0.0
    %4682 = vmatprep.subr.mxu0 0.0
    %4683 = vmatpush2.msra.mxu0 0.0
    %4684 = vmatprep.subr.mxu0 0.0
    %4685 = vmatpush2.msra.mxu0 0.0
    %4686 = vmatprep.subr.mxu0 0.0
    %4687 = vmatpush2.msra.mxu0 0.0
    %4688 = vmatprep.subr.mxu0 0.0
    %4689 = vmatpush2.msra.mxu0 0.0
    %4690 = vmatprep.subr.mxu0 0.0
    %4691 = vmatpush2.msra.mxu0 0.0
    %4692 = vmatprep.mubr.f32.mxu0 0.0
    %4693 = vmatmul.mubr.f32.gmra.mxu0 %v4626
    %v4694 = vpop.f32.mrf.mxu0
    %v4695 = vadd.f32 %v4547, %v4694
    %v4696 = vpop.f32.mrf.mxu0
    %v4697 = vadd.f32 %v4549, %v4696
    %4698 = vdwg.mxu0
    %4699 = vmatprep.subr.mxu0 %v206
    %4700 = vmatpush1.msra.mxu0 %v205
    %4701 = vmatprep.subr.mxu0 %v202
    %4702 = vmatpush1.msra.mxu0 %v201
    %4703 = vmatprep.subr.mxu0 %v198
    %4704 = vmatpush1.msra.mxu0 %v197
    %4705 = vmatprep.subr.mxu0 %v194
    %4706 = vmatpush1.msra.mxu0 %v193
    %4707 = vmatprep.subr.mxu0 %v190
    %4708 = vmatpush1.msra.mxu0 %v189
    %4709 = vmatprep.subr.mxu0 %v186
    %4710 = vmatpush1.msra.mxu0 %v185
    %4711 = vmatprep.subr.mxu0 %v182
    %4712 = vmatpush1.msra.mxu0 %v181
    %4713 = vmatprep.subr.mxu0 %v178
    %4714 = vmatpush1.msra.mxu0 %v177
    %4715 = vmatprep.subr.mxu0 %v174
    %4716 = vmatpush1.msra.mxu0 %v173
    %4717 = vmatprep.subr.mxu0 %v170
    %4718 = vmatpush1.msra.mxu0 %v169
    %4719 = vmatprep.subr.mxu0 %v166
    %4720 = vmatpush1.msra.mxu0 %v165
    %4721 = vmatprep.subr.mxu0 %v162
    %4722 = vmatpush1.msra.mxu0 %v161
    %4723 = vmatprep.subr.mxu0 %v158
    %4724 = vmatpush1.msra.mxu0 %v157
    %4725 = vmatprep.subr.mxu0 %v154
    %4726 = vmatpush1.msra.mxu0 %v153
    %4727 = vmatprep.subr.mxu0 %v150
    %4728 = vmatpush1.msra.mxu0 %v149
    %4729 = vmatprep.subr.mxu0 %v146
    %4730 = vmatpush1.msra.mxu0 %v145
    %4731 = vmatprep.subr.mxu0 0.0
    %4732 = vmatpush2.msra.mxu0 0.0
    %4733 = vmatprep.subr.mxu0 0.0
    %4734 = vmatpush2.msra.mxu0 0.0
    %4735 = vmatprep.subr.mxu0 0.0
    %4736 = vmatpush2.msra.mxu0 0.0
    %4737 = vmatprep.subr.mxu0 0.0
    %4738 = vmatpush2.msra.mxu0 0.0
    %4739 = vmatprep.subr.mxu0 0.0
    %4740 = vmatpush2.msra.mxu0 0.0
    %4741 = vmatprep.subr.mxu0 0.0
    %4742 = vmatpush2.msra.mxu0 0.0
    %4743 = vmatprep.subr.mxu0 0.0
    %4744 = vmatpush2.msra.mxu0 0.0
    %4745 = vmatprep.subr.mxu0 0.0
    %4746 = vmatpush2.msra.mxu0 0.0
    %4747 = vmatprep.subr.mxu0 0.0
    %4748 = vmatpush2.msra.mxu0 0.0
    %4749 = vmatprep.subr.mxu0 0.0
    %4750 = vmatpush2.msra.mxu0 0.0
    %4751 = vmatprep.subr.mxu0 0.0
    %4752 = vmatpush2.msra.mxu0 0.0
    %4753 = vmatprep.subr.mxu0 0.0
    %4754 = vmatpush2.msra.mxu0 0.0
    %4755 = vmatprep.subr.mxu0 0.0
    %4756 = vmatpush2.msra.mxu0 0.0
    %4757 = vmatprep.subr.mxu0 0.0
    %4758 = vmatpush2.msra.mxu0 0.0
    %4759 = vmatprep.subr.mxu0 0.0
    %4760 = vmatpush2.msra.mxu0 0.0
    %4761 = vmatprep.subr.mxu0 0.0
    %4762 = vmatpush2.msra.mxu0 0.0
    %4763 = vmatprep.mubr.f32.mxu0 0.0
    %4764 = vmatmul.mubr.f32.gmra.mxu0 %v4626
    %v4765 = vpop.f32.mrf.mxu0
    %v4766 = vadd.f32 %v4618, %v4765
    %v4767 = vpop.f32.mrf.mxu0
    %v4768 = vadd.f32 %v4620, %v4767
    %4769 = vdwg.mxu0
    %v4770 = vadd.f32 %v4695, %v964
    %v4771 = vadd.f32 %v4697, %v968
    %v4772 = vadd.f32 %v4766, %v972
    %v4773 = vadd.f32 %v4768, %v976
    %v4774 = vxor.u32 %v4770, 2147483648
    %v4775 = vmul.f32 %v4774, 1.442695
    %v4776 = vpow.pop %v4775
    %v4777 = vadd.f32 %v4776, 1.0
    %v4778 = vrcp.pop %v4777
    %v4779 = vmul.f32 1.0, %v4778
    %v4780 = vxor.u32 %v4771, 2147483648
    %v4781 = vmul.f32 %v4780, 1.442695
    %v4782 = vpow.pop %v4781
    %v4783 = vadd.f32 %v4782, 1.0
    %v4784 = vrcp.pop %v4783
    %v4785 = vmul.f32 1.0, %v4784
    %v4786 = vtanh.pop %v4772
    %v4787 = vxor.u32 %v4773, 2147483648
    %v4788 = vmul.f32 %v4787, 1.442695
    %v4789 = vpow.pop %v4788
    %v4790 = vadd.f32 %v4789, 1.0
    %v4791 = vrcp.pop %v4790
    %v4792 = vmul.f32 1.0, %v4791
    %v4793 = vmul.f32 %v4785, %v4253
    %v4794 = vmul.f32 %v4779, %v4786
    %v4795 = vadd.f32 %v4793, %v4794
    %v4796 = vtanh.pop %v4795
    %v4797 = vmul.f32 %v4792, %v4796
    %v4798 = vld [vmem:[%s7] sm:$0xff]
    %v4799 = vld [vmem:[%s7 + $0x8] sm:$0xff]
    %v4800 = vld [vmem:[%s7 + $0x10] sm:$0xff]
    %v4801 = vld [vmem:[%s7 + $0x18] sm:$0xff]
    %v4802 = vld [vmem:[%s7 + $0x20] sm:$0xff]
    %v4803 = vld [vmem:[%s7 + $0x28] sm:$0xff]
    %v4804 = vld [vmem:[%s7 + $0x30] sm:$0xff]
    %v4805 = vld [vmem:[%s7 + $0x38] sm:$0xff]
    %v4806 = vld [vmem:[%s7 + $0x40] sm:$0xff]
    %v4807 = vld [vmem:[%s7 + $0x48] sm:$0xff]
    %v4808 = vld [vmem:[%s7 + $0x50] sm:$0xff]
    %v4809 = vld [vmem:[%s7 + $0x58] sm:$0xff]
    %v4810 = vld [vmem:[%s7 + $0x60] sm:$0xff]
    %v4811 = vld [vmem:[%s7 + $0x68] sm:$0xff]
    %v4812 = vld [vmem:[%s7 + $0x70] sm:$0xff]
    %v4813 = vld [vmem:[%s7 + $0x78] sm:$0xff]
    %v4814 = vld [vmem:[%s8] sm:$0x1]
    %v4816 = vlaneseq
    %v4817 = vshrl.u32 %v4816, 7
    %v4818 = vsub.s32 0, %v4817
    %v4819 = vrot.slane %v4814, %v4818
    %4821 = vmatprep.subr.mxu0 0.0
    %4822 = vmatpush1.msra.mxu0 %v4813
    %4823 = vmatprep.subr.mxu0 0.0
    %4824 = vmatpush1.msra.mxu0 %v4812
    %4825 = vmatprep.subr.mxu0 0.0
    %4826 = vmatpush1.msra.mxu0 %v4811
    %4827 = vmatprep.subr.mxu0 0.0
    %4828 = vmatpush1.msra.mxu0 %v4810
    %4829 = vmatprep.subr.mxu0 0.0
    %4830 = vmatpush1.msra.mxu0 %v4809
    %4831 = vmatprep.subr.mxu0 0.0
    %4832 = vmatpush1.msra.mxu0 %v4808
    %4833 = vmatprep.subr.mxu0 0.0
    %4834 = vmatpush1.msra.mxu0 %v4807
    %4835 = vmatprep.subr.mxu0 0.0
    %4836 = vmatpush1.msra.mxu0 %v4806
    %4837 = vmatprep.subr.mxu0 0.0
    %4838 = vmatpush1.msra.mxu0 %v4805
    %4839 = vmatprep.subr.mxu0 0.0
    %4840 = vmatpush1.msra.mxu0 %v4804
    %4841 = vmatprep.subr.mxu0 0.0
    %4842 = vmatpush1.msra.mxu0 %v4803
    %4843 = vmatprep.subr.mxu0 0.0
    %4844 = vmatpush1.msra.mxu0 %v4802
    %4845 = vmatprep.subr.mxu0 0.0
    %4846 = vmatpush1.msra.mxu0 %v4801
    %4847 = vmatprep.subr.mxu0 0.0
    %4848 = vmatpush1.msra.mxu0 %v4800
    %4849 = vmatprep.subr.mxu0 0.0
    %4850 = vmatpush1.msra.mxu0 %v4799
    %4851 = vmatprep.subr.mxu0 0.0
    %4852 = vmatpush1.msra.mxu0 %v4798
    %4853 = vmatprep.subr.mxu0 0.0
    %4854 = vmatpush2.msra.mxu0 0.0
    %4855 = vmatprep.subr.mxu0 0.0
    %4856 = vmatpush2.msra.mxu0 0.0
    %4857 = vmatprep.subr.mxu0 0.0
    %4858 = vmatpush2.msra.mxu0 0.0
    %4859 = vmatprep.subr.mxu0 0.0
    %4860 = vmatpush2.msra.mxu0 0.0
    %4861 = vmatprep.subr.mxu0 0.0
    %4862 = vmatpush2.msra.mxu0 0.0
    %4863 = vmatprep.subr.mxu0 0.0
    %4864 = vmatpush2.msra.mxu0 0.0
    %4865 = vmatprep.subr.mxu0 0.0
    %4866 = vmatpush2.msra.mxu0 0.0
    %4867 = vmatprep.subr.mxu0 0.0
    %4868 = vmatpush2.msra.mxu0 0.0
    %4869 = vmatprep.subr.mxu0 0.0
    %4870 = vmatpush2.msra.mxu0 0.0
    %4871 = vmatprep.subr.mxu0 0.0
    %4872 = vmatpush2.msra.mxu0 0.0
    %4873 = vmatprep.subr.mxu0 0.0
    %4874 = vmatpush2.msra.mxu0 0.0
    %4875 = vmatprep.subr.mxu0 0.0
    %4876 = vmatpush2.msra.mxu0 0.0
    %4877 = vmatprep.subr.mxu0 0.0
    %4878 = vmatpush2.msra.mxu0 0.0
    %4879 = vmatprep.subr.mxu0 0.0
    %4880 = vmatpush2.msra.mxu0 0.0
    %4881 = vmatprep.subr.mxu0 0.0
    %4882 = vmatpush2.msra.mxu0 0.0
    %4883 = vmatprep.subr.mxu0 0.0
    %4884 = vmatpush2.msra.mxu0 0.0
    %4885 = vmatprep.mubr.f32.mxu0 0.0
    %4886 = vmatmul.mubr.f32.gmra.mxu0 %v4797
    %v4887 = vpop.f32.mrf.mxu0
    %v4888 = vadd.f32 %v4819, %v4887
    %v4889 = vpop.f32.mrf.mxu0
    %4890 = vdwg.mxu0
    %vm4891 = vcmask 58368
    %4892 = vst.msk [vmem:[#allocation8] sm:$0x3] %vm4891, %v4888
    // Predicated region
    $region50: #{lstmnet_forward.1} parent=1 // pred_check
      _
    $region51: #{lstmnet_forward.1} parent=1 // pred_check_branch
      %4894 = sbr.rel (0) target = $region53
    $region52: #{lstmnet_forward.1} parent=1 // pred_region
      %s4896 = ssub.s32 32, 32
      %4897 = vsyncadd [#allocation4], %s4896
      %s4899 = sshll.u32 [#allocation8], 4
      %s4900 = int_to_ptr.vmem [resolvable:$true] %s4899
      %4902 = dma.vmem_to_hbm [thread:$0]  %s4900, 32, %s9, [#allocation4]
    $region53: #{lstmnet_forward.1} parent=1 // pred_fallthru
      _
    // Predicated region
    $region54: #{lstmnet_forward.1} parent=1 // pred_check
      _
    $region55: #{lstmnet_forward.1} parent=1 // pred_check_branch
      %4904 = sbr.rel (0) target = $region57
    $region56: #{lstmnet_forward.1} parent=1 // pred_region
      %4905 = dma.done [#allocation4], 32
    $region57: #{lstmnet_forward.1} parent=1 // pred_fallthru
      _
    %4906 = vsyncpa [#allocation3], 1
    %4907 = vsyncpa [#allocation6], 1
    %4908 = vsyncpa [#allocation4], 1

</llo_original>
